<compile_context>
chip_gen: v7x
topology: tpu7x:2x2x1
jax: 0.10.0
libtpu: 0.0.40
codegen_flags: <defaults>
</compile_context>

<pallas_src>
import functools

import jax
import jax.numpy as jnp
from jax import lax
from jax.experimental import pallas as pl
from jax.experimental.pallas import tpu as pltpu

LANES = 128
SUBLANES = 8
CHUNK = SUBLANES * LANES          # 1024: main part is a multiple of this
TILE_R_MAX = 2048                 # rows of 128 lanes per grid step (1 MiB/input in f32)
MIN_PALLAS_ELEMENTS = 16 * 1024   # below this, plain JAX beats kernel dispatch overhead


def _per_elem_huber(diff_f32, delta):
    """Branch-free smooth-L1: q = min(|d|, delta);  q * (|d| - q/2) / delta."""
    adiff = jnp.abs(diff_f32)
    q = jnp.minimum(adiff, jnp.float32(delta))
    return q * (adiff - 0.5 * q) * jnp.float32(1.0 / delta)


def _huber_loss_ref(pred, gold, delta=5.0):
    """Plain-JAX reference (two-sided select form), also the small-n fast path."""
    d = pred.astype(jnp.float32) - gold.astype(jnp.float32)
    ad = jnp.abs(d)
    per = jnp.where(ad < delta, 0.5 * d * d / delta, ad - 0.5 * delta)
    return jnp.mean(per)


def _num_tensorcores_per_device():
    """2 for chips exposing 2 TensorCores per JAX device (v7x, v4/v5p megacore),
    1 for single-TC v5e/v6e (and anything unrecognized)."""
    try:
        kind = jax.devices()[0].device_kind.lower()
    except Exception:
        return 1
    if "lite" in kind or "v5e" in kind or "v6" in kind:
        return 1
    if "v7" in kind or "v4" in kind or "v5" in kind:
        return 2
    return 1


def _huber_sum_kernel(pred_ref, gold_ref, out_ref, *,
                      delta, rows_valid, tile_r, tiles_per_p, num_tiles,
                      needs_mask):
    """Accumulates the un-normalized Huber sum of one (tile_r, 128) tile into
    this p-slice's resident (1, 8, 128) f32 output block."""
    p = pl.program_id(0)
    k = pl.program_id(1)

    @pl.when(k == 0)
    def _():
        out_ref[...] = jnp.zeros_like(out_ref)

    diff = pred_ref[...].astype(jnp.float32) - gold_ref[...].astype(jnp.float32)
    per = _per_elem_huber(diff, delta)

    def fold(x):
        # (tile_r, 128) -> (1, 8, 128) with sublane-aligned VPU adds only
        # (no cross-lane XLU reduction in the steady-state loop).
        return x.reshape(tile_r // SUBLANES, SUBLANES, LANES).sum(axis=0)[None]

    if not needs_mask:
        # Trace-time: every tile is full and the parallel split is exact.
        out_ref[...] += fold(per)
    else:
        t = p * tiles_per_p + k                       # logical (unclamped) tile id
        is_boundary = t >= num_tiles - 1

        @pl.when(jnp.logical_not(is_boundary))
        def _():
            # Steady state: no iota / compare / select at all.
            out_ref[...] += fold(per)

        @pl.when(is_boundary)
        def _():
            # Row-only mask: drops (a) garbage rows of the partial last block
            # and (b) the entire redundant clamped tile (its logical row0 is
            # already >= rows_valid).  int32 row ids: safe up to 2^31 rows.
            row_ids = t * tile_r + lax.broadcasted_iota(
                jnp.int32, (tile_r, LANES), 0)
            masked = jnp.where(row_ids < rows_valid, per, 0.0)
            out_ref[...] += fold(masked)


def huber_loss(pred, gold, raw=None, col_names=None, *, delta=5.0):
    """Forward pass of HuberLoss (smooth_l1 with beta=delta, reduction='mean').
    `raw` and `col_names` are unused, as in the reference PyTorch module."""
    assert pred.shape == gold.shape, "pred/gold must have the same shape"
    n = int(pred.size)
    delta = float(delta)

    if n == 0:
        return jnp.float32(0.0)
    if n < MIN_PALLAS_ELEMENTS:
        # Tiny inputs (e.g. the shipped (2, 8, 48) case): kernel dispatch would
        # dominate, plain JAX is strictly faster.
        return _huber_loss_ref(pred, gold, delta)

    pred_f = jnp.ravel(pred)          # contiguous reshape: no copy
    gold_f = jnp.ravel(gold)

    tail = n % CHUNK
    n_main = n - tail
    if tail:
        # <1024-element ragged tail handled in plain JAX instead of padding the
        # whole array (the wrapper-side jnp.pad copy was the big HBM tax).
        tail_sum = jnp.sum(_per_elem_huber(
            pred_f[n_main:].astype(jnp.float32)
            - gold_f[n_main:].astype(jnp.float32), delta))
        pred_f = pred_f[:n_main]
        gold_f = gold_f[:n_main]
    else:
        tail_sum = jnp.float32(0.0)

    rows = n_main // LANES                        # multiple of 8
    pred2d = pred_f.reshape(rows, LANES)
    gold2d = gold_f.reshape(rows, LANES)

    tile_r = min(TILE_R_MAX, rows)                # multiple of 8
    num_tiles = pl.cdiv(rows, tile_r)
    num_p = _num_tensorcores_per_device() if num_tiles > 1 else 1
    num_p = min(num_p, num_tiles)
    tiles_per_p = pl.cdiv(num_tiles, num_p)
    has_redundant = num_p * tiles_per_p != num_tiles
    needs_mask = (rows % tile_r != 0) or has_redundant

    kernel = functools.partial(
        _huber_sum_kernel,
        delta=delta,
        rows_valid=rows,
        tile_r=tile_r,
        tiles_per_p=tiles_per_p,
        num_tiles=num_tiles,
        needs_mask=needs_mask,
    )

    if has_redundant:
        # At most one redundant step (num_p <= 2); clamping maps it onto the
        # same block index as the previous step, so Pallas skips its DMA and
        # the in-kernel row mask zeroes its contribution.
        def in_map(p, k):
            return (jnp.minimum(p * tiles_per_p + k, num_tiles - 1), 0)
    else:
        def in_map(p, k):
            return (p * tiles_per_p + k, 0)

    cost = pl.CostEstimate(
        flops=8 * n_main,
        transcendentals=0,
        bytes_accessed=n_main * (pred.dtype.itemsize + gold.dtype.itemsize)
                       + num_p * SUBLANES * LANES * 4,
    )

    partials = pl.pallas_call(
        kernel,
        out_shape=jax.ShapeDtypeStruct((num_p, SUBLANES, LANES), jnp.float32),
        grid_spec=pltpu.PrefetchScalarGridSpec(
            num_scalar_prefetch=0,
            grid=(num_p, tiles_per_p),
            in_specs=[
                pl.BlockSpec((tile_r, LANES), in_map),
                pl.BlockSpec((tile_r, LANES), in_map),
            ],
            out_specs=pl.BlockSpec((1, SUBLANES, LANES), lambda p, k: (p, 0, 0)),
        ),
        compiler_params=pltpu.CompilerParams(
            dimension_semantics=("parallel", "arbitrary")),
        cost_estimate=cost,
    )(pred2d, gold2d)

    return (jnp.sum(partials, dtype=jnp.float32) + tail_sum) / jnp.float32(n)


if __name__ == "__main__":
    key = jax.random.PRNGKey(0)
    k1, k2, k3, k4, k5, k6 = jax.random.split(key, 6)

    # 1) tiny KDD day-seq shape (batch, turbines, horizon) -> plain-JAX fast path
    p0 = jax.random.normal(k1, (2, 8, 48), dtype=jnp.float32) * 10.0
    g0 = jax.random.normal(k2, (2, 8, 48), dtype=jnp.float32) * 10.0

    # 2) 1024-aligned element count -> Pallas path, zero-copy reshape,
    #    two tiles with a masked partial last block
    p1 = jax.random.normal(k3, (2, 319, 512), dtype=jnp.float32) * 10.0
    g1 = jax.random.normal(k4, (2, 319, 512), dtype=jnp.float32) * 10.0

    # 3) ragged element count, bf16 inputs -> Pallas path + pure-JAX tail
    p2 = (jax.random.normal(k5, (3, 107, 97), dtype=jnp.float32) * 10.0).astype(jnp.bfloat16)
    g2 = (jax.random.normal(k6, (3, 107, 97), dtype=jnp.float32) * 10.0).astype(jnp.bfloat16)

    cases = ((p0, g0, 1e-5), (p1, g1, 1e-5), (p2, g2, 1e-4))
    for pred, gold, tol in cases:
        out = jax.block_until_ready(huber_loss(pred, gold, None, None, delta=5.0))
        ref = jax.block_until_ready(_huber_loss_ref(pred, gold, delta=5.0))
        assert jnp.allclose(out, ref, rtol=tol, atol=tol), (pred.shape, out, ref)

    print("KERNEL_OK")
</pallas_src>

<mosaic_0001>
module attributes {stable_mosaic.version = 11 : i64} {
  func.func @_huber_sum_kernel(%arg0: i32, %arg1: i32, %arg2: memref<2048x128xf32, #tpu.memory_space<vmem>>, %arg3: memref<2048x128xf32, #tpu.memory_space<vmem>>, %arg4: memref<1x8x128xf32, #tpu.memory_space<vmem>>) attributes {dimension_semantics = [#tpu.dimension_semantics<parallel>, #tpu.dimension_semantics<arbitrary>], iteration_bounds = array<i64: 1, 2>, scalar_prefetch = 0 : i64, scratch_operands = 0 : i64, tpu.core_type = #tpu.core_type<tc>, window_params = [{transform_indices = @transform_0, window_bounds = array<i64: 2048, 128>}, {transform_indices = @transform_1, window_bounds = array<i64: 2048, 128>}, {transform_indices = @transform_2, window_bounds = array<i64: 1, 8, 128>}]} {
    %c0_i32 = arith.constant 0 : i32
    %0 = arith.cmpi eq, %arg1, %c0_i32 : i32
    %1 = arith.extui %0 : i1 to i32
    %c0_i32_0 = arith.constant 0 : i32
    %2 = arith.cmpi ne, %1, %c0_i32_0 : i32
    scf.if %2 {
      %cst_8 = arith.constant 0.000000e+00 : f32
      %23 = vector.broadcast %cst_8 : f32 to vector<1x8x128xf32>
      %c0_9 = arith.constant 0 : index
      %c0_10 = arith.constant 0 : index
      %c0_11 = arith.constant 0 : index
      %24 = vector.load %arg4[%c0_9, %c0_10, %c0_11] : memref<1x8x128xf32, #tpu.memory_space<vmem>>, vector<1x8x128xf32>
      tpu.vector_store %arg4[%c0_9, %c0_10, %c0_11], %23 {strides = array<i32>} : memref<1x8x128xf32, #tpu.memory_space<vmem>>, vector<1x8x128xf32>,
    } else {
    }
    %c0 = arith.constant 0 : index
    %c0_1 = arith.constant 0 : index
    %3 = vector.load %arg2[%c0, %c0_1] : memref<2048x128xf32, #tpu.memory_space<vmem>>, vector<2048x128xf32>
    %c0_2 = arith.constant 0 : index
    %c0_3 = arith.constant 0 : index
    %4 = vector.load %arg3[%c0_2, %c0_3] : memref<2048x128xf32, #tpu.memory_space<vmem>>, vector<2048x128xf32>
    %5 = arith.subf %3, %4 : vector<2048x128xf32>
    %6 = math.absf %5 : vector<2048x128xf32>
    %cst = arith.constant 5.000000e+00 : f32
    %7 = vector.broadcast %cst : f32 to vector<2048x128xf32>
    %8 = arith.minimumf %6, %7 : vector<2048x128xf32>
    %cst_4 = arith.constant 5.000000e-01 : f32
    %9 = vector.broadcast %cst_4 : f32 to vector<2048x128xf32>
    %10 = arith.mulf %9, %8 : vector<2048x128xf32>
    %11 = arith.subf %6, %10 : vector<2048x128xf32>
    %12 = arith.mulf %8, %11 : vector<2048x128xf32>
    %cst_5 = arith.constant 2.000000e-01 : f32
    %13 = vector.broadcast %cst_5 : f32 to vector<2048x128xf32>
    %14 = arith.mulf %12, %13 : vector<2048x128xf32>
    %c2_i32 = arith.constant 2 : i32
    %15 = arith.muli %arg0, %c2_i32 : i32
    %16 = arith.addi %15, %arg1 : i32
    %c1_i32 = arith.constant 1 : i32
    %17 = arith.cmpi sge, %16, %c1_i32 : i32
    %true = arith.constant true
    %18 = arith.xori %17, %true : i1
    %19 = arith.extui %18 : i1 to i32
    %c0_i32_6 = arith.constant 0 : i32
    %20 = arith.cmpi ne, %19, %c0_i32_6 : i32
    scf.if %20 {
      %c0_8 = arith.constant 0 : index
      %c0_9 = arith.constant 0 : index
      %c0_10 = arith.constant 0 : index
      %23 = vector.load %arg4[%c0_8, %c0_9, %c0_10] : memref<1x8x128xf32, #tpu.memory_space<vmem>>, vector<1x8x128xf32>
      %24 = vector.shape_cast %14 : vector<2048x128xf32> to vector<256x8x128xf32>
      %cst_11 = arith.constant dense<0.000000e+00> : vector<8x128xf32>
      %25 = vector.multi_reduction <add>, %24, %cst_11 [0] : vector<256x8x128xf32> to vector<8x128xf32>
      %26 = vector.shape_cast %25 : vector<8x128xf32> to vector<1x8x128xf32>
      %27 = arith.addf %23, %26 : vector<1x8x128xf32>
      %c0_12 = arith.constant 0 : index
      %c0_13 = arith.constant 0 : index
      %c0_14 = arith.constant 0 : index
      %28 = vector.load %arg4[%c0_12, %c0_13, %c0_14] : memref<1x8x128xf32, #tpu.memory_space<vmem>>, vector<1x8x128xf32>
      tpu.vector_store %arg4[%c0_12, %c0_13, %c0_14], %27 {strides = array<i32>} : memref<1x8x128xf32, #tpu.memory_space<vmem>>, vector<1x8x128xf32>,
    } else {
    }
    %21 = arith.extui %17 : i1 to i32
    %c0_i32_7 = arith.constant 0 : i32
    %22 = arith.cmpi ne, %21, %c0_i32_7 : i32
    scf.if %22 {
      %c2048_i32 = arith.constant 2048 : i32
      %23 = arith.muli %16, %c2048_i32 : i32
      %24 = tpu.iota {dimensions = array<i32: 0>} : vector<2048x128xi32>
      %25 = vector.broadcast %23 : i32 to vector<2048x128xi32>
      %26 = arith.addi %25, %24 : vector<2048x128xi32>
      %c2552_i32 = arith.constant 2552 : i32
      %27 = vector.broadcast %c2552_i32 : i32 to vector<2048x128xi32>
      %28 = arith.cmpi slt, %26, %27 : vector<2048x128xi32>
      %cst_8 = arith.constant 0.000000e+00 : f32
      %29 = vector.broadcast %cst_8 : f32 to vector<2048x128xf32>
      %30 = arith.select %28, %14, %29 : vector<2048x128xi1>, vector<2048x128xf32>
      %c0_9 = arith.constant 0 : index
      %c0_10 = arith.constant 0 : index
      %c0_11 = arith.constant 0 : index
      %31 = vector.load %arg4[%c0_9, %c0_10, %c0_11] : memref<1x8x128xf32, #tpu.memory_space<vmem>>, vector<1x8x128xf32>
      %32 = vector.shape_cast %30 : vector<2048x128xf32> to vector<256x8x128xf32>
      %cst_12 = arith.constant dense<0.000000e+00> : vector<8x128xf32>
      %33 = vector.multi_reduction <add>, %32, %cst_12 [0] : vector<256x8x128xf32> to vector<8x128xf32>
      %34 = vector.shape_cast %33 : vector<8x128xf32> to vector<1x8x128xf32>
      %35 = arith.addf %31, %34 : vector<1x8x128xf32>
      %c0_13 = arith.constant 0 : index
      %c0_14 = arith.constant 0 : index
      %c0_15 = arith.constant 0 : index
      %36 = vector.load %arg4[%c0_13, %c0_14, %c0_15] : memref<1x8x128xf32, #tpu.memory_space<vmem>>, vector<1x8x128xf32>
      tpu.vector_store %arg4[%c0_13, %c0_14, %c0_15], %35 {strides = array<i32>} : memref<1x8x128xf32, #tpu.memory_space<vmem>>, vector<1x8x128xf32>,
    } else {
    }
    return
  }
  func.func @transform_0(%arg0: i32, %arg1: i32) -> (i32, i32) {
    %c2_i32 = arith.constant 2 : i32
    %0 = arith.muli %arg0, %c2_i32 : i32
    %1 = arith.addi %0, %arg1 : i32
    %c0_i32 = arith.constant 0 : i32
    %c0_i32_0 = arith.constant 0 : i32
    return %1, %c0_i32 : i32, i32
  }
  func.func @transform_1(%arg0: i32, %arg1: i32) -> (i32, i32) {
    %c2_i32 = arith.constant 2 : i32
    %0 = arith.muli %arg0, %c2_i32 : i32
    %1 = arith.addi %0, %arg1 : i32
    %c0_i32 = arith.constant 0 : i32
    %c0_i32_0 = arith.constant 0 : i32
    return %1, %c0_i32 : i32, i32
  }
  func.func @transform_2(%arg0: i32, %arg1: i32) -> (i32, i32, i32) {
    %c0_i32 = arith.constant 0 : i32
    %c0_i32_0 = arith.constant 0 : i32
    %c0_i32_1 = arith.constant 0 : i32
    return %arg0, %c0_i32, %c0_i32_0 : i32, i32, i32
  }
}

</mosaic_0001>

<llo_original>
// kernel: tpu_custom_call.1
$region0: #{tpu_custom_call.1}
  #allocation0 [shape = 'u32[]', space=smem, size = 0x4, offset = 0x4, fixed_abs, tag = 'smem constant byte address 0x4 - core index']
  #allocation1 [shape = 'u32[144,128]{1,0:T(1,128)}', space=vmem, size = 0x12000, scoped, tag = 'internal scratch']
  %s0 = inlined_call_operand.hbm [shape: f32[2552,128], index: 0, kind: input, shape index: {}]
  %s1 = inlined_call_operand.hbm [shape: f32[2552,128], index: 1, kind: input, shape index: {}]
  %s2 = inlined_call_operand.hbm [shape: f32[1,8,128], index: 2, kind: output, shape index: {}]
  %s3 = sld [smem:[#allocation0]]
  $region61: #{tpu_custom_call.1} parent=0
    _
  %s5 = ssub.s32 1, %s3
  %s6 = scalar_select 0, %s5, %s3
  $region1: #{tpu_custom_call.1} parent=0
    #allocation2 [shape = 'u8[2097152]{0}', space=vmem, size = 0x200000, scoped, tag = 'input window, operand 0']
    #allocation3 [shape = 's32[2]{0}', space=sflag, size = 0x8, scoped, tag = 'scoped memory for tpu_custom_call.1']
    #allocation4 [shape = 's32[2]{0}', space=sflag, size = 0x8, scoped, tag = 'scoped memory for tpu_custom_call.1']
    #allocation5 [shape = 'u8[2097152]{0}', space=vmem, size = 0x200000, scoped, tag = 'input window, operand 1']
    #allocation6 [shape = 's32[2]{0}', space=sflag, size = 0x8, scoped, tag = 'scoped memory for tpu_custom_call.1']
    #allocation7 [shape = 'u8[4096]{0}', space=vmem, size = 0x1000, scoped, tag = 'output window, operand 0, single buffered']
    %7 = vsyncpa [#allocation3], 0
    %s8 = scalar_lea.sflag [#allocation3], 1
    %9 = vsyncpa %s8, 0
    %10 = vsyncpa [#allocation6], 0
    %s11 = scalar_lea.sflag [#allocation6], 1
    %12 = vsyncpa %s11, 0
    %13 = vsyncpa [#allocation4], 0
    loop: start=0, step=1, limit=4
    $region2: #{tpu_custom_call.1} parent=1 // loop_pre_header
      _
    $region3: #{tpu_custom_call.1} parent=1 // loop_header
      %s15 = sphi 0, %s19
      %p16 = scmp.ge.s32.totalorder %s15, 4
      %s22 = sphi 0, %s34
      %s23 = sphi 0, %s30
      %s24 = sphi 0, %s22
      %s25 = sphi 0, %s23
      %s26 = sphi 0, %s24
      %s27 = sphi 0, %s25
      %s41 = sphi 0, %s43
      %s44 = sphi 0, %s41
      %s45 = sphi 0, %s44
      %s61 = sphi 0, %s45
      %s71 = sphi 0, %s73
      %s74 = sphi 0, %s71
      %s75 = sphi 0, %s74
      %s91 = sphi 0, %s75
      %s97 = sphi 0, %s99
      %s100 = sphi 0, %s97
      %s101 = sphi 0, %s100
      %s117 = sphi 0, %s101
    $region4: #{tpu_custom_call.1} parent=1 // loop_header_branch
      %18 = sbr.rel (%p16) target = $region8
    $region5: #{tpu_custom_call.1} parent=1 // loop_body
      %s20 = ssub.s32 %s15, 1
      %s21 = ssub.s32 %s15, 2
      %s28 = sadd.s32 1, %s23
      %p29 = scmp.ge.s32.totalorder %s28, 2
      %s30 = scalar_select %p29, 0, %s28
      %s31 = sadd.s32 1, %s22
      %s32 = scalar_select %p29, %s31, %s22
      %p33 = scmp.ge.s32.totalorder %s32, 1
      %s34 = scalar_select %p33, 0, %s32
      %s35 = smul.u32 %s22, 2
      %s36 = sadd.s32 %s35, %s23
      %s37 = smul.u32 %s34, 2
      %s38 = sadd.s32 %s37, %s30
      %s39 = ssub.s32 %s36, %s38
      %p40 = scmp.eq.s32.totalorder %s39, 0
      %s42 = sadd.s32 %s41, 1
      %s43 = scalar_select %p40, %s41, %s42
      %p46 = pneg %p40
      %p47 = scmp.eq.s32.totalorder %s15, 1
      %p48 = por %p46, %p47
      %p49 = scmp.ne.s32.totalorder %s41, %s44
      %p50 = scmp.eq.s32.totalorder %s15, 0
      %p51 = por %p49, %p50
      %p52 = scmp.ne.s32.totalorder %s41, %s44
      %p53 = scmp.eq.s32.totalorder %s20, 1
      %p54 = por %p52, %p53
      %p55 = scmp.ne.s32.totalorder %s44, %s45
      %p56 = scmp.eq.s32.totalorder %s20, 0
      %p57 = por %p55, %p56
      %p58 = scmp.ne.s32.totalorder %s44, %s45
      %p59 = scmp.eq.s32.totalorder %s21, 1
      %p60 = por %p58, %p59
      %p62 = scmp.ne.s32.totalorder %s45, %s61
      %p63 = scmp.eq.s32.totalorder %s21, 0
      %p64 = por %p62, %p63
      %s65 = smul.u32 %s22, 2
      %s66 = sadd.s32 %s65, %s23
      %s67 = smul.u32 %s34, 2
      %s68 = sadd.s32 %s67, %s30
      %s69 = ssub.s32 %s66, %s68
      %p70 = scmp.eq.s32.totalorder %s69, 0
      %s72 = sadd.s32 %s71, 1
      %s73 = scalar_select %p70, %s71, %s72
      %p76 = pneg %p70
      %p77 = scmp.eq.s32.totalorder %s15, 1
      %p78 = por %p76, %p77
      %p79 = scmp.ne.s32.totalorder %s71, %s74
      %p80 = scmp.eq.s32.totalorder %s15, 0
      %p81 = por %p79, %p80
      %p82 = scmp.ne.s32.totalorder %s71, %s74
      %p83 = scmp.eq.s32.totalorder %s20, 1
      %p84 = por %p82, %p83
      %p85 = scmp.ne.s32.totalorder %s74, %s75
      %p86 = scmp.eq.s32.totalorder %s20, 0
      %p87 = por %p85, %p86
      %p88 = scmp.ne.s32.totalorder %s74, %s75
      %p89 = scmp.eq.s32.totalorder %s21, 1
      %p90 = por %p88, %p89
      %p92 = scmp.ne.s32.totalorder %s75, %s91
      %p93 = scmp.eq.s32.totalorder %s21, 0
      %p94 = por %p92, %p93
      %s95 = ssub.s32 %s22, %s34
      %p96 = scmp.eq.s32.totalorder %s95, 0
      %s98 = sadd.s32 %s97, 1
      %s99 = scalar_select %p96, %s97, %s98
      %p102 = pneg %p96
      %p103 = scmp.eq.s32.totalorder %s15, 1
      %p104 = por %p102, %p103
      %p105 = scmp.ne.s32.totalorder %s97, %s100
      %p106 = scmp.eq.s32.totalorder %s15, 0
      %p107 = por %p105, %p106
      %p108 = scmp.ne.s32.totalorder %s97, %s100
      %p109 = scmp.eq.s32.totalorder %s20, 1
      %p110 = por %p108, %p109
      %p111 = scmp.ne.s32.totalorder %s100, %s101
      %p112 = scmp.eq.s32.totalorder %s20, 0
      %p113 = por %p111, %p112
      %p114 = scmp.ne.s32.totalorder %s100, %s101
      %p115 = scmp.eq.s32.totalorder %s21, 1
      %p116 = por %p114, %p115
      %p118 = scmp.ne.s32.totalorder %s101, %s117
      %p119 = scmp.eq.s32.totalorder %s21, 0
      %p120 = por %p118, %p119
      %p121 = scmp.le.s32.totalorder 1, %s15
      %p122 = scmp.lt.s32.totalorder %s15, 3
      %p123 = pnand %p121, %p122
      %p124 = pneg %p123
      // Predicated region
      $region9: #{tpu_custom_call.1} parent=5 // pred_check
        _
      $region10: #{tpu_custom_call.1} parent=5 // pred_check_branch
        %126 = sbr.rel (%p123) target = $region12
      $region11: #{tpu_custom_call.1} parent=5 // pred_region
        %s127 = ssub.s32 %s15, 1
      $region12: #{tpu_custom_call.1} parent=5 // pred_fallthru
        _
      %p128 = scmp.lt.s32.totalorder %s15, 2
      // Predicated region
      $region13: #{tpu_custom_call.1} parent=5 // pred_check
        %p129 = pneg %p128
      $region14: #{tpu_custom_call.1} parent=5 // pred_check_branch
        %131 = sbr.rel (%p129) target = $region16
      $region15: #{tpu_custom_call.1} parent=5 // pred_region
        // Predicated region
        $region17: #{tpu_custom_call.1} parent=15 // pred_check
          %p132 = pneg %p51
        $region18: #{tpu_custom_call.1} parent=15 // pred_check_branch
          %134 = sbr.rel (%p132) target = $region20
        $region19: #{tpu_custom_call.1} parent=15 // pred_region
          %s135 = sand.u32 %s41, 1
          %s136 = scalar_lea.sflag [#allocation3], %s135
          %s137 = sand.u32 %s41, 1
          %s138 = smul.addr %s137, 2048
          %s139 = scalar_lea.vmem [#allocation2], %s138
          %s140 = smul.u32 %s22, 2
          %s141 = sadd.s32 %s140, %s23
          %s142 = smul.u32 256, %s141
          %s143 = ssub.s32 319, %s142
          %p144 = scmp.lt.s32.totalorder %s143, 256
          %s145 = scalar_select %p144, %s143, 256
          %s146 = smul.u32 128, %s145
          %s148 = ssub.s32 32768, %s146
          %149 = vsyncadd %s136, %s148
          %p150 = scmp.ne.s32.totalorder 0, %s146
          %s151 = smul.addr %s142, 128
          %s152 = scalar_lea.hbm %s0, %s151
          %s153 = smul.u32 8, %s145
          %s154 = sshll.u32 %s139, 4
          %s155 = int_to_ptr.vmem [resolvable:$true] %s154
          %s156 = sshll.u32 %s153, 4
          %160 = dma.hbm_to_vmem [thread:$0]  (%p150), %s152, %s156, %s155, %s136, 128, 128, 8
        $region20: #{tpu_custom_call.1} parent=15 // pred_fallthru
          _
        // Predicated region
        $region21: #{tpu_custom_call.1} parent=15 // pred_check
          %p161 = pneg %p81
        $region22: #{tpu_custom_call.1} parent=15 // pred_check_branch
          %163 = sbr.rel (%p161) target = $region24
        $region23: #{tpu_custom_call.1} parent=15 // pred_region
          %s164 = sand.u32 %s71, 1
          %s165 = scalar_lea.sflag [#allocation6], %s164
          %s166 = sand.u32 %s71, 1
          %s167 = smul.addr %s166, 2048
          %s168 = scalar_lea.vmem [#allocation5], %s167
          %s169 = smul.u32 %s22, 2
          %s170 = sadd.s32 %s169, %s23
          %s171 = smul.u32 256, %s170
          %s172 = ssub.s32 319, %s171
          %p173 = scmp.lt.s32.totalorder %s172, 256
          %s174 = scalar_select %p173, %s172, 256
          %s175 = smul.u32 128, %s174
          %s177 = ssub.s32 32768, %s175
          %178 = vsyncadd %s165, %s177
          %p179 = scmp.ne.s32.totalorder 0, %s175
          %s180 = smul.addr %s171, 128
          %s181 = scalar_lea.hbm %s1, %s180
          %s182 = smul.u32 8, %s174
          %s183 = sshll.u32 %s168, 4
          %s184 = int_to_ptr.vmem [resolvable:$true] %s183
          %s185 = sshll.u32 %s182, 4
          %189 = dma.hbm_to_vmem [thread:$0]  (%p179), %s181, %s185, %s184, %s165, 128, 128, 8
        $region24: #{tpu_custom_call.1} parent=15 // pred_fallthru
          _
      $region16: #{tpu_custom_call.1} parent=5 // pred_fallthru
        _
      %p190 = scmp.le.s32.totalorder 1, %s15
      %p191 = scmp.lt.s32.totalorder %s15, 3
      %p192 = pnand %p190, %p191
      %p193 = pneg %p192
      // Predicated region
      $region25: #{tpu_custom_call.1} parent=5 // pred_check
        _
      $region26: #{tpu_custom_call.1} parent=5 // pred_check_branch
        %195 = sbr.rel (%p192) target = $region28
      $region27: #{tpu_custom_call.1} parent=5 // pred_region
        %s196 = ssub.s32 %s15, 1
        %s197 = sand.u32 %s44, 1
        %s198 = scalar_lea.sflag [#allocation3], %s197
        %s199 = sand.u32 %s44, 1
        %s200 = smul.addr %s199, 2048
        %s201 = scalar_lea.vmem [#allocation2], %s200
        // Predicated region
        $region29: #{tpu_custom_call.1} parent=27 // pred_check
          %p202 = pneg %p57
        $region30: #{tpu_custom_call.1} parent=27 // pred_check_branch
          %204 = sbr.rel (%p202) target = $region32
        $region31: #{tpu_custom_call.1} parent=27 // pred_region
          %205 = dma.done %s198, 32768
        $region32: #{tpu_custom_call.1} parent=27 // pred_fallthru
          _
        %s206 = sand.u32 %s74, 1
        %s207 = scalar_lea.sflag [#allocation6], %s206
        %s208 = sand.u32 %s74, 1
        %s209 = smul.addr %s208, 2048
        %s210 = scalar_lea.vmem [#allocation5], %s209
        // Predicated region
        $region33: #{tpu_custom_call.1} parent=27 // pred_check
          %p211 = pneg %p87
        $region34: #{tpu_custom_call.1} parent=27 // pred_check_branch
          %213 = sbr.rel (%p211) target = $region36
        $region35: #{tpu_custom_call.1} parent=27 // pred_region
          %214 = dma.done %s207, 32768
        $region36: #{tpu_custom_call.1} parent=27 // pred_fallthru
          _
        %s215 = sand.u32 %s44, 1
        %s216 = scalar_lea.sflag [#allocation3], %s215
        %s217 = sand.u32 %s44, 1
        %s218 = smul.addr %s217, 2048
        %s219 = scalar_lea.vmem [#allocation2], %s218
        %p220 = pneg %p57
        %p221 = pneg %p54
        %s222 = sand.u32 %s74, 1
        %s223 = scalar_lea.sflag [#allocation6], %s222
        %s224 = sand.u32 %s74, 1
        %s225 = smul.addr %s224, 2048
        %s226 = scalar_lea.vmem [#allocation5], %s225
        %p227 = pneg %p87
        %p228 = pneg %p84
        %p229 = pneg %p113
        %p230 = pneg %p110
        %s231 = smul.u32 %s24, 2
        %s232 = sadd.s32 %s231, %s25
        %s233 = smul.u32 256, %s232
        %s234 = ssub.s32 319, %s233
        %p235 = scmp.lt.s32.totalorder %s234, 256
        %s236 = scalar_select %p235, %s234, 256
        %s237 = smul.u32 128, %s236
        %s238 = smul.u32 %s24, 2
        %s239 = sadd.s32 %s238, %s25
        %s240 = smul.u32 256, %s239
        %s241 = ssub.s32 319, %s240
        %p242 = scmp.lt.s32.totalorder %s241, 256
        %s243 = scalar_select %p242, %s241, 256
        %s244 = smul.u32 128, %s243
        %p245 = scmp.eq.s32.totalorder %s25, 0
        // Predicated region
        $region37: #{tpu_custom_call.1} parent=27 // pred_check
          %p246 = pneg %p245
        $region38: #{tpu_custom_call.1} parent=27 // pred_check_branch
          %248 = sbr.rel (%p246) target = $region40
        $region39: #{tpu_custom_call.1} parent=27 // pred_region
          %249 = vst [vmem:[#allocation7] sm:$0xff] 0.0
        $region40: #{tpu_custom_call.1} parent=27 // pred_fallthru
          _
        %v250 = vld [vmem:[%s201] sm:$0xff]
        %v251 = vld [vmem:[%s201 + $0x8] sm:$0xff]
        %v252 = vld [vmem:[%s201 + $0x10] sm:$0xff]
        %v253 = vld [vmem:[%s201 + $0x18] sm:$0xff]
        %v254 = vld [vmem:[%s201 + $0x20] sm:$0xff]
        %v255 = vld [vmem:[%s201 + $0x28] sm:$0xff]
        %v256 = vld [vmem:[%s201 + $0x30] sm:$0xff]
        %v257 = vld [vmem:[%s201 + $0x38] sm:$0xff]
        %v258 = vld [vmem:[%s201 + $0x40] sm:$0xff]
        %v259 = vld [vmem:[%s201 + $0x48] sm:$0xff]
        %v260 = vld [vmem:[%s201 + $0x50] sm:$0xff]
        %v261 = vld [vmem:[%s201 + $0x58] sm:$0xff]
        %v262 = vld [vmem:[%s201 + $0x60] sm:$0xff]
        %v263 = vld [vmem:[%s201 + $0x68] sm:$0xff]
        %v264 = vld [vmem:[%s201 + $0x70] sm:$0xff]
        %v265 = vld [vmem:[%s201 + $0x78] sm:$0xff]
        %v266 = vld [vmem:[%s201 + $0x80] sm:$0xff]
        %v267 = vld [vmem:[%s201 + $0x88] sm:$0xff]
        %v268 = vld [vmem:[%s201 + $0x90] sm:$0xff]
        %v269 = vld [vmem:[%s201 + $0x98] sm:$0xff]
        %v270 = vld [vmem:[%s201 + $0xa0] sm:$0xff]
        %v271 = vld [vmem:[%s201 + $0xa8] sm:$0xff]
        %v272 = vld [vmem:[%s201 + $0xb0] sm:$0xff]
        %v273 = vld [vmem:[%s201 + $0xb8] sm:$0xff]
        %v274 = vld [vmem:[%s201 + $0xc0] sm:$0xff]
        %v275 = vld [vmem:[%s201 + $0xc8] sm:$0xff]
        %v276 = vld [vmem:[%s201 + $0xd0] sm:$0xff]
        %v277 = vld [vmem:[%s201 + $0xd8] sm:$0xff]
        %v278 = vld [vmem:[%s201 + $0xe0] sm:$0xff]
        %v279 = vld [vmem:[%s201 + $0xe8] sm:$0xff]
        %v280 = vld [vmem:[%s201 + $0xf0] sm:$0xff]
        %v281 = vld [vmem:[%s201 + $0xf8] sm:$0xff]
        %v282 = vld [vmem:[%s201 + $0x100] sm:$0xff]
        %v283 = vld [vmem:[%s201 + $0x108] sm:$0xff]
        %v284 = vld [vmem:[%s201 + $0x110] sm:$0xff]
        %v285 = vld [vmem:[%s201 + $0x118] sm:$0xff]
        %v286 = vld [vmem:[%s201 + $0x120] sm:$0xff]
        %v287 = vld [vmem:[%s201 + $0x128] sm:$0xff]
        %v288 = vld [vmem:[%s201 + $0x130] sm:$0xff]
        %v289 = vld [vmem:[%s201 + $0x138] sm:$0xff]
        %v290 = vld [vmem:[%s201 + $0x140] sm:$0xff]
        %v291 = vld [vmem:[%s201 + $0x148] sm:$0xff]
        %v292 = vld [vmem:[%s201 + $0x150] sm:$0xff]
        %v293 = vld [vmem:[%s201 + $0x158] sm:$0xff]
        %v294 = vld [vmem:[%s201 + $0x160] sm:$0xff]
        %v295 = vld [vmem:[%s201 + $0x168] sm:$0xff]
        %v296 = vld [vmem:[%s201 + $0x170] sm:$0xff]
        %v297 = vld [vmem:[%s201 + $0x178] sm:$0xff]
        %v298 = vld [vmem:[%s201 + $0x180] sm:$0xff]
        %v299 = vld [vmem:[%s201 + $0x188] sm:$0xff]
        %v300 = vld [vmem:[%s201 + $0x190] sm:$0xff]
        %v301 = vld [vmem:[%s201 + $0x198] sm:$0xff]
        %v302 = vld [vmem:[%s201 + $0x1a0] sm:$0xff]
        %v303 = vld [vmem:[%s201 + $0x1a8] sm:$0xff]
        %v304 = vld [vmem:[%s201 + $0x1b0] sm:$0xff]
        %v305 = vld [vmem:[%s201 + $0x1b8] sm:$0xff]
        %v306 = vld [vmem:[%s201 + $0x1c0] sm:$0xff]
        %v307 = vld [vmem:[%s201 + $0x1c8] sm:$0xff]
        %v308 = vld [vmem:[%s201 + $0x1d0] sm:$0xff]
        %v309 = vld [vmem:[%s201 + $0x1d8] sm:$0xff]
        %v310 = vld [vmem:[%s201 + $0x1e0] sm:$0xff]
        %v311 = vld [vmem:[%s201 + $0x1e8] sm:$0xff]
        %v312 = vld [vmem:[%s201 + $0x1f0] sm:$0xff]
        %v313 = vld [vmem:[%s201 + $0x1f8] sm:$0xff]
        %v314 = vld [vmem:[%s201 + $0x200] sm:$0xff]
        %v315 = vld [vmem:[%s201 + $0x208] sm:$0xff]
        %v316 = vld [vmem:[%s201 + $0x210] sm:$0xff]
        %v317 = vld [vmem:[%s201 + $0x218] sm:$0xff]
        %v318 = vld [vmem:[%s201 + $0x220] sm:$0xff]
        %v319 = vld [vmem:[%s201 + $0x228] sm:$0xff]
        %v320 = vld [vmem:[%s201 + $0x230] sm:$0xff]
        %v321 = vld [vmem:[%s201 + $0x238] sm:$0xff]
        %v322 = vld [vmem:[%s201 + $0x240] sm:$0xff]
        %v323 = vld [vmem:[%s201 + $0x248] sm:$0xff]
        %v324 = vld [vmem:[%s201 + $0x250] sm:$0xff]
        %v325 = vld [vmem:[%s201 + $0x258] sm:$0xff]
        %v326 = vld [vmem:[%s201 + $0x260] sm:$0xff]
        %v327 = vld [vmem:[%s201 + $0x268] sm:$0xff]
        %v328 = vld [vmem:[%s201 + $0x270] sm:$0xff]
        %v329 = vld [vmem:[%s201 + $0x278] sm:$0xff]
        %v330 = vld [vmem:[%s201 + $0x280] sm:$0xff]
        %v331 = vld [vmem:[%s201 + $0x288] sm:$0xff]
        %v332 = vld [vmem:[%s201 + $0x290] sm:$0xff]
        %v333 = vld [vmem:[%s201 + $0x298] sm:$0xff]
        %v334 = vld [vmem:[%s201 + $0x2a0] sm:$0xff]
        %v335 = vld [vmem:[%s201 + $0x2a8] sm:$0xff]
        %v336 = vld [vmem:[%s201 + $0x2b0] sm:$0xff]
        %v337 = vld [vmem:[%s201 + $0x2b8] sm:$0xff]
        %v338 = vld [vmem:[%s201 + $0x2c0] sm:$0xff]
        %v339 = vld [vmem:[%s201 + $0x2c8] sm:$0xff]
        %v340 = vld [vmem:[%s201 + $0x2d0] sm:$0xff]
        %v341 = vld [vmem:[%s201 + $0x2d8] sm:$0xff]
        %v342 = vld [vmem:[%s201 + $0x2e0] sm:$0xff]
        %v343 = vld [vmem:[%s201 + $0x2e8] sm:$0xff]
        %v344 = vld [vmem:[%s201 + $0x2f0] sm:$0xff]
        %v345 = vld [vmem:[%s201 + $0x2f8] sm:$0xff]
        %v346 = vld [vmem:[%s201 + $0x300] sm:$0xff]
        %v347 = vld [vmem:[%s201 + $0x308] sm:$0xff]
        %v348 = vld [vmem:[%s201 + $0x310] sm:$0xff]
        %v349 = vld [vmem:[%s201 + $0x318] sm:$0xff]
        %v350 = vld [vmem:[%s201 + $0x320] sm:$0xff]
        %v351 = vld [vmem:[%s201 + $0x328] sm:$0xff]
        %v352 = vld [vmem:[%s201 + $0x330] sm:$0xff]
        %v353 = vld [vmem:[%s201 + $0x338] sm:$0xff]
        %v354 = vld [vmem:[%s201 + $0x340] sm:$0xff]
        %v355 = vld [vmem:[%s201 + $0x348] sm:$0xff]
        %v356 = vld [vmem:[%s201 + $0x350] sm:$0xff]
        %v357 = vld [vmem:[%s201 + $0x358] sm:$0xff]
        %v358 = vld [vmem:[%s201 + $0x360] sm:$0xff]
        %v359 = vld [vmem:[%s201 + $0x368] sm:$0xff]
        %v360 = vld [vmem:[%s201 + $0x370] sm:$0xff]
        %v361 = vld [vmem:[%s201 + $0x378] sm:$0xff]
        %v362 = vld [vmem:[%s201 + $0x380] sm:$0xff]
        %v363 = vld [vmem:[%s201 + $0x388] sm:$0xff]
        %v364 = vld [vmem:[%s201 + $0x390] sm:$0xff]
        %v365 = vld [vmem:[%s201 + $0x398] sm:$0xff]
        %v366 = vld [vmem:[%s201 + $0x3a0] sm:$0xff]
        %v367 = vld [vmem:[%s201 + $0x3a8] sm:$0xff]
        %v368 = vld [vmem:[%s201 + $0x3b0] sm:$0xff]
        %v369 = vld [vmem:[%s201 + $0x3b8] sm:$0xff]
        %v370 = vld [vmem:[%s201 + $0x3c0] sm:$0xff]
        %v371 = vld [vmem:[%s201 + $0x3c8] sm:$0xff]
        %v372 = vld [vmem:[%s201 + $0x3d0] sm:$0xff]
        %v373 = vld [vmem:[%s201 + $0x3d8] sm:$0xff]
        %v374 = vld [vmem:[%s201 + $0x3e0] sm:$0xff]
        %v375 = vld [vmem:[%s201 + $0x3e8] sm:$0xff]
        %v376 = vld [vmem:[%s201 + $0x3f0] sm:$0xff]
        %v377 = vld [vmem:[%s201 + $0x3f8] sm:$0xff]
        %v378 = vld [vmem:[%s201 + $0x400] sm:$0xff]
        %v379 = vld [vmem:[%s201 + $0x408] sm:$0xff]
        %v380 = vld [vmem:[%s201 + $0x410] sm:$0xff]
        %v381 = vld [vmem:[%s201 + $0x418] sm:$0xff]
        %v382 = vld [vmem:[%s201 + $0x420] sm:$0xff]
        %v383 = vld [vmem:[%s201 + $0x428] sm:$0xff]
        %v384 = vld [vmem:[%s201 + $0x430] sm:$0xff]
        %v385 = vld [vmem:[%s201 + $0x438] sm:$0xff]
        %v386 = vld [vmem:[%s201 + $0x440] sm:$0xff]
        %v387 = vld [vmem:[%s201 + $0x448] sm:$0xff]
        %v388 = vld [vmem:[%s201 + $0x450] sm:$0xff]
        %v389 = vld [vmem:[%s201 + $0x458] sm:$0xff]
        %v390 = vld [vmem:[%s201 + $0x460] sm:$0xff]
        %v391 = vld [vmem:[%s201 + $0x468] sm:$0xff]
        %v392 = vld [vmem:[%s201 + $0x470] sm:$0xff]
        %v393 = vld [vmem:[%s201 + $0x478] sm:$0xff]
        %v394 = vld [vmem:[%s201 + $0x480] sm:$0xff]
        %v395 = vld [vmem:[%s201 + $0x488] sm:$0xff]
        %v396 = vld [vmem:[%s201 + $0x490] sm:$0xff]
        %v397 = vld [vmem:[%s201 + $0x498] sm:$0xff]
        %v398 = vld [vmem:[%s201 + $0x4a0] sm:$0xff]
        %v399 = vld [vmem:[%s201 + $0x4a8] sm:$0xff]
        %v400 = vld [vmem:[%s201 + $0x4b0] sm:$0xff]
        %v401 = vld [vmem:[%s201 + $0x4b8] sm:$0xff]
        %v402 = vld [vmem:[%s201 + $0x4c0] sm:$0xff]
        %v403 = vld [vmem:[%s201 + $0x4c8] sm:$0xff]
        %v404 = vld [vmem:[%s201 + $0x4d0] sm:$0xff]
        %v405 = vld [vmem:[%s201 + $0x4d8] sm:$0xff]
        %v406 = vld [vmem:[%s201 + $0x4e0] sm:$0xff]
        %v407 = vld [vmem:[%s201 + $0x4e8] sm:$0xff]
        %v408 = vld [vmem:[%s201 + $0x4f0] sm:$0xff]
        %v409 = vld [vmem:[%s201 + $0x4f8] sm:$0xff]
        %v410 = vld [vmem:[%s201 + $0x500] sm:$0xff]
        %v411 = vld [vmem:[%s201 + $0x508] sm:$0xff]
        %v412 = vld [vmem:[%s201 + $0x510] sm:$0xff]
        %v413 = vld [vmem:[%s201 + $0x518] sm:$0xff]
        %v414 = vld [vmem:[%s201 + $0x520] sm:$0xff]
        %v415 = vld [vmem:[%s201 + $0x528] sm:$0xff]
        %v416 = vld [vmem:[%s201 + $0x530] sm:$0xff]
        %v417 = vld [vmem:[%s201 + $0x538] sm:$0xff]
        %v418 = vld [vmem:[%s201 + $0x540] sm:$0xff]
        %v419 = vld [vmem:[%s201 + $0x548] sm:$0xff]
        %v420 = vld [vmem:[%s201 + $0x550] sm:$0xff]
        %v421 = vld [vmem:[%s201 + $0x558] sm:$0xff]
        %v422 = vld [vmem:[%s201 + $0x560] sm:$0xff]
        %v423 = vld [vmem:[%s201 + $0x568] sm:$0xff]
        %v424 = vld [vmem:[%s201 + $0x570] sm:$0xff]
        %v425 = vld [vmem:[%s201 + $0x578] sm:$0xff]
        %v426 = vld [vmem:[%s201 + $0x580] sm:$0xff]
        %v427 = vld [vmem:[%s201 + $0x588] sm:$0xff]
        %v428 = vld [vmem:[%s201 + $0x590] sm:$0xff]
        %v429 = vld [vmem:[%s201 + $0x598] sm:$0xff]
        %v430 = vld [vmem:[%s201 + $0x5a0] sm:$0xff]
        %v431 = vld [vmem:[%s201 + $0x5a8] sm:$0xff]
        %v432 = vld [vmem:[%s201 + $0x5b0] sm:$0xff]
        %v433 = vld [vmem:[%s201 + $0x5b8] sm:$0xff]
        %v434 = vld [vmem:[%s201 + $0x5c0] sm:$0xff]
        %v435 = vld [vmem:[%s201 + $0x5c8] sm:$0xff]
        %v436 = vld [vmem:[%s201 + $0x5d0] sm:$0xff]
        %v437 = vld [vmem:[%s201 + $0x5d8] sm:$0xff]
        %v438 = vld [vmem:[%s201 + $0x5e0] sm:$0xff]
        %v439 = vld [vmem:[%s201 + $0x5e8] sm:$0xff]
        %v440 = vld [vmem:[%s201 + $0x5f0] sm:$0xff]
        %v441 = vld [vmem:[%s201 + $0x5f8] sm:$0xff]
        %v442 = vld [vmem:[%s201 + $0x600] sm:$0xff]
        %v443 = vld [vmem:[%s201 + $0x608] sm:$0xff]
        %v444 = vld [vmem:[%s201 + $0x610] sm:$0xff]
        %v445 = vld [vmem:[%s201 + $0x618] sm:$0xff]
        %v446 = vld [vmem:[%s201 + $0x620] sm:$0xff]
        %v447 = vld [vmem:[%s201 + $0x628] sm:$0xff]
        %v448 = vld [vmem:[%s201 + $0x630] sm:$0xff]
        %v449 = vld [vmem:[%s201 + $0x638] sm:$0xff]
        %v450 = vld [vmem:[%s201 + $0x640] sm:$0xff]
        %v451 = vld [vmem:[%s201 + $0x648] sm:$0xff]
        %v452 = vld [vmem:[%s201 + $0x650] sm:$0xff]
        %v453 = vld [vmem:[%s201 + $0x658] sm:$0xff]
        %v454 = vld [vmem:[%s201 + $0x660] sm:$0xff]
        %v455 = vld [vmem:[%s201 + $0x668] sm:$0xff]
        %v456 = vld [vmem:[%s201 + $0x670] sm:$0xff]
        %v457 = vld [vmem:[%s201 + $0x678] sm:$0xff]
        %v458 = vld [vmem:[%s201 + $0x680] sm:$0xff]
        %v459 = vld [vmem:[%s201 + $0x688] sm:$0xff]
        %v460 = vld [vmem:[%s201 + $0x690] sm:$0xff]
        %v461 = vld [vmem:[%s201 + $0x698] sm:$0xff]
        %v462 = vld [vmem:[%s201 + $0x6a0] sm:$0xff]
        %v463 = vld [vmem:[%s201 + $0x6a8] sm:$0xff]
        %v464 = vld [vmem:[%s201 + $0x6b0] sm:$0xff]
        %v465 = vld [vmem:[%s201 + $0x6b8] sm:$0xff]
        %v466 = vld [vmem:[%s201 + $0x6c0] sm:$0xff]
        %v467 = vld [vmem:[%s201 + $0x6c8] sm:$0xff]
        %v468 = vld [vmem:[%s201 + $0x6d0] sm:$0xff]
        %v469 = vld [vmem:[%s201 + $0x6d8] sm:$0xff]
        %v470 = vld [vmem:[%s201 + $0x6e0] sm:$0xff]
        %v471 = vld [vmem:[%s201 + $0x6e8] sm:$0xff]
        %v472 = vld [vmem:[%s201 + $0x6f0] sm:$0xff]
        %v473 = vld [vmem:[%s201 + $0x6f8] sm:$0xff]
        %v474 = vld [vmem:[%s201 + $0x700] sm:$0xff]
        %v475 = vld [vmem:[%s201 + $0x708] sm:$0xff]
        %v476 = vld [vmem:[%s201 + $0x710] sm:$0xff]
        %v477 = vld [vmem:[%s201 + $0x718] sm:$0xff]
        %v478 = vld [vmem:[%s201 + $0x720] sm:$0xff]
        %v479 = vld [vmem:[%s201 + $0x728] sm:$0xff]
        %v480 = vld [vmem:[%s201 + $0x730] sm:$0xff]
        %v481 = vld [vmem:[%s201 + $0x738] sm:$0xff]
        %v482 = vld [vmem:[%s201 + $0x740] sm:$0xff]
        %v483 = vld [vmem:[%s201 + $0x748] sm:$0xff]
        %v484 = vld [vmem:[%s201 + $0x750] sm:$0xff]
        %v485 = vld [vmem:[%s201 + $0x758] sm:$0xff]
        %v486 = vld [vmem:[%s201 + $0x760] sm:$0xff]
        %v487 = vld [vmem:[%s201 + $0x768] sm:$0xff]
        %v488 = vld [vmem:[%s201 + $0x770] sm:$0xff]
        %v489 = vld [vmem:[%s201 + $0x778] sm:$0xff]
        %v490 = vld [vmem:[%s201 + $0x780] sm:$0xff]
        %v491 = vld [vmem:[%s201 + $0x788] sm:$0xff]
        %v492 = vld [vmem:[%s201 + $0x790] sm:$0xff]
        %v493 = vld [vmem:[%s201 + $0x798] sm:$0xff]
        %v494 = vld [vmem:[%s201 + $0x7a0] sm:$0xff]
        %v495 = vld [vmem:[%s201 + $0x7a8] sm:$0xff]
        %v496 = vld [vmem:[%s201 + $0x7b0] sm:$0xff]
        %v497 = vld [vmem:[%s201 + $0x7b8] sm:$0xff]
        %v498 = vld [vmem:[%s201 + $0x7c0] sm:$0xff]
        %v499 = vld [vmem:[%s201 + $0x7c8] sm:$0xff]
        %v500 = vld [vmem:[%s201 + $0x7d0] sm:$0xff]
        %v501 = vld [vmem:[%s201 + $0x7d8] sm:$0xff]
        %v502 = vld [vmem:[%s201 + $0x7e0] sm:$0xff]
        %v503 = vld [vmem:[%s201 + $0x7e8] sm:$0xff]
        %v504 = vld [vmem:[%s201 + $0x7f0] sm:$0xff]
        %v505 = vld [vmem:[%s201 + $0x7f8] sm:$0xff]
        %v506 = vld [vmem:[%s210] sm:$0xff]
        %v507 = vld [vmem:[%s210 + $0x8] sm:$0xff]
        %v508 = vld [vmem:[%s210 + $0x10] sm:$0xff]
        %v509 = vld [vmem:[%s210 + $0x18] sm:$0xff]
        %v510 = vld [vmem:[%s210 + $0x20] sm:$0xff]
        %v511 = vld [vmem:[%s210 + $0x28] sm:$0xff]
        %v512 = vld [vmem:[%s210 + $0x30] sm:$0xff]
        %v513 = vld [vmem:[%s210 + $0x38] sm:$0xff]
        %v514 = vld [vmem:[%s210 + $0x40] sm:$0xff]
        %v515 = vld [vmem:[%s210 + $0x48] sm:$0xff]
        %v516 = vld [vmem:[%s210 + $0x50] sm:$0xff]
        %v517 = vld [vmem:[%s210 + $0x58] sm:$0xff]
        %v518 = vld [vmem:[%s210 + $0x60] sm:$0xff]
        %v519 = vld [vmem:[%s210 + $0x68] sm:$0xff]
        %v520 = vld [vmem:[%s210 + $0x70] sm:$0xff]
        %v521 = vld [vmem:[%s210 + $0x78] sm:$0xff]
        %v522 = vld [vmem:[%s210 + $0x80] sm:$0xff]
        %v523 = vld [vmem:[%s210 + $0x88] sm:$0xff]
        %v524 = vld [vmem:[%s210 + $0x90] sm:$0xff]
        %v525 = vld [vmem:[%s210 + $0x98] sm:$0xff]
        %v526 = vld [vmem:[%s210 + $0xa0] sm:$0xff]
        %v527 = vld [vmem:[%s210 + $0xa8] sm:$0xff]
        %v528 = vld [vmem:[%s210 + $0xb0] sm:$0xff]
        %v529 = vld [vmem:[%s210 + $0xb8] sm:$0xff]
        %v530 = vld [vmem:[%s210 + $0xc0] sm:$0xff]
        %v531 = vld [vmem:[%s210 + $0xc8] sm:$0xff]
        %v532 = vld [vmem:[%s210 + $0xd0] sm:$0xff]
        %v533 = vld [vmem:[%s210 + $0xd8] sm:$0xff]
        %v534 = vld [vmem:[%s210 + $0xe0] sm:$0xff]
        %v535 = vld [vmem:[%s210 + $0xe8] sm:$0xff]
        %v536 = vld [vmem:[%s210 + $0xf0] sm:$0xff]
        %v537 = vld [vmem:[%s210 + $0xf8] sm:$0xff]
        %v538 = vld [vmem:[%s210 + $0x100] sm:$0xff]
        %v539 = vld [vmem:[%s210 + $0x108] sm:$0xff]
        %v540 = vld [vmem:[%s210 + $0x110] sm:$0xff]
        %v541 = vld [vmem:[%s210 + $0x118] sm:$0xff]
        %v542 = vld [vmem:[%s210 + $0x120] sm:$0xff]
        %v543 = vld [vmem:[%s210 + $0x128] sm:$0xff]
        %v544 = vld [vmem:[%s210 + $0x130] sm:$0xff]
        %v545 = vld [vmem:[%s210 + $0x138] sm:$0xff]
        %v546 = vld [vmem:[%s210 + $0x140] sm:$0xff]
        %v547 = vld [vmem:[%s210 + $0x148] sm:$0xff]
        %v548 = vld [vmem:[%s210 + $0x150] sm:$0xff]
        %v549 = vld [vmem:[%s210 + $0x158] sm:$0xff]
        %v550 = vld [vmem:[%s210 + $0x160] sm:$0xff]
        %v551 = vld [vmem:[%s210 + $0x168] sm:$0xff]
        %v552 = vld [vmem:[%s210 + $0x170] sm:$0xff]
        %v553 = vld [vmem:[%s210 + $0x178] sm:$0xff]
        %v554 = vld [vmem:[%s210 + $0x180] sm:$0xff]
        %v555 = vld [vmem:[%s210 + $0x188] sm:$0xff]
        %v556 = vld [vmem:[%s210 + $0x190] sm:$0xff]
        %v557 = vld [vmem:[%s210 + $0x198] sm:$0xff]
        %v558 = vld [vmem:[%s210 + $0x1a0] sm:$0xff]
        %v559 = vld [vmem:[%s210 + $0x1a8] sm:$0xff]
        %v560 = vld [vmem:[%s210 + $0x1b0] sm:$0xff]
        %v561 = vld [vmem:[%s210 + $0x1b8] sm:$0xff]
        %v562 = vld [vmem:[%s210 + $0x1c0] sm:$0xff]
        %v563 = vld [vmem:[%s210 + $0x1c8] sm:$0xff]
        %v564 = vld [vmem:[%s210 + $0x1d0] sm:$0xff]
        %v565 = vld [vmem:[%s210 + $0x1d8] sm:$0xff]
        %v566 = vld [vmem:[%s210 + $0x1e0] sm:$0xff]
        %v567 = vld [vmem:[%s210 + $0x1e8] sm:$0xff]
        %v568 = vld [vmem:[%s210 + $0x1f0] sm:$0xff]
        %v569 = vld [vmem:[%s210 + $0x1f8] sm:$0xff]
        %v570 = vld [vmem:[%s210 + $0x200] sm:$0xff]
        %v571 = vld [vmem:[%s210 + $0x208] sm:$0xff]
        %v572 = vld [vmem:[%s210 + $0x210] sm:$0xff]
        %v573 = vld [vmem:[%s210 + $0x218] sm:$0xff]
        %v574 = vld [vmem:[%s210 + $0x220] sm:$0xff]
        %v575 = vld [vmem:[%s210 + $0x228] sm:$0xff]
        %v576 = vld [vmem:[%s210 + $0x230] sm:$0xff]
        %v577 = vld [vmem:[%s210 + $0x238] sm:$0xff]
        %v578 = vld [vmem:[%s210 + $0x240] sm:$0xff]
        %v579 = vld [vmem:[%s210 + $0x248] sm:$0xff]
        %v580 = vld [vmem:[%s210 + $0x250] sm:$0xff]
        %v581 = vld [vmem:[%s210 + $0x258] sm:$0xff]
        %v582 = vld [vmem:[%s210 + $0x260] sm:$0xff]
        %v583 = vld [vmem:[%s210 + $0x268] sm:$0xff]
        %v584 = vld [vmem:[%s210 + $0x270] sm:$0xff]
        %v585 = vld [vmem:[%s210 + $0x278] sm:$0xff]
        %v586 = vld [vmem:[%s210 + $0x280] sm:$0xff]
        %v587 = vld [vmem:[%s210 + $0x288] sm:$0xff]
        %v588 = vld [vmem:[%s210 + $0x290] sm:$0xff]
        %v589 = vld [vmem:[%s210 + $0x298] sm:$0xff]
        %v590 = vld [vmem:[%s210 + $0x2a0] sm:$0xff]
        %v591 = vld [vmem:[%s210 + $0x2a8] sm:$0xff]
        %v592 = vld [vmem:[%s210 + $0x2b0] sm:$0xff]
        %v593 = vld [vmem:[%s210 + $0x2b8] sm:$0xff]
        %v594 = vld [vmem:[%s210 + $0x2c0] sm:$0xff]
        %v595 = vld [vmem:[%s210 + $0x2c8] sm:$0xff]
        %v596 = vld [vmem:[%s210 + $0x2d0] sm:$0xff]
        %v597 = vld [vmem:[%s210 + $0x2d8] sm:$0xff]
        %v598 = vld [vmem:[%s210 + $0x2e0] sm:$0xff]
        %v599 = vld [vmem:[%s210 + $0x2e8] sm:$0xff]
        %v600 = vld [vmem:[%s210 + $0x2f0] sm:$0xff]
        %v601 = vld [vmem:[%s210 + $0x2f8] sm:$0xff]
        %v602 = vld [vmem:[%s210 + $0x300] sm:$0xff]
        %v603 = vld [vmem:[%s210 + $0x308] sm:$0xff]
        %v604 = vld [vmem:[%s210 + $0x310] sm:$0xff]
        %v605 = vld [vmem:[%s210 + $0x318] sm:$0xff]
        %v606 = vld [vmem:[%s210 + $0x320] sm:$0xff]
        %v607 = vld [vmem:[%s210 + $0x328] sm:$0xff]
        %v608 = vld [vmem:[%s210 + $0x330] sm:$0xff]
        %v609 = vld [vmem:[%s210 + $0x338] sm:$0xff]
        %v610 = vld [vmem:[%s210 + $0x340] sm:$0xff]
        %v611 = vld [vmem:[%s210 + $0x348] sm:$0xff]
        %v612 = vld [vmem:[%s210 + $0x350] sm:$0xff]
        %v613 = vld [vmem:[%s210 + $0x358] sm:$0xff]
        %v614 = vld [vmem:[%s210 + $0x360] sm:$0xff]
        %v615 = vld [vmem:[%s210 + $0x368] sm:$0xff]
        %v616 = vld [vmem:[%s210 + $0x370] sm:$0xff]
        %v617 = vld [vmem:[%s210 + $0x378] sm:$0xff]
        %v618 = vld [vmem:[%s210 + $0x380] sm:$0xff]
        %v619 = vld [vmem:[%s210 + $0x388] sm:$0xff]
        %v620 = vld [vmem:[%s210 + $0x390] sm:$0xff]
        %v621 = vld [vmem:[%s210 + $0x398] sm:$0xff]
        %v622 = vld [vmem:[%s210 + $0x3a0] sm:$0xff]
        %v623 = vld [vmem:[%s210 + $0x3a8] sm:$0xff]
        %v624 = vld [vmem:[%s210 + $0x3b0] sm:$0xff]
        %v625 = vld [vmem:[%s210 + $0x3b8] sm:$0xff]
        %v626 = vld [vmem:[%s210 + $0x3c0] sm:$0xff]
        %v627 = vld [vmem:[%s210 + $0x3c8] sm:$0xff]
        %v628 = vld [vmem:[%s210 + $0x3d0] sm:$0xff]
        %v629 = vld [vmem:[%s210 + $0x3d8] sm:$0xff]
        %v630 = vld [vmem:[%s210 + $0x3e0] sm:$0xff]
        %v631 = vld [vmem:[%s210 + $0x3e8] sm:$0xff]
        %v632 = vld [vmem:[%s210 + $0x3f0] sm:$0xff]
        %v633 = vld [vmem:[%s210 + $0x3f8] sm:$0xff]
        %v634 = vld [vmem:[%s210 + $0x400] sm:$0xff]
        %v635 = vld [vmem:[%s210 + $0x408] sm:$0xff]
        %v636 = vld [vmem:[%s210 + $0x410] sm:$0xff]
        %v637 = vld [vmem:[%s210 + $0x418] sm:$0xff]
        %v638 = vld [vmem:[%s210 + $0x420] sm:$0xff]
        %v639 = vld [vmem:[%s210 + $0x428] sm:$0xff]
        %v640 = vld [vmem:[%s210 + $0x430] sm:$0xff]
        %v641 = vld [vmem:[%s210 + $0x438] sm:$0xff]
        %v642 = vld [vmem:[%s210 + $0x440] sm:$0xff]
        %v643 = vld [vmem:[%s210 + $0x448] sm:$0xff]
        %v644 = vld [vmem:[%s210 + $0x450] sm:$0xff]
        %v645 = vld [vmem:[%s210 + $0x458] sm:$0xff]
        %v646 = vld [vmem:[%s210 + $0x460] sm:$0xff]
        %v647 = vld [vmem:[%s210 + $0x468] sm:$0xff]
        %v648 = vld [vmem:[%s210 + $0x470] sm:$0xff]
        %v649 = vld [vmem:[%s210 + $0x478] sm:$0xff]
        %v650 = vld [vmem:[%s210 + $0x480] sm:$0xff]
        %v651 = vld [vmem:[%s210 + $0x488] sm:$0xff]
        %v652 = vld [vmem:[%s210 + $0x490] sm:$0xff]
        %v653 = vld [vmem:[%s210 + $0x498] sm:$0xff]
        %v654 = vld [vmem:[%s210 + $0x4a0] sm:$0xff]
        %v655 = vld [vmem:[%s210 + $0x4a8] sm:$0xff]
        %v656 = vld [vmem:[%s210 + $0x4b0] sm:$0xff]
        %v657 = vld [vmem:[%s210 + $0x4b8] sm:$0xff]
        %v658 = vld [vmem:[%s210 + $0x4c0] sm:$0xff]
        %v659 = vld [vmem:[%s210 + $0x4c8] sm:$0xff]
        %v660 = vld [vmem:[%s210 + $0x4d0] sm:$0xff]
        %v661 = vld [vmem:[%s210 + $0x4d8] sm:$0xff]
        %v662 = vld [vmem:[%s210 + $0x4e0] sm:$0xff]
        %v663 = vld [vmem:[%s210 + $0x4e8] sm:$0xff]
        %v664 = vld [vmem:[%s210 + $0x4f0] sm:$0xff]
        %v665 = vld [vmem:[%s210 + $0x4f8] sm:$0xff]
        %v666 = vld [vmem:[%s210 + $0x500] sm:$0xff]
        %v667 = vld [vmem:[%s210 + $0x508] sm:$0xff]
        %v668 = vld [vmem:[%s210 + $0x510] sm:$0xff]
        %v669 = vld [vmem:[%s210 + $0x518] sm:$0xff]
        %v670 = vld [vmem:[%s210 + $0x520] sm:$0xff]
        %v671 = vld [vmem:[%s210 + $0x528] sm:$0xff]
        %v672 = vld [vmem:[%s210 + $0x530] sm:$0xff]
        %v673 = vld [vmem:[%s210 + $0x538] sm:$0xff]
        %v674 = vld [vmem:[%s210 + $0x540] sm:$0xff]
        %v675 = vld [vmem:[%s210 + $0x548] sm:$0xff]
        %v676 = vld [vmem:[%s210 + $0x550] sm:$0xff]
        %v677 = vld [vmem:[%s210 + $0x558] sm:$0xff]
        %v678 = vld [vmem:[%s210 + $0x560] sm:$0xff]
        %v679 = vld [vmem:[%s210 + $0x568] sm:$0xff]
        %v680 = vld [vmem:[%s210 + $0x570] sm:$0xff]
        %v681 = vld [vmem:[%s210 + $0x578] sm:$0xff]
        %v682 = vld [vmem:[%s210 + $0x580] sm:$0xff]
        %v683 = vld [vmem:[%s210 + $0x588] sm:$0xff]
        %v684 = vld [vmem:[%s210 + $0x590] sm:$0xff]
        %v685 = vld [vmem:[%s210 + $0x598] sm:$0xff]
        %v686 = vld [vmem:[%s210 + $0x5a0] sm:$0xff]
        %v687 = vld [vmem:[%s210 + $0x5a8] sm:$0xff]
        %v688 = vld [vmem:[%s210 + $0x5b0] sm:$0xff]
        %v689 = vld [vmem:[%s210 + $0x5b8] sm:$0xff]
        %v690 = vld [vmem:[%s210 + $0x5c0] sm:$0xff]
        %v691 = vld [vmem:[%s210 + $0x5c8] sm:$0xff]
        %v692 = vld [vmem:[%s210 + $0x5d0] sm:$0xff]
        %v693 = vld [vmem:[%s210 + $0x5d8] sm:$0xff]
        %v694 = vld [vmem:[%s210 + $0x5e0] sm:$0xff]
        %v695 = vld [vmem:[%s210 + $0x5e8] sm:$0xff]
        %v696 = vld [vmem:[%s210 + $0x5f0] sm:$0xff]
        %v697 = vld [vmem:[%s210 + $0x5f8] sm:$0xff]
        %v698 = vld [vmem:[%s210 + $0x600] sm:$0xff]
        %v699 = vld [vmem:[%s210 + $0x608] sm:$0xff]
        %v700 = vld [vmem:[%s210 + $0x610] sm:$0xff]
        %v701 = vld [vmem:[%s210 + $0x618] sm:$0xff]
        %v702 = vld [vmem:[%s210 + $0x620] sm:$0xff]
        %v703 = vld [vmem:[%s210 + $0x628] sm:$0xff]
        %v704 = vld [vmem:[%s210 + $0x630] sm:$0xff]
        %v705 = vld [vmem:[%s210 + $0x638] sm:$0xff]
        %v706 = vld [vmem:[%s210 + $0x640] sm:$0xff]
        %v707 = vld [vmem:[%s210 + $0x648] sm:$0xff]
        %v708 = vld [vmem:[%s210 + $0x650] sm:$0xff]
        %v709 = vld [vmem:[%s210 + $0x658] sm:$0xff]
        %v710 = vld [vmem:[%s210 + $0x660] sm:$0xff]
        %v711 = vld [vmem:[%s210 + $0x668] sm:$0xff]
        %v712 = vld [vmem:[%s210 + $0x670] sm:$0xff]
        %v713 = vld [vmem:[%s210 + $0x678] sm:$0xff]
        %v714 = vld [vmem:[%s210 + $0x680] sm:$0xff]
        %v715 = vld [vmem:[%s210 + $0x688] sm:$0xff]
        %v716 = vld [vmem:[%s210 + $0x690] sm:$0xff]
        %v717 = vld [vmem:[%s210 + $0x698] sm:$0xff]
        %v718 = vld [vmem:[%s210 + $0x6a0] sm:$0xff]
        %v719 = vld [vmem:[%s210 + $0x6a8] sm:$0xff]
        %v720 = vld [vmem:[%s210 + $0x6b0] sm:$0xff]
        %v721 = vld [vmem:[%s210 + $0x6b8] sm:$0xff]
        %v722 = vld [vmem:[%s210 + $0x6c0] sm:$0xff]
        %v723 = vld [vmem:[%s210 + $0x6c8] sm:$0xff]
        %v724 = vld [vmem:[%s210 + $0x6d0] sm:$0xff]
        %v725 = vld [vmem:[%s210 + $0x6d8] sm:$0xff]
        %v726 = vld [vmem:[%s210 + $0x6e0] sm:$0xff]
        %v727 = vld [vmem:[%s210 + $0x6e8] sm:$0xff]
        %v728 = vld [vmem:[%s210 + $0x6f0] sm:$0xff]
        %v729 = vld [vmem:[%s210 + $0x6f8] sm:$0xff]
        %v730 = vld [vmem:[%s210 + $0x700] sm:$0xff]
        %v731 = vld [vmem:[%s210 + $0x708] sm:$0xff]
        %v732 = vld [vmem:[%s210 + $0x710] sm:$0xff]
        %v733 = vld [vmem:[%s210 + $0x718] sm:$0xff]
        %v734 = vld [vmem:[%s210 + $0x720] sm:$0xff]
        %v735 = vld [vmem:[%s210 + $0x728] sm:$0xff]
        %v736 = vld [vmem:[%s210 + $0x730] sm:$0xff]
        %v737 = vld [vmem:[%s210 + $0x738] sm:$0xff]
        %v738 = vld [vmem:[%s210 + $0x740] sm:$0xff]
        %v739 = vld [vmem:[%s210 + $0x748] sm:$0xff]
        %v740 = vld [vmem:[%s210 + $0x750] sm:$0xff]
        %v741 = vld [vmem:[%s210 + $0x758] sm:$0xff]
        %v742 = vld [vmem:[%s210 + $0x760] sm:$0xff]
        %v743 = vld [vmem:[%s210 + $0x768] sm:$0xff]
        %v744 = vld [vmem:[%s210 + $0x770] sm:$0xff]
        %v745 = vld [vmem:[%s210 + $0x778] sm:$0xff]
        %v746 = vld [vmem:[%s210 + $0x780] sm:$0xff]
        %v747 = vld [vmem:[%s210 + $0x788] sm:$0xff]
        %v748 = vld [vmem:[%s210 + $0x790] sm:$0xff]
        %v749 = vld [vmem:[%s210 + $0x798] sm:$0xff]
        %v750 = vld [vmem:[%s210 + $0x7a0] sm:$0xff]
        %v751 = vld [vmem:[%s210 + $0x7a8] sm:$0xff]
        %v752 = vld [vmem:[%s210 + $0x7b0] sm:$0xff]
        %v753 = vld [vmem:[%s210 + $0x7b8] sm:$0xff]
        %v754 = vld [vmem:[%s210 + $0x7c0] sm:$0xff]
        %v755 = vld [vmem:[%s210 + $0x7c8] sm:$0xff]
        %v756 = vld [vmem:[%s210 + $0x7d0] sm:$0xff]
        %v757 = vld [vmem:[%s210 + $0x7d8] sm:$0xff]
        %v758 = vld [vmem:[%s210 + $0x7e0] sm:$0xff]
        %v759 = vld [vmem:[%s210 + $0x7e8] sm:$0xff]
        %v760 = vld [vmem:[%s210 + $0x7f0] sm:$0xff]
        %v761 = vld [vmem:[%s210 + $0x7f8] sm:$0xff]
        %v762 = vsub.f32 %v250, %v506
        %v763 = vsub.f32 %v251, %v507
        %v764 = vsub.f32 %v252, %v508
        %v765 = vsub.f32 %v253, %v509
        %v766 = vsub.f32 %v254, %v510
        %v767 = vsub.f32 %v255, %v511
        %v768 = vsub.f32 %v256, %v512
        %v769 = vsub.f32 %v257, %v513
        %v770 = vsub.f32 %v258, %v514
        %v771 = vsub.f32 %v259, %v515
        %v772 = vsub.f32 %v260, %v516
        %v773 = vsub.f32 %v261, %v517
        %v774 = vsub.f32 %v262, %v518
        %v775 = vsub.f32 %v263, %v519
        %v776 = vsub.f32 %v264, %v520
        %v777 = vsub.f32 %v265, %v521
        %v778 = vsub.f32 %v266, %v522
        %v779 = vsub.f32 %v267, %v523
        %v780 = vsub.f32 %v268, %v524
        %v781 = vsub.f32 %v269, %v525
        %v782 = vsub.f32 %v270, %v526
        %v783 = vsub.f32 %v271, %v527
        %v784 = vsub.f32 %v272, %v528
        %v785 = vsub.f32 %v273, %v529
        %v786 = vsub.f32 %v274, %v530
        %v787 = vsub.f32 %v275, %v531
        %v788 = vsub.f32 %v276, %v532
        %v789 = vsub.f32 %v277, %v533
        %v790 = vsub.f32 %v278, %v534
        %v791 = vsub.f32 %v279, %v535
        %v792 = vsub.f32 %v280, %v536
        %v793 = vsub.f32 %v281, %v537
        %v794 = vsub.f32 %v282, %v538
        %v795 = vsub.f32 %v283, %v539
        %v796 = vsub.f32 %v284, %v540
        %v797 = vsub.f32 %v285, %v541
        %v798 = vsub.f32 %v286, %v542
        %v799 = vsub.f32 %v287, %v543
        %v800 = vsub.f32 %v288, %v544
        %v801 = vsub.f32 %v289, %v545
        %v802 = vsub.f32 %v290, %v546
        %v803 = vsub.f32 %v291, %v547
        %v804 = vsub.f32 %v292, %v548
        %v805 = vsub.f32 %v293, %v549
        %v806 = vsub.f32 %v294, %v550
        %v807 = vsub.f32 %v295, %v551
        %v808 = vsub.f32 %v296, %v552
        %v809 = vsub.f32 %v297, %v553
        %v810 = vsub.f32 %v298, %v554
        %v811 = vsub.f32 %v299, %v555
        %v812 = vsub.f32 %v300, %v556
        %v813 = vsub.f32 %v301, %v557
        %v814 = vsub.f32 %v302, %v558
        %v815 = vsub.f32 %v303, %v559
        %v816 = vsub.f32 %v304, %v560
        %v817 = vsub.f32 %v305, %v561
        %v818 = vsub.f32 %v306, %v562
        %v819 = vsub.f32 %v307, %v563
        %v820 = vsub.f32 %v308, %v564
        %v821 = vsub.f32 %v309, %v565
        %v822 = vsub.f32 %v310, %v566
        %v823 = vsub.f32 %v311, %v567
        %v824 = vsub.f32 %v312, %v568
        %v825 = vsub.f32 %v313, %v569
        %v826 = vsub.f32 %v314, %v570
        %v827 = vsub.f32 %v315, %v571
        %v828 = vsub.f32 %v316, %v572
        %v829 = vsub.f32 %v317, %v573
        %v830 = vsub.f32 %v318, %v574
        %v831 = vsub.f32 %v319, %v575
        %v832 = vsub.f32 %v320, %v576
        %v833 = vsub.f32 %v321, %v577
        %v834 = vsub.f32 %v322, %v578
        %v835 = vsub.f32 %v323, %v579
        %v836 = vsub.f32 %v324, %v580
        %v837 = vsub.f32 %v325, %v581
        %v838 = vsub.f32 %v326, %v582
        %v839 = vsub.f32 %v327, %v583
        %v840 = vsub.f32 %v328, %v584
        %v841 = vsub.f32 %v329, %v585
        %v842 = vsub.f32 %v330, %v586
        %v843 = vsub.f32 %v331, %v587
        %v844 = vsub.f32 %v332, %v588
        %v845 = vsub.f32 %v333, %v589
        %v846 = vsub.f32 %v334, %v590
        %v847 = vsub.f32 %v335, %v591
        %v848 = vsub.f32 %v336, %v592
        %v849 = vsub.f32 %v337, %v593
        %v850 = vsub.f32 %v338, %v594
        %v851 = vsub.f32 %v339, %v595
        %v852 = vsub.f32 %v340, %v596
        %v853 = vsub.f32 %v341, %v597
        %v854 = vsub.f32 %v342, %v598
        %v855 = vsub.f32 %v343, %v599
        %v856 = vsub.f32 %v344, %v600
        %v857 = vsub.f32 %v345, %v601
        %v858 = vsub.f32 %v346, %v602
        %v859 = vsub.f32 %v347, %v603
        %v860 = vsub.f32 %v348, %v604
        %v861 = vsub.f32 %v349, %v605
        %v862 = vsub.f32 %v350, %v606
        %v863 = vsub.f32 %v351, %v607
        %v864 = vsub.f32 %v352, %v608
        %v865 = vsub.f32 %v353, %v609
        %v866 = vsub.f32 %v354, %v610
        %v867 = vsub.f32 %v355, %v611
        %v868 = vsub.f32 %v356, %v612
        %v869 = vsub.f32 %v357, %v613
        %v870 = vsub.f32 %v358, %v614
        %v871 = vsub.f32 %v359, %v615
        %v872 = vsub.f32 %v360, %v616
        %v873 = vsub.f32 %v361, %v617
        %v874 = vsub.f32 %v362, %v618
        %v875 = vsub.f32 %v363, %v619
        %v876 = vsub.f32 %v364, %v620
        %v877 = vsub.f32 %v365, %v621
        %v878 = vsub.f32 %v366, %v622
        %v879 = vsub.f32 %v367, %v623
        %v880 = vsub.f32 %v368, %v624
        %v881 = vsub.f32 %v369, %v625
        %v882 = vsub.f32 %v370, %v626
        %v883 = vsub.f32 %v371, %v627
        %v884 = vsub.f32 %v372, %v628
        %v885 = vsub.f32 %v373, %v629
        %v886 = vsub.f32 %v374, %v630
        %v887 = vsub.f32 %v375, %v631
        %v888 = vsub.f32 %v376, %v632
        %v889 = vsub.f32 %v377, %v633
        %v890 = vsub.f32 %v378, %v634
        %v891 = vsub.f32 %v379, %v635
        %v892 = vsub.f32 %v380, %v636
        %v893 = vsub.f32 %v381, %v637
        %v894 = vsub.f32 %v382, %v638
        %v895 = vsub.f32 %v383, %v639
        %v896 = vsub.f32 %v384, %v640
        %v897 = vsub.f32 %v385, %v641
        %v898 = vsub.f32 %v386, %v642
        %v899 = vsub.f32 %v387, %v643
        %v900 = vsub.f32 %v388, %v644
        %v901 = vsub.f32 %v389, %v645
        %v902 = vsub.f32 %v390, %v646
        %v903 = vsub.f32 %v391, %v647
        %v904 = vsub.f32 %v392, %v648
        %v905 = vsub.f32 %v393, %v649
        %v906 = vsub.f32 %v394, %v650
        %v907 = vsub.f32 %v395, %v651
        %v908 = vsub.f32 %v396, %v652
        %v909 = vsub.f32 %v397, %v653
        %v910 = vsub.f32 %v398, %v654
        %v911 = vsub.f32 %v399, %v655
        %v912 = vsub.f32 %v400, %v656
        %v913 = vsub.f32 %v401, %v657
        %v914 = vsub.f32 %v402, %v658
        %v915 = vsub.f32 %v403, %v659
        %v916 = vsub.f32 %v404, %v660
        %v917 = vsub.f32 %v405, %v661
        %v918 = vsub.f32 %v406, %v662
        %v919 = vsub.f32 %v407, %v663
        %v920 = vsub.f32 %v408, %v664
        %v921 = vsub.f32 %v409, %v665
        %v922 = vsub.f32 %v410, %v666
        %v923 = vsub.f32 %v411, %v667
        %v924 = vsub.f32 %v412, %v668
        %v925 = vsub.f32 %v413, %v669
        %v926 = vsub.f32 %v414, %v670
        %v927 = vsub.f32 %v415, %v671
        %v928 = vsub.f32 %v416, %v672
        %v929 = vsub.f32 %v417, %v673
        %v930 = vsub.f32 %v418, %v674
        %v931 = vsub.f32 %v419, %v675
        %v932 = vsub.f32 %v420, %v676
        %v933 = vsub.f32 %v421, %v677
        %v934 = vsub.f32 %v422, %v678
        %v935 = vsub.f32 %v423, %v679
        %v936 = vsub.f32 %v424, %v680
        %v937 = vsub.f32 %v425, %v681
        %v938 = vsub.f32 %v426, %v682
        %v939 = vsub.f32 %v427, %v683
        %v940 = vsub.f32 %v428, %v684
        %v941 = vsub.f32 %v429, %v685
        %v942 = vsub.f32 %v430, %v686
        %v943 = vsub.f32 %v431, %v687
        %v944 = vsub.f32 %v432, %v688
        %v945 = vsub.f32 %v433, %v689
        %v946 = vsub.f32 %v434, %v690
        %v947 = vsub.f32 %v435, %v691
        %v948 = vsub.f32 %v436, %v692
        %v949 = vsub.f32 %v437, %v693
        %v950 = vsub.f32 %v438, %v694
        %v951 = vsub.f32 %v439, %v695
        %v952 = vsub.f32 %v440, %v696
        %v953 = vsub.f32 %v441, %v697
        %v954 = vsub.f32 %v442, %v698
        %v955 = vsub.f32 %v443, %v699
        %v956 = vsub.f32 %v444, %v700
        %v957 = vsub.f32 %v445, %v701
        %v958 = vsub.f32 %v446, %v702
        %v959 = vsub.f32 %v447, %v703
        %v960 = vsub.f32 %v448, %v704
        %v961 = vsub.f32 %v449, %v705
        %v962 = vsub.f32 %v450, %v706
        %v963 = vsub.f32 %v451, %v707
        %v964 = vsub.f32 %v452, %v708
        %v965 = vsub.f32 %v453, %v709
        %v966 = vsub.f32 %v454, %v710
        %v967 = vsub.f32 %v455, %v711
        %v968 = vsub.f32 %v456, %v712
        %v969 = vsub.f32 %v457, %v713
        %v970 = vsub.f32 %v458, %v714
        %v971 = vsub.f32 %v459, %v715
        %v972 = vsub.f32 %v460, %v716
        %v973 = vsub.f32 %v461, %v717
        %v974 = vsub.f32 %v462, %v718
        %v975 = vsub.f32 %v463, %v719
        %v976 = vsub.f32 %v464, %v720
        %v977 = vsub.f32 %v465, %v721
        %v978 = vsub.f32 %v466, %v722
        %v979 = vsub.f32 %v467, %v723
        %v980 = vsub.f32 %v468, %v724
        %v981 = vsub.f32 %v469, %v725
        %v982 = vsub.f32 %v470, %v726
        %v983 = vsub.f32 %v471, %v727
        %v984 = vsub.f32 %v472, %v728
        %v985 = vsub.f32 %v473, %v729
        %v986 = vsub.f32 %v474, %v730
        %v987 = vsub.f32 %v475, %v731
        %v988 = vsub.f32 %v476, %v732
        %v989 = vsub.f32 %v477, %v733
        %v990 = vsub.f32 %v478, %v734
        %v991 = vsub.f32 %v479, %v735
        %v992 = vsub.f32 %v480, %v736
        %v993 = vsub.f32 %v481, %v737
        %v994 = vsub.f32 %v482, %v738
        %v995 = vsub.f32 %v483, %v739
        %v996 = vsub.f32 %v484, %v740
        %v997 = vsub.f32 %v485, %v741
        %v998 = vsub.f32 %v486, %v742
        %v999 = vsub.f32 %v487, %v743
        %v1000 = vsub.f32 %v488, %v744
        %v1001 = vsub.f32 %v489, %v745
        %v1002 = vsub.f32 %v490, %v746
        %v1003 = vsub.f32 %v491, %v747
        %v1004 = vsub.f32 %v492, %v748
        %v1005 = vsub.f32 %v493, %v749
        %v1006 = vsub.f32 %v494, %v750
        %v1007 = vsub.f32 %v495, %v751
        %v1008 = vsub.f32 %v496, %v752
        %v1009 = vsub.f32 %v497, %v753
        %v1010 = vsub.f32 %v498, %v754
        %v1011 = vsub.f32 %v499, %v755
        %v1012 = vsub.f32 %v500, %v756
        %v1013 = vsub.f32 %v501, %v757
        %v1014 = vsub.f32 %v502, %v758
        %v1015 = vsub.f32 %v503, %v759
        %v1016 = vsub.f32 %v504, %v760
        %v1017 = vsub.f32 %v505, %v761
        %v1018 = vand.u32 2147483647, %v762
        %v1019 = vand.u32 2147483647, %v763
        %v1020 = vand.u32 2147483647, %v764
        %v1021 = vand.u32 2147483647, %v765
        %v1022 = vand.u32 2147483647, %v766
        %v1023 = vand.u32 2147483647, %v767
        %v1024 = vand.u32 2147483647, %v768
        %v1025 = vand.u32 2147483647, %v769
        %v1026 = vand.u32 2147483647, %v770
        %v1027 = vand.u32 2147483647, %v771
        %v1028 = vand.u32 2147483647, %v772
        %v1029 = vand.u32 2147483647, %v773
        %v1030 = vand.u32 2147483647, %v774
        %v1031 = vand.u32 2147483647, %v775
        %v1032 = vand.u32 2147483647, %v776
        %v1033 = vand.u32 2147483647, %v777
        %v1034 = vand.u32 2147483647, %v778
        %v1035 = vand.u32 2147483647, %v779
        %v1036 = vand.u32 2147483647, %v780
        %v1037 = vand.u32 2147483647, %v781
        %v1038 = vand.u32 2147483647, %v782
        %v1039 = vand.u32 2147483647, %v783
        %v1040 = vand.u32 2147483647, %v784
        %v1041 = vand.u32 2147483647, %v785
        %v1042 = vand.u32 2147483647, %v786
        %v1043 = vand.u32 2147483647, %v787
        %v1044 = vand.u32 2147483647, %v788
        %v1045 = vand.u32 2147483647, %v789
        %v1046 = vand.u32 2147483647, %v790
        %v1047 = vand.u32 2147483647, %v791
        %v1048 = vand.u32 2147483647, %v792
        %v1049 = vand.u32 2147483647, %v793
        %v1050 = vand.u32 2147483647, %v794
        %v1051 = vand.u32 2147483647, %v795
        %v1052 = vand.u32 2147483647, %v796
        %v1053 = vand.u32 2147483647, %v797
        %v1054 = vand.u32 2147483647, %v798
        %v1055 = vand.u32 2147483647, %v799
        %v1056 = vand.u32 2147483647, %v800
        %v1057 = vand.u32 2147483647, %v801
        %v1058 = vand.u32 2147483647, %v802
        %v1059 = vand.u32 2147483647, %v803
        %v1060 = vand.u32 2147483647, %v804
        %v1061 = vand.u32 2147483647, %v805
        %v1062 = vand.u32 2147483647, %v806
        %v1063 = vand.u32 2147483647, %v807
        %v1064 = vand.u32 2147483647, %v808
        %v1065 = vand.u32 2147483647, %v809
        %v1066 = vand.u32 2147483647, %v810
        %v1067 = vand.u32 2147483647, %v811
        %v1068 = vand.u32 2147483647, %v812
        %v1069 = vand.u32 2147483647, %v813
        %v1070 = vand.u32 2147483647, %v814
        %v1071 = vand.u32 2147483647, %v815
        %v1072 = vand.u32 2147483647, %v816
        %v1073 = vand.u32 2147483647, %v817
        %v1074 = vand.u32 2147483647, %v818
        %v1075 = vand.u32 2147483647, %v819
        %v1076 = vand.u32 2147483647, %v820
        %v1077 = vand.u32 2147483647, %v821
        %v1078 = vand.u32 2147483647, %v822
        %v1079 = vand.u32 2147483647, %v823
        %v1080 = vand.u32 2147483647, %v824
        %v1081 = vand.u32 2147483647, %v825
        %v1082 = vand.u32 2147483647, %v826
        %v1083 = vand.u32 2147483647, %v827
        %v1084 = vand.u32 2147483647, %v828
        %v1085 = vand.u32 2147483647, %v829
        %v1086 = vand.u32 2147483647, %v830
        %v1087 = vand.u32 2147483647, %v831
        %v1088 = vand.u32 2147483647, %v832
        %v1089 = vand.u32 2147483647, %v833
        %v1090 = vand.u32 2147483647, %v834
        %v1091 = vand.u32 2147483647, %v835
        %v1092 = vand.u32 2147483647, %v836
        %v1093 = vand.u32 2147483647, %v837
        %v1094 = vand.u32 2147483647, %v838
        %v1095 = vand.u32 2147483647, %v839
        %v1096 = vand.u32 2147483647, %v840
        %v1097 = vand.u32 2147483647, %v841
        %v1098 = vand.u32 2147483647, %v842
        %v1099 = vand.u32 2147483647, %v843
        %v1100 = vand.u32 2147483647, %v844
        %v1101 = vand.u32 2147483647, %v845
        %v1102 = vand.u32 2147483647, %v846
        %v1103 = vand.u32 2147483647, %v847
        %v1104 = vand.u32 2147483647, %v848
        %v1105 = vand.u32 2147483647, %v849
        %v1106 = vand.u32 2147483647, %v850
        %v1107 = vand.u32 2147483647, %v851
        %v1108 = vand.u32 2147483647, %v852
        %v1109 = vand.u32 2147483647, %v853
        %v1110 = vand.u32 2147483647, %v854
        %v1111 = vand.u32 2147483647, %v855
        %v1112 = vand.u32 2147483647, %v856
        %v1113 = vand.u32 2147483647, %v857
        %v1114 = vand.u32 2147483647, %v858
        %v1115 = vand.u32 2147483647, %v859
        %v1116 = vand.u32 2147483647, %v860
        %v1117 = vand.u32 2147483647, %v861
        %v1118 = vand.u32 2147483647, %v862
        %v1119 = vand.u32 2147483647, %v863
        %v1120 = vand.u32 2147483647, %v864
        %v1121 = vand.u32 2147483647, %v865
        %v1122 = vand.u32 2147483647, %v866
        %v1123 = vand.u32 2147483647, %v867
        %v1124 = vand.u32 2147483647, %v868
        %v1125 = vand.u32 2147483647, %v869
        %v1126 = vand.u32 2147483647, %v870
        %v1127 = vand.u32 2147483647, %v871
        %v1128 = vand.u32 2147483647, %v872
        %v1129 = vand.u32 2147483647, %v873
        %v1130 = vand.u32 2147483647, %v874
        %v1131 = vand.u32 2147483647, %v875
        %v1132 = vand.u32 2147483647, %v876
        %v1133 = vand.u32 2147483647, %v877
        %v1134 = vand.u32 2147483647, %v878
        %v1135 = vand.u32 2147483647, %v879
        %v1136 = vand.u32 2147483647, %v880
        %v1137 = vand.u32 2147483647, %v881
        %v1138 = vand.u32 2147483647, %v882
        %v1139 = vand.u32 2147483647, %v883
        %v1140 = vand.u32 2147483647, %v884
        %v1141 = vand.u32 2147483647, %v885
        %v1142 = vand.u32 2147483647, %v886
        %v1143 = vand.u32 2147483647, %v887
        %v1144 = vand.u32 2147483647, %v888
        %v1145 = vand.u32 2147483647, %v889
        %v1146 = vand.u32 2147483647, %v890
        %v1147 = vand.u32 2147483647, %v891
        %v1148 = vand.u32 2147483647, %v892
        %v1149 = vand.u32 2147483647, %v893
        %v1150 = vand.u32 2147483647, %v894
        %v1151 = vand.u32 2147483647, %v895
        %v1152 = vand.u32 2147483647, %v896
        %v1153 = vand.u32 2147483647, %v897
        %v1154 = vand.u32 2147483647, %v898
        %v1155 = vand.u32 2147483647, %v899
        %v1156 = vand.u32 2147483647, %v900
        %v1157 = vand.u32 2147483647, %v901
        %v1158 = vand.u32 2147483647, %v902
        %v1159 = vand.u32 2147483647, %v903
        %v1160 = vand.u32 2147483647, %v904
        %v1161 = vand.u32 2147483647, %v905
        %v1162 = vand.u32 2147483647, %v906
        %v1163 = vand.u32 2147483647, %v907
        %v1164 = vand.u32 2147483647, %v908
        %v1165 = vand.u32 2147483647, %v909
        %v1166 = vand.u32 2147483647, %v910
        %v1167 = vand.u32 2147483647, %v911
        %v1168 = vand.u32 2147483647, %v912
        %v1169 = vand.u32 2147483647, %v913
        %v1170 = vand.u32 2147483647, %v914
        %v1171 = vand.u32 2147483647, %v915
        %v1172 = vand.u32 2147483647, %v916
        %v1173 = vand.u32 2147483647, %v917
        %v1174 = vand.u32 2147483647, %v918
        %v1175 = vand.u32 2147483647, %v919
        %v1176 = vand.u32 2147483647, %v920
        %v1177 = vand.u32 2147483647, %v921
        %v1178 = vand.u32 2147483647, %v922
        %v1179 = vand.u32 2147483647, %v923
        %v1180 = vand.u32 2147483647, %v924
        %v1181 = vand.u32 2147483647, %v925
        %v1182 = vand.u32 2147483647, %v926
        %v1183 = vand.u32 2147483647, %v927
        %v1184 = vand.u32 2147483647, %v928
        %v1185 = vand.u32 2147483647, %v929
        %v1186 = vand.u32 2147483647, %v930
        %v1187 = vand.u32 2147483647, %v931
        %v1188 = vand.u32 2147483647, %v932
        %v1189 = vand.u32 2147483647, %v933
        %v1190 = vand.u32 2147483647, %v934
        %v1191 = vand.u32 2147483647, %v935
        %v1192 = vand.u32 2147483647, %v936
        %v1193 = vand.u32 2147483647, %v937
        %v1194 = vand.u32 2147483647, %v938
        %v1195 = vand.u32 2147483647, %v939
        %v1196 = vand.u32 2147483647, %v940
        %v1197 = vand.u32 2147483647, %v941
        %v1198 = vand.u32 2147483647, %v942
        %v1199 = vand.u32 2147483647, %v943
        %v1200 = vand.u32 2147483647, %v944
        %v1201 = vand.u32 2147483647, %v945
        %v1202 = vand.u32 2147483647, %v946
        %v1203 = vand.u32 2147483647, %v947
        %v1204 = vand.u32 2147483647, %v948
        %v1205 = vand.u32 2147483647, %v949
        %v1206 = vand.u32 2147483647, %v950
        %v1207 = vand.u32 2147483647, %v951
        %v1208 = vand.u32 2147483647, %v952
        %v1209 = vand.u32 2147483647, %v953
        %v1210 = vand.u32 2147483647, %v954
        %v1211 = vand.u32 2147483647, %v955
        %v1212 = vand.u32 2147483647, %v956
        %v1213 = vand.u32 2147483647, %v957
        %v1214 = vand.u32 2147483647, %v958
        %v1215 = vand.u32 2147483647, %v959
        %v1216 = vand.u32 2147483647, %v960
        %v1217 = vand.u32 2147483647, %v961
        %v1218 = vand.u32 2147483647, %v962
        %v1219 = vand.u32 2147483647, %v963
        %v1220 = vand.u32 2147483647, %v964
        %v1221 = vand.u32 2147483647, %v965
        %v1222 = vand.u32 2147483647, %v966
        %v1223 = vand.u32 2147483647, %v967
        %v1224 = vand.u32 2147483647, %v968
        %v1225 = vand.u32 2147483647, %v969
        %v1226 = vand.u32 2147483647, %v970
        %v1227 = vand.u32 2147483647, %v971
        %v1228 = vand.u32 2147483647, %v972
        %v1229 = vand.u32 2147483647, %v973
        %v1230 = vand.u32 2147483647, %v974
        %v1231 = vand.u32 2147483647, %v975
        %v1232 = vand.u32 2147483647, %v976
        %v1233 = vand.u32 2147483647, %v977
        %v1234 = vand.u32 2147483647, %v978
        %v1235 = vand.u32 2147483647, %v979
        %v1236 = vand.u32 2147483647, %v980
        %v1237 = vand.u32 2147483647, %v981
        %v1238 = vand.u32 2147483647, %v982
        %v1239 = vand.u32 2147483647, %v983
        %v1240 = vand.u32 2147483647, %v984
        %v1241 = vand.u32 2147483647, %v985
        %v1242 = vand.u32 2147483647, %v986
        %v1243 = vand.u32 2147483647, %v987
        %v1244 = vand.u32 2147483647, %v988
        %v1245 = vand.u32 2147483647, %v989
        %v1246 = vand.u32 2147483647, %v990
        %v1247 = vand.u32 2147483647, %v991
        %v1248 = vand.u32 2147483647, %v992
        %v1249 = vand.u32 2147483647, %v993
        %v1250 = vand.u32 2147483647, %v994
        %v1251 = vand.u32 2147483647, %v995
        %v1252 = vand.u32 2147483647, %v996
        %v1253 = vand.u32 2147483647, %v997
        %v1254 = vand.u32 2147483647, %v998
        %v1255 = vand.u32 2147483647, %v999
        %v1256 = vand.u32 2147483647, %v1000
        %v1257 = vand.u32 2147483647, %v1001
        %v1258 = vand.u32 2147483647, %v1002
        %v1259 = vand.u32 2147483647, %v1003
        %v1260 = vand.u32 2147483647, %v1004
        %v1261 = vand.u32 2147483647, %v1005
        %v1262 = vand.u32 2147483647, %v1006
        %v1263 = vand.u32 2147483647, %v1007
        %v1264 = vand.u32 2147483647, %v1008
        %v1265 = vand.u32 2147483647, %v1009
        %v1266 = vand.u32 2147483647, %v1010
        %v1267 = vand.u32 2147483647, %v1011
        %v1268 = vand.u32 2147483647, %v1012
        %v1269 = vand.u32 2147483647, %v1013
        %v1270 = vand.u32 2147483647, %v1014
        %v1271 = vand.u32 2147483647, %v1015
        %v1272 = vand.u32 2147483647, %v1016
        %v1273 = vand.u32 2147483647, %v1017
        %v1274 = vmin.f32 %v1018, 5.0
        %v1275 = vmin.f32 %v1019, 5.0
        %v1276 = vmin.f32 %v1020, 5.0
        %v1277 = vmin.f32 %v1021, 5.0
        %v1278 = vmin.f32 %v1022, 5.0
        %v1279 = vmin.f32 %v1023, 5.0
        %v1280 = vmin.f32 %v1024, 5.0
        %v1281 = vmin.f32 %v1025, 5.0
        %v1282 = vmin.f32 %v1026, 5.0
        %v1283 = vmin.f32 %v1027, 5.0
        %v1284 = vmin.f32 %v1028, 5.0
        %v1285 = vmin.f32 %v1029, 5.0
        %v1286 = vmin.f32 %v1030, 5.0
        %v1287 = vmin.f32 %v1031, 5.0
        %v1288 = vmin.f32 %v1032, 5.0
        %v1289 = vmin.f32 %v1033, 5.0
        %v1290 = vmin.f32 %v1034, 5.0
        %v1291 = vmin.f32 %v1035, 5.0
        %v1292 = vmin.f32 %v1036, 5.0
        %v1293 = vmin.f32 %v1037, 5.0
        %v1294 = vmin.f32 %v1038, 5.0
        %v1295 = vmin.f32 %v1039, 5.0
        %v1296 = vmin.f32 %v1040, 5.0
        %v1297 = vmin.f32 %v1041, 5.0
        %v1298 = vmin.f32 %v1042, 5.0
        %v1299 = vmin.f32 %v1043, 5.0
        %v1300 = vmin.f32 %v1044, 5.0
        %v1301 = vmin.f32 %v1045, 5.0
        %v1302 = vmin.f32 %v1046, 5.0
        %v1303 = vmin.f32 %v1047, 5.0
        %v1304 = vmin.f32 %v1048, 5.0
        %v1305 = vmin.f32 %v1049, 5.0
        %v1306 = vmin.f32 %v1050, 5.0
        %v1307 = vmin.f32 %v1051, 5.0
        %v1308 = vmin.f32 %v1052, 5.0
        %v1309 = vmin.f32 %v1053, 5.0
        %v1310 = vmin.f32 %v1054, 5.0
        %v1311 = vmin.f32 %v1055, 5.0
        %v1312 = vmin.f32 %v1056, 5.0
        %v1313 = vmin.f32 %v1057, 5.0
        %v1314 = vmin.f32 %v1058, 5.0
        %v1315 = vmin.f32 %v1059, 5.0
        %v1316 = vmin.f32 %v1060, 5.0
        %v1317 = vmin.f32 %v1061, 5.0
        %v1318 = vmin.f32 %v1062, 5.0
        %v1319 = vmin.f32 %v1063, 5.0
        %v1320 = vmin.f32 %v1064, 5.0
        %v1321 = vmin.f32 %v1065, 5.0
        %v1322 = vmin.f32 %v1066, 5.0
        %v1323 = vmin.f32 %v1067, 5.0
        %v1324 = vmin.f32 %v1068, 5.0
        %v1325 = vmin.f32 %v1069, 5.0
        %v1326 = vmin.f32 %v1070, 5.0
        %v1327 = vmin.f32 %v1071, 5.0
        %v1328 = vmin.f32 %v1072, 5.0
        %v1329 = vmin.f32 %v1073, 5.0
        %v1330 = vmin.f32 %v1074, 5.0
        %v1331 = vmin.f32 %v1075, 5.0
        %v1332 = vmin.f32 %v1076, 5.0
        %v1333 = vmin.f32 %v1077, 5.0
        %v1334 = vmin.f32 %v1078, 5.0
        %v1335 = vmin.f32 %v1079, 5.0
        %v1336 = vmin.f32 %v1080, 5.0
        %v1337 = vmin.f32 %v1081, 5.0
        %v1338 = vmin.f32 %v1082, 5.0
        %v1339 = vmin.f32 %v1083, 5.0
        %v1340 = vmin.f32 %v1084, 5.0
        %v1341 = vmin.f32 %v1085, 5.0
        %v1342 = vmin.f32 %v1086, 5.0
        %v1343 = vmin.f32 %v1087, 5.0
        %v1344 = vmin.f32 %v1088, 5.0
        %v1345 = vmin.f32 %v1089, 5.0
        %v1346 = vmin.f32 %v1090, 5.0
        %v1347 = vmin.f32 %v1091, 5.0
        %v1348 = vmin.f32 %v1092, 5.0
        %v1349 = vmin.f32 %v1093, 5.0
        %v1350 = vmin.f32 %v1094, 5.0
        %v1351 = vmin.f32 %v1095, 5.0
        %v1352 = vmin.f32 %v1096, 5.0
        %v1353 = vmin.f32 %v1097, 5.0
        %v1354 = vmin.f32 %v1098, 5.0
        %v1355 = vmin.f32 %v1099, 5.0
        %v1356 = vmin.f32 %v1100, 5.0
        %v1357 = vmin.f32 %v1101, 5.0
        %v1358 = vmin.f32 %v1102, 5.0
        %v1359 = vmin.f32 %v1103, 5.0
        %v1360 = vmin.f32 %v1104, 5.0
        %v1361 = vmin.f32 %v1105, 5.0
        %v1362 = vmin.f32 %v1106, 5.0
        %v1363 = vmin.f32 %v1107, 5.0
        %v1364 = vmin.f32 %v1108, 5.0
        %v1365 = vmin.f32 %v1109, 5.0
        %v1366 = vmin.f32 %v1110, 5.0
        %v1367 = vmin.f32 %v1111, 5.0
        %v1368 = vmin.f32 %v1112, 5.0
        %v1369 = vmin.f32 %v1113, 5.0
        %v1370 = vmin.f32 %v1114, 5.0
        %v1371 = vmin.f32 %v1115, 5.0
        %v1372 = vmin.f32 %v1116, 5.0
        %v1373 = vmin.f32 %v1117, 5.0
        %v1374 = vmin.f32 %v1118, 5.0
        %v1375 = vmin.f32 %v1119, 5.0
        %v1376 = vmin.f32 %v1120, 5.0
        %v1377 = vmin.f32 %v1121, 5.0
        %v1378 = vmin.f32 %v1122, 5.0
        %v1379 = vmin.f32 %v1123, 5.0
        %v1380 = vmin.f32 %v1124, 5.0
        %v1381 = vmin.f32 %v1125, 5.0
        %v1382 = vmin.f32 %v1126, 5.0
        %v1383 = vmin.f32 %v1127, 5.0
        %v1384 = vmin.f32 %v1128, 5.0
        %v1385 = vmin.f32 %v1129, 5.0
        %v1386 = vmin.f32 %v1130, 5.0
        %v1387 = vmin.f32 %v1131, 5.0
        %v1388 = vmin.f32 %v1132, 5.0
        %v1389 = vmin.f32 %v1133, 5.0
        %v1390 = vmin.f32 %v1134, 5.0
        %v1391 = vmin.f32 %v1135, 5.0
        %v1392 = vmin.f32 %v1136, 5.0
        %v1393 = vmin.f32 %v1137, 5.0
        %v1394 = vmin.f32 %v1138, 5.0
        %v1395 = vmin.f32 %v1139, 5.0
        %v1396 = vmin.f32 %v1140, 5.0
        %v1397 = vmin.f32 %v1141, 5.0
        %v1398 = vmin.f32 %v1142, 5.0
        %v1399 = vmin.f32 %v1143, 5.0
        %v1400 = vmin.f32 %v1144, 5.0
        %v1401 = vmin.f32 %v1145, 5.0
        %v1402 = vmin.f32 %v1146, 5.0
        %v1403 = vmin.f32 %v1147, 5.0
        %v1404 = vmin.f32 %v1148, 5.0
        %v1405 = vmin.f32 %v1149, 5.0
        %v1406 = vmin.f32 %v1150, 5.0
        %v1407 = vmin.f32 %v1151, 5.0
        %v1408 = vmin.f32 %v1152, 5.0
        %v1409 = vmin.f32 %v1153, 5.0
        %v1410 = vmin.f32 %v1154, 5.0
        %v1411 = vmin.f32 %v1155, 5.0
        %v1412 = vmin.f32 %v1156, 5.0
        %v1413 = vmin.f32 %v1157, 5.0
        %v1414 = vmin.f32 %v1158, 5.0
        %v1415 = vmin.f32 %v1159, 5.0
        %v1416 = vmin.f32 %v1160, 5.0
        %v1417 = vmin.f32 %v1161, 5.0
        %v1418 = vmin.f32 %v1162, 5.0
        %v1419 = vmin.f32 %v1163, 5.0
        %v1420 = vmin.f32 %v1164, 5.0
        %v1421 = vmin.f32 %v1165, 5.0
        %v1422 = vmin.f32 %v1166, 5.0
        %v1423 = vmin.f32 %v1167, 5.0
        %v1424 = vmin.f32 %v1168, 5.0
        %v1425 = vmin.f32 %v1169, 5.0
        %v1426 = vmin.f32 %v1170, 5.0
        %v1427 = vmin.f32 %v1171, 5.0
        %v1428 = vmin.f32 %v1172, 5.0
        %v1429 = vmin.f32 %v1173, 5.0
        %v1430 = vmin.f32 %v1174, 5.0
        %v1431 = vmin.f32 %v1175, 5.0
        %v1432 = vmin.f32 %v1176, 5.0
        %v1433 = vmin.f32 %v1177, 5.0
        %v1434 = vmin.f32 %v1178, 5.0
        %v1435 = vmin.f32 %v1179, 5.0
        %v1436 = vmin.f32 %v1180, 5.0
        %v1437 = vmin.f32 %v1181, 5.0
        %v1438 = vmin.f32 %v1182, 5.0
        %v1439 = vmin.f32 %v1183, 5.0
        %v1440 = vmin.f32 %v1184, 5.0
        %v1441 = vmin.f32 %v1185, 5.0
        %v1442 = vmin.f32 %v1186, 5.0
        %v1443 = vmin.f32 %v1187, 5.0
        %v1444 = vmin.f32 %v1188, 5.0
        %v1445 = vmin.f32 %v1189, 5.0
        %v1446 = vmin.f32 %v1190, 5.0
        %v1447 = vmin.f32 %v1191, 5.0
        %v1448 = vmin.f32 %v1192, 5.0
        %v1449 = vmin.f32 %v1193, 5.0
        %v1450 = vmin.f32 %v1194, 5.0
        %v1451 = vmin.f32 %v1195, 5.0
        %v1452 = vmin.f32 %v1196, 5.0
        %v1453 = vmin.f32 %v1197, 5.0
        %v1454 = vmin.f32 %v1198, 5.0
        %v1455 = vmin.f32 %v1199, 5.0
        %v1456 = vmin.f32 %v1200, 5.0
        %v1457 = vmin.f32 %v1201, 5.0
        %v1458 = vmin.f32 %v1202, 5.0
        %v1459 = vmin.f32 %v1203, 5.0
        %v1460 = vmin.f32 %v1204, 5.0
        %v1461 = vmin.f32 %v1205, 5.0
        %v1462 = vmin.f32 %v1206, 5.0
        %v1463 = vmin.f32 %v1207, 5.0
        %v1464 = vmin.f32 %v1208, 5.0
        %v1465 = vmin.f32 %v1209, 5.0
        %v1466 = vmin.f32 %v1210, 5.0
        %v1467 = vmin.f32 %v1211, 5.0
        %v1468 = vmin.f32 %v1212, 5.0
        %v1469 = vmin.f32 %v1213, 5.0
        %v1470 = vmin.f32 %v1214, 5.0
        %v1471 = vmin.f32 %v1215, 5.0
        %v1472 = vmin.f32 %v1216, 5.0
        %v1473 = vmin.f32 %v1217, 5.0
        %v1474 = vmin.f32 %v1218, 5.0
        %v1475 = vmin.f32 %v1219, 5.0
        %v1476 = vmin.f32 %v1220, 5.0
        %v1477 = vmin.f32 %v1221, 5.0
        %v1478 = vmin.f32 %v1222, 5.0
        %v1479 = vmin.f32 %v1223, 5.0
        %v1480 = vmin.f32 %v1224, 5.0
        %v1481 = vmin.f32 %v1225, 5.0
        %v1482 = vmin.f32 %v1226, 5.0
        %v1483 = vmin.f32 %v1227, 5.0
        %v1484 = vmin.f32 %v1228, 5.0
        %v1485 = vmin.f32 %v1229, 5.0
        %v1486 = vmin.f32 %v1230, 5.0
        %v1487 = vmin.f32 %v1231, 5.0
        %v1488 = vmin.f32 %v1232, 5.0
        %v1489 = vmin.f32 %v1233, 5.0
        %v1490 = vmin.f32 %v1234, 5.0
        %v1491 = vmin.f32 %v1235, 5.0
        %v1492 = vmin.f32 %v1236, 5.0
        %v1493 = vmin.f32 %v1237, 5.0
        %v1494 = vmin.f32 %v1238, 5.0
        %v1495 = vmin.f32 %v1239, 5.0
        %v1496 = vmin.f32 %v1240, 5.0
        %v1497 = vmin.f32 %v1241, 5.0
        %v1498 = vmin.f32 %v1242, 5.0
        %v1499 = vmin.f32 %v1243, 5.0
        %v1500 = vmin.f32 %v1244, 5.0
        %v1501 = vmin.f32 %v1245, 5.0
        %v1502 = vmin.f32 %v1246, 5.0
        %v1503 = vmin.f32 %v1247, 5.0
        %v1504 = vmin.f32 %v1248, 5.0
        %v1505 = vmin.f32 %v1249, 5.0
        %v1506 = vmin.f32 %v1250, 5.0
        %v1507 = vmin.f32 %v1251, 5.0
        %v1508 = vmin.f32 %v1252, 5.0
        %v1509 = vmin.f32 %v1253, 5.0
        %v1510 = vmin.f32 %v1254, 5.0
        %v1511 = vmin.f32 %v1255, 5.0
        %v1512 = vmin.f32 %v1256, 5.0
        %v1513 = vmin.f32 %v1257, 5.0
        %v1514 = vmin.f32 %v1258, 5.0
        %v1515 = vmin.f32 %v1259, 5.0
        %v1516 = vmin.f32 %v1260, 5.0
        %v1517 = vmin.f32 %v1261, 5.0
        %v1518 = vmin.f32 %v1262, 5.0
        %v1519 = vmin.f32 %v1263, 5.0
        %v1520 = vmin.f32 %v1264, 5.0
        %v1521 = vmin.f32 %v1265, 5.0
        %v1522 = vmin.f32 %v1266, 5.0
        %v1523 = vmin.f32 %v1267, 5.0
        %v1524 = vmin.f32 %v1268, 5.0
        %v1525 = vmin.f32 %v1269, 5.0
        %v1526 = vmin.f32 %v1270, 5.0
        %v1527 = vmin.f32 %v1271, 5.0
        %v1528 = vmin.f32 %v1272, 5.0
        %v1529 = vmin.f32 %v1273, 5.0
        %v1530 = vmul.f32 %v1274, 0.5
        %v1531 = vmul.f32 %v1275, 0.5
        %v1532 = vmul.f32 %v1276, 0.5
        %v1533 = vmul.f32 %v1277, 0.5
        %v1534 = vmul.f32 %v1278, 0.5
        %v1535 = vmul.f32 %v1279, 0.5
        %v1536 = vmul.f32 %v1280, 0.5
        %v1537 = vmul.f32 %v1281, 0.5
        %v1538 = vmul.f32 %v1282, 0.5
        %v1539 = vmul.f32 %v1283, 0.5
        %v1540 = vmul.f32 %v1284, 0.5
        %v1541 = vmul.f32 %v1285, 0.5
        %v1542 = vmul.f32 %v1286, 0.5
        %v1543 = vmul.f32 %v1287, 0.5
        %v1544 = vmul.f32 %v1288, 0.5
        %v1545 = vmul.f32 %v1289, 0.5
        %v1546 = vmul.f32 %v1290, 0.5
        %v1547 = vmul.f32 %v1291, 0.5
        %v1548 = vmul.f32 %v1292, 0.5
        %v1549 = vmul.f32 %v1293, 0.5
        %v1550 = vmul.f32 %v1294, 0.5
        %v1551 = vmul.f32 %v1295, 0.5
        %v1552 = vmul.f32 %v1296, 0.5
        %v1553 = vmul.f32 %v1297, 0.5
        %v1554 = vmul.f32 %v1298, 0.5
        %v1555 = vmul.f32 %v1299, 0.5
        %v1556 = vmul.f32 %v1300, 0.5
        %v1557 = vmul.f32 %v1301, 0.5
        %v1558 = vmul.f32 %v1302, 0.5
        %v1559 = vmul.f32 %v1303, 0.5
        %v1560 = vmul.f32 %v1304, 0.5
        %v1561 = vmul.f32 %v1305, 0.5
        %v1562 = vmul.f32 %v1306, 0.5
        %v1563 = vmul.f32 %v1307, 0.5
        %v1564 = vmul.f32 %v1308, 0.5
        %v1565 = vmul.f32 %v1309, 0.5
        %v1566 = vmul.f32 %v1310, 0.5
        %v1567 = vmul.f32 %v1311, 0.5
        %v1568 = vmul.f32 %v1312, 0.5
        %v1569 = vmul.f32 %v1313, 0.5
        %v1570 = vmul.f32 %v1314, 0.5
        %v1571 = vmul.f32 %v1315, 0.5
        %v1572 = vmul.f32 %v1316, 0.5
        %v1573 = vmul.f32 %v1317, 0.5
        %v1574 = vmul.f32 %v1318, 0.5
        %v1575 = vmul.f32 %v1319, 0.5
        %v1576 = vmul.f32 %v1320, 0.5
        %v1577 = vmul.f32 %v1321, 0.5
        %v1578 = vmul.f32 %v1322, 0.5
        %v1579 = vmul.f32 %v1323, 0.5
        %v1580 = vmul.f32 %v1324, 0.5
        %v1581 = vmul.f32 %v1325, 0.5
        %v1582 = vmul.f32 %v1326, 0.5
        %v1583 = vmul.f32 %v1327, 0.5
        %v1584 = vmul.f32 %v1328, 0.5
        %v1585 = vmul.f32 %v1329, 0.5
        %v1586 = vmul.f32 %v1330, 0.5
        %v1587 = vmul.f32 %v1331, 0.5
        %v1588 = vmul.f32 %v1332, 0.5
        %v1589 = vmul.f32 %v1333, 0.5
        %v1590 = vmul.f32 %v1334, 0.5
        %v1591 = vmul.f32 %v1335, 0.5
        %v1592 = vmul.f32 %v1336, 0.5
        %v1593 = vmul.f32 %v1337, 0.5
        %v1594 = vmul.f32 %v1338, 0.5
        %v1595 = vmul.f32 %v1339, 0.5
        %v1596 = vmul.f32 %v1340, 0.5
        %v1597 = vmul.f32 %v1341, 0.5
        %v1598 = vmul.f32 %v1342, 0.5
        %v1599 = vmul.f32 %v1343, 0.5
        %v1600 = vmul.f32 %v1344, 0.5
        %v1601 = vmul.f32 %v1345, 0.5
        %v1602 = vmul.f32 %v1346, 0.5
        %v1603 = vmul.f32 %v1347, 0.5
        %v1604 = vmul.f32 %v1348, 0.5
        %v1605 = vmul.f32 %v1349, 0.5
        %v1606 = vmul.f32 %v1350, 0.5
        %v1607 = vmul.f32 %v1351, 0.5
        %v1608 = vmul.f32 %v1352, 0.5
        %v1609 = vmul.f32 %v1353, 0.5
        %v1610 = vmul.f32 %v1354, 0.5
        %v1611 = vmul.f32 %v1355, 0.5
        %v1612 = vmul.f32 %v1356, 0.5
        %v1613 = vmul.f32 %v1357, 0.5
        %v1614 = vmul.f32 %v1358, 0.5
        %v1615 = vmul.f32 %v1359, 0.5
        %v1616 = vmul.f32 %v1360, 0.5
        %v1617 = vmul.f32 %v1361, 0.5
        %v1618 = vmul.f32 %v1362, 0.5
        %v1619 = vmul.f32 %v1363, 0.5
        %v1620 = vmul.f32 %v1364, 0.5
        %v1621 = vmul.f32 %v1365, 0.5
        %v1622 = vmul.f32 %v1366, 0.5
        %v1623 = vmul.f32 %v1367, 0.5
        %v1624 = vmul.f32 %v1368, 0.5
        %v1625 = vmul.f32 %v1369, 0.5
        %v1626 = vmul.f32 %v1370, 0.5
        %v1627 = vmul.f32 %v1371, 0.5
        %v1628 = vmul.f32 %v1372, 0.5
        %v1629 = vmul.f32 %v1373, 0.5
        %v1630 = vmul.f32 %v1374, 0.5
        %v1631 = vmul.f32 %v1375, 0.5
        %v1632 = vmul.f32 %v1376, 0.5
        %v1633 = vmul.f32 %v1377, 0.5
        %v1634 = vmul.f32 %v1378, 0.5
        %v1635 = vmul.f32 %v1379, 0.5
        %v1636 = vmul.f32 %v1380, 0.5
        %v1637 = vmul.f32 %v1381, 0.5
        %v1638 = vmul.f32 %v1382, 0.5
        %v1639 = vmul.f32 %v1383, 0.5
        %v1640 = vmul.f32 %v1384, 0.5
        %v1641 = vmul.f32 %v1385, 0.5
        %v1642 = vmul.f32 %v1386, 0.5
        %v1643 = vmul.f32 %v1387, 0.5
        %v1644 = vmul.f32 %v1388, 0.5
        %v1645 = vmul.f32 %v1389, 0.5
        %v1646 = vmul.f32 %v1390, 0.5
        %v1647 = vmul.f32 %v1391, 0.5
        %v1648 = vmul.f32 %v1392, 0.5
        %v1649 = vmul.f32 %v1393, 0.5
        %v1650 = vmul.f32 %v1394, 0.5
        %v1651 = vmul.f32 %v1395, 0.5
        %v1652 = vmul.f32 %v1396, 0.5
        %v1653 = vmul.f32 %v1397, 0.5
        %v1654 = vmul.f32 %v1398, 0.5
        %v1655 = vmul.f32 %v1399, 0.5
        %v1656 = vmul.f32 %v1400, 0.5
        %v1657 = vmul.f32 %v1401, 0.5
        %v1658 = vmul.f32 %v1402, 0.5
        %v1659 = vmul.f32 %v1403, 0.5
        %v1660 = vmul.f32 %v1404, 0.5
        %v1661 = vmul.f32 %v1405, 0.5
        %v1662 = vmul.f32 %v1406, 0.5
        %v1663 = vmul.f32 %v1407, 0.5
        %v1664 = vmul.f32 %v1408, 0.5
        %v1665 = vmul.f32 %v1409, 0.5
        %v1666 = vmul.f32 %v1410, 0.5
        %v1667 = vmul.f32 %v1411, 0.5
        %v1668 = vmul.f32 %v1412, 0.5
        %v1669 = vmul.f32 %v1413, 0.5
        %v1670 = vmul.f32 %v1414, 0.5
        %v1671 = vmul.f32 %v1415, 0.5
        %v1672 = vmul.f32 %v1416, 0.5
        %v1673 = vmul.f32 %v1417, 0.5
        %v1674 = vmul.f32 %v1418, 0.5
        %v1675 = vmul.f32 %v1419, 0.5
        %v1676 = vmul.f32 %v1420, 0.5
        %v1677 = vmul.f32 %v1421, 0.5
        %v1678 = vmul.f32 %v1422, 0.5
        %v1679 = vmul.f32 %v1423, 0.5
        %v1680 = vmul.f32 %v1424, 0.5
        %v1681 = vmul.f32 %v1425, 0.5
        %v1682 = vmul.f32 %v1426, 0.5
        %v1683 = vmul.f32 %v1427, 0.5
        %v1684 = vmul.f32 %v1428, 0.5
        %v1685 = vmul.f32 %v1429, 0.5
        %v1686 = vmul.f32 %v1430, 0.5
        %v1687 = vmul.f32 %v1431, 0.5
        %v1688 = vmul.f32 %v1432, 0.5
        %v1689 = vmul.f32 %v1433, 0.5
        %v1690 = vmul.f32 %v1434, 0.5
        %v1691 = vmul.f32 %v1435, 0.5
        %v1692 = vmul.f32 %v1436, 0.5
        %v1693 = vmul.f32 %v1437, 0.5
        %v1694 = vmul.f32 %v1438, 0.5
        %v1695 = vmul.f32 %v1439, 0.5
        %v1696 = vmul.f32 %v1440, 0.5
        %v1697 = vmul.f32 %v1441, 0.5
        %v1698 = vmul.f32 %v1442, 0.5
        %v1699 = vmul.f32 %v1443, 0.5
        %v1700 = vmul.f32 %v1444, 0.5
        %v1701 = vmul.f32 %v1445, 0.5
        %v1702 = vmul.f32 %v1446, 0.5
        %v1703 = vmul.f32 %v1447, 0.5
        %v1704 = vmul.f32 %v1448, 0.5
        %v1705 = vmul.f32 %v1449, 0.5
        %v1706 = vmul.f32 %v1450, 0.5
        %v1707 = vmul.f32 %v1451, 0.5
        %v1708 = vmul.f32 %v1452, 0.5
        %v1709 = vmul.f32 %v1453, 0.5
        %v1710 = vmul.f32 %v1454, 0.5
        %v1711 = vmul.f32 %v1455, 0.5
        %v1712 = vmul.f32 %v1456, 0.5
        %v1713 = vmul.f32 %v1457, 0.5
        %v1714 = vmul.f32 %v1458, 0.5
        %v1715 = vmul.f32 %v1459, 0.5
        %v1716 = vmul.f32 %v1460, 0.5
        %v1717 = vmul.f32 %v1461, 0.5
        %v1718 = vmul.f32 %v1462, 0.5
        %v1719 = vmul.f32 %v1463, 0.5
        %v1720 = vmul.f32 %v1464, 0.5
        %v1721 = vmul.f32 %v1465, 0.5
        %v1722 = vmul.f32 %v1466, 0.5
        %v1723 = vmul.f32 %v1467, 0.5
        %v1724 = vmul.f32 %v1468, 0.5
        %v1725 = vmul.f32 %v1469, 0.5
        %v1726 = vmul.f32 %v1470, 0.5
        %v1727 = vmul.f32 %v1471, 0.5
        %v1728 = vmul.f32 %v1472, 0.5
        %v1729 = vmul.f32 %v1473, 0.5
        %v1730 = vmul.f32 %v1474, 0.5
        %v1731 = vmul.f32 %v1475, 0.5
        %v1732 = vmul.f32 %v1476, 0.5
        %v1733 = vmul.f32 %v1477, 0.5
        %v1734 = vmul.f32 %v1478, 0.5
        %v1735 = vmul.f32 %v1479, 0.5
        %v1736 = vmul.f32 %v1480, 0.5
        %v1737 = vmul.f32 %v1481, 0.5
        %v1738 = vmul.f32 %v1482, 0.5
        %v1739 = vmul.f32 %v1483, 0.5
        %v1740 = vmul.f32 %v1484, 0.5
        %v1741 = vmul.f32 %v1485, 0.5
        %v1742 = vmul.f32 %v1486, 0.5
        %v1743 = vmul.f32 %v1487, 0.5
        %v1744 = vmul.f32 %v1488, 0.5
        %v1745 = vmul.f32 %v1489, 0.5
        %v1746 = vmul.f32 %v1490, 0.5
        %v1747 = vmul.f32 %v1491, 0.5
        %v1748 = vmul.f32 %v1492, 0.5
        %v1749 = vmul.f32 %v1493, 0.5
        %v1750 = vmul.f32 %v1494, 0.5
        %v1751 = vmul.f32 %v1495, 0.5
        %v1752 = vmul.f32 %v1496, 0.5
        %v1753 = vmul.f32 %v1497, 0.5
        %v1754 = vmul.f32 %v1498, 0.5
        %v1755 = vmul.f32 %v1499, 0.5
        %v1756 = vmul.f32 %v1500, 0.5
        %v1757 = vmul.f32 %v1501, 0.5
        %v1758 = vmul.f32 %v1502, 0.5
        %v1759 = vmul.f32 %v1503, 0.5
        %v1760 = vmul.f32 %v1504, 0.5
        %v1761 = vmul.f32 %v1505, 0.5
        %v1762 = vmul.f32 %v1506, 0.5
        %v1763 = vmul.f32 %v1507, 0.5
        %v1764 = vmul.f32 %v1508, 0.5
        %v1765 = vmul.f32 %v1509, 0.5
        %v1766 = vmul.f32 %v1510, 0.5
        %v1767 = vmul.f32 %v1511, 0.5
        %v1768 = vmul.f32 %v1512, 0.5
        %v1769 = vmul.f32 %v1513, 0.5
        %v1770 = vmul.f32 %v1514, 0.5
        %v1771 = vmul.f32 %v1515, 0.5
        %v1772 = vmul.f32 %v1516, 0.5
        %v1773 = vmul.f32 %v1517, 0.5
        %v1774 = vmul.f32 %v1518, 0.5
        %v1775 = vmul.f32 %v1519, 0.5
        %v1776 = vmul.f32 %v1520, 0.5
        %v1777 = vmul.f32 %v1521, 0.5
        %v1778 = vmul.f32 %v1522, 0.5
        %v1779 = vmul.f32 %v1523, 0.5
        %v1780 = vmul.f32 %v1524, 0.5
        %v1781 = vmul.f32 %v1525, 0.5
        %v1782 = vmul.f32 %v1526, 0.5
        %v1783 = vmul.f32 %v1527, 0.5
        %v1784 = vmul.f32 %v1528, 0.5
        %v1785 = vmul.f32 %v1529, 0.5
        %v1786 = vsub.f32 %v1018, %v1530
        %v1787 = vsub.f32 %v1019, %v1531
        %v1788 = vsub.f32 %v1020, %v1532
        %v1789 = vsub.f32 %v1021, %v1533
        %v1790 = vsub.f32 %v1022, %v1534
        %v1791 = vsub.f32 %v1023, %v1535
        %v1792 = vsub.f32 %v1024, %v1536
        %v1793 = vsub.f32 %v1025, %v1537
        %v1794 = vsub.f32 %v1026, %v1538
        %v1795 = vsub.f32 %v1027, %v1539
        %v1796 = vsub.f32 %v1028, %v1540
        %v1797 = vsub.f32 %v1029, %v1541
        %v1798 = vsub.f32 %v1030, %v1542
        %v1799 = vsub.f32 %v1031, %v1543
        %v1800 = vsub.f32 %v1032, %v1544
        %v1801 = vsub.f32 %v1033, %v1545
        %v1802 = vsub.f32 %v1034, %v1546
        %v1803 = vsub.f32 %v1035, %v1547
        %v1804 = vsub.f32 %v1036, %v1548
        %v1805 = vsub.f32 %v1037, %v1549
        %v1806 = vsub.f32 %v1038, %v1550
        %v1807 = vsub.f32 %v1039, %v1551
        %v1808 = vsub.f32 %v1040, %v1552
        %v1809 = vsub.f32 %v1041, %v1553
        %v1810 = vsub.f32 %v1042, %v1554
        %v1811 = vsub.f32 %v1043, %v1555
        %v1812 = vsub.f32 %v1044, %v1556
        %v1813 = vsub.f32 %v1045, %v1557
        %v1814 = vsub.f32 %v1046, %v1558
        %v1815 = vsub.f32 %v1047, %v1559
        %v1816 = vsub.f32 %v1048, %v1560
        %v1817 = vsub.f32 %v1049, %v1561
        %v1818 = vsub.f32 %v1050, %v1562
        %v1819 = vsub.f32 %v1051, %v1563
        %v1820 = vsub.f32 %v1052, %v1564
        %v1821 = vsub.f32 %v1053, %v1565
        %v1822 = vsub.f32 %v1054, %v1566
        %v1823 = vsub.f32 %v1055, %v1567
        %v1824 = vsub.f32 %v1056, %v1568
        %v1825 = vsub.f32 %v1057, %v1569
        %v1826 = vsub.f32 %v1058, %v1570
        %v1827 = vsub.f32 %v1059, %v1571
        %v1828 = vsub.f32 %v1060, %v1572
        %v1829 = vsub.f32 %v1061, %v1573
        %v1830 = vsub.f32 %v1062, %v1574
        %v1831 = vsub.f32 %v1063, %v1575
        %v1832 = vsub.f32 %v1064, %v1576
        %v1833 = vsub.f32 %v1065, %v1577
        %v1834 = vsub.f32 %v1066, %v1578
        %v1835 = vsub.f32 %v1067, %v1579
        %v1836 = vsub.f32 %v1068, %v1580
        %v1837 = vsub.f32 %v1069, %v1581
        %v1838 = vsub.f32 %v1070, %v1582
        %v1839 = vsub.f32 %v1071, %v1583
        %v1840 = vsub.f32 %v1072, %v1584
        %v1841 = vsub.f32 %v1073, %v1585
        %v1842 = vsub.f32 %v1074, %v1586
        %v1843 = vsub.f32 %v1075, %v1587
        %v1844 = vsub.f32 %v1076, %v1588
        %v1845 = vsub.f32 %v1077, %v1589
        %v1846 = vsub.f32 %v1078, %v1590
        %v1847 = vsub.f32 %v1079, %v1591
        %v1848 = vsub.f32 %v1080, %v1592
        %v1849 = vsub.f32 %v1081, %v1593
        %v1850 = vsub.f32 %v1082, %v1594
        %v1851 = vsub.f32 %v1083, %v1595
        %v1852 = vsub.f32 %v1084, %v1596
        %v1853 = vsub.f32 %v1085, %v1597
        %v1854 = vsub.f32 %v1086, %v1598
        %v1855 = vsub.f32 %v1087, %v1599
        %v1856 = vsub.f32 %v1088, %v1600
        %v1857 = vsub.f32 %v1089, %v1601
        %v1858 = vsub.f32 %v1090, %v1602
        %v1859 = vsub.f32 %v1091, %v1603
        %v1860 = vsub.f32 %v1092, %v1604
        %v1861 = vsub.f32 %v1093, %v1605
        %v1862 = vsub.f32 %v1094, %v1606
        %v1863 = vsub.f32 %v1095, %v1607
        %v1864 = vsub.f32 %v1096, %v1608
        %v1865 = vsub.f32 %v1097, %v1609
        %v1866 = vsub.f32 %v1098, %v1610
        %v1867 = vsub.f32 %v1099, %v1611
        %v1868 = vsub.f32 %v1100, %v1612
        %v1869 = vsub.f32 %v1101, %v1613
        %v1870 = vsub.f32 %v1102, %v1614
        %v1871 = vsub.f32 %v1103, %v1615
        %v1872 = vsub.f32 %v1104, %v1616
        %v1873 = vsub.f32 %v1105, %v1617
        %v1874 = vsub.f32 %v1106, %v1618
        %v1875 = vsub.f32 %v1107, %v1619
        %v1876 = vsub.f32 %v1108, %v1620
        %v1877 = vsub.f32 %v1109, %v1621
        %v1878 = vsub.f32 %v1110, %v1622
        %v1879 = vsub.f32 %v1111, %v1623
        %v1880 = vsub.f32 %v1112, %v1624
        %v1881 = vsub.f32 %v1113, %v1625
        %v1882 = vsub.f32 %v1114, %v1626
        %v1883 = vsub.f32 %v1115, %v1627
        %v1884 = vsub.f32 %v1116, %v1628
        %v1885 = vsub.f32 %v1117, %v1629
        %v1886 = vsub.f32 %v1118, %v1630
        %v1887 = vsub.f32 %v1119, %v1631
        %v1888 = vsub.f32 %v1120, %v1632
        %v1889 = vsub.f32 %v1121, %v1633
        %v1890 = vsub.f32 %v1122, %v1634
        %v1891 = vsub.f32 %v1123, %v1635
        %v1892 = vsub.f32 %v1124, %v1636
        %v1893 = vsub.f32 %v1125, %v1637
        %v1894 = vsub.f32 %v1126, %v1638
        %v1895 = vsub.f32 %v1127, %v1639
        %v1896 = vsub.f32 %v1128, %v1640
        %v1897 = vsub.f32 %v1129, %v1641
        %v1898 = vsub.f32 %v1130, %v1642
        %v1899 = vsub.f32 %v1131, %v1643
        %v1900 = vsub.f32 %v1132, %v1644
        %v1901 = vsub.f32 %v1133, %v1645
        %v1902 = vsub.f32 %v1134, %v1646
        %v1903 = vsub.f32 %v1135, %v1647
        %v1904 = vsub.f32 %v1136, %v1648
        %v1905 = vsub.f32 %v1137, %v1649
        %v1906 = vsub.f32 %v1138, %v1650
        %v1907 = vsub.f32 %v1139, %v1651
        %v1908 = vsub.f32 %v1140, %v1652
        %v1909 = vsub.f32 %v1141, %v1653
        %v1910 = vsub.f32 %v1142, %v1654
        %v1911 = vsub.f32 %v1143, %v1655
        %v1912 = vsub.f32 %v1144, %v1656
        %v1913 = vsub.f32 %v1145, %v1657
        %v1914 = vsub.f32 %v1146, %v1658
        %v1915 = vsub.f32 %v1147, %v1659
        %v1916 = vsub.f32 %v1148, %v1660
        %v1917 = vsub.f32 %v1149, %v1661
        %v1918 = vsub.f32 %v1150, %v1662
        %v1919 = vsub.f32 %v1151, %v1663
        %v1920 = vsub.f32 %v1152, %v1664
        %v1921 = vsub.f32 %v1153, %v1665
        %v1922 = vsub.f32 %v1154, %v1666
        %v1923 = vsub.f32 %v1155, %v1667
        %v1924 = vsub.f32 %v1156, %v1668
        %v1925 = vsub.f32 %v1157, %v1669
        %v1926 = vsub.f32 %v1158, %v1670
        %v1927 = vsub.f32 %v1159, %v1671
        %v1928 = vsub.f32 %v1160, %v1672
        %v1929 = vsub.f32 %v1161, %v1673
        %v1930 = vsub.f32 %v1162, %v1674
        %v1931 = vsub.f32 %v1163, %v1675
        %v1932 = vsub.f32 %v1164, %v1676
        %v1933 = vsub.f32 %v1165, %v1677
        %v1934 = vsub.f32 %v1166, %v1678
        %v1935 = vsub.f32 %v1167, %v1679
        %v1936 = vsub.f32 %v1168, %v1680
        %v1937 = vsub.f32 %v1169, %v1681
        %v1938 = vsub.f32 %v1170, %v1682
        %v1939 = vsub.f32 %v1171, %v1683
        %v1940 = vsub.f32 %v1172, %v1684
        %v1941 = vsub.f32 %v1173, %v1685
        %v1942 = vsub.f32 %v1174, %v1686
        %v1943 = vsub.f32 %v1175, %v1687
        %v1944 = vsub.f32 %v1176, %v1688
        %v1945 = vsub.f32 %v1177, %v1689
        %v1946 = vsub.f32 %v1178, %v1690
        %v1947 = vsub.f32 %v1179, %v1691
        %v1948 = vsub.f32 %v1180, %v1692
        %v1949 = vsub.f32 %v1181, %v1693
        %v1950 = vsub.f32 %v1182, %v1694
        %v1951 = vsub.f32 %v1183, %v1695
        %v1952 = vsub.f32 %v1184, %v1696
        %v1953 = vsub.f32 %v1185, %v1697
        %v1954 = vsub.f32 %v1186, %v1698
        %v1955 = vsub.f32 %v1187, %v1699
        %v1956 = vsub.f32 %v1188, %v1700
        %v1957 = vsub.f32 %v1189, %v1701
        %v1958 = vsub.f32 %v1190, %v1702
        %v1959 = vsub.f32 %v1191, %v1703
        %v1960 = vsub.f32 %v1192, %v1704
        %v1961 = vsub.f32 %v1193, %v1705
        %v1962 = vsub.f32 %v1194, %v1706
        %v1963 = vsub.f32 %v1195, %v1707
        %v1964 = vsub.f32 %v1196, %v1708
        %v1965 = vsub.f32 %v1197, %v1709
        %v1966 = vsub.f32 %v1198, %v1710
        %v1967 = vsub.f32 %v1199, %v1711
        %v1968 = vsub.f32 %v1200, %v1712
        %v1969 = vsub.f32 %v1201, %v1713
        %v1970 = vsub.f32 %v1202, %v1714
        %v1971 = vsub.f32 %v1203, %v1715
        %v1972 = vsub.f32 %v1204, %v1716
        %v1973 = vsub.f32 %v1205, %v1717
        %v1974 = vsub.f32 %v1206, %v1718
        %v1975 = vsub.f32 %v1207, %v1719
        %v1976 = vsub.f32 %v1208, %v1720
        %v1977 = vsub.f32 %v1209, %v1721
        %v1978 = vsub.f32 %v1210, %v1722
        %v1979 = vsub.f32 %v1211, %v1723
        %v1980 = vsub.f32 %v1212, %v1724
        %v1981 = vsub.f32 %v1213, %v1725
        %v1982 = vsub.f32 %v1214, %v1726
        %v1983 = vsub.f32 %v1215, %v1727
        %v1984 = vsub.f32 %v1216, %v1728
        %v1985 = vsub.f32 %v1217, %v1729
        %v1986 = vsub.f32 %v1218, %v1730
        %v1987 = vsub.f32 %v1219, %v1731
        %v1988 = vsub.f32 %v1220, %v1732
        %v1989 = vsub.f32 %v1221, %v1733
        %v1990 = vsub.f32 %v1222, %v1734
        %v1991 = vsub.f32 %v1223, %v1735
        %v1992 = vsub.f32 %v1224, %v1736
        %v1993 = vsub.f32 %v1225, %v1737
        %v1994 = vsub.f32 %v1226, %v1738
        %v1995 = vsub.f32 %v1227, %v1739
        %v1996 = vsub.f32 %v1228, %v1740
        %v1997 = vsub.f32 %v1229, %v1741
        %v1998 = vsub.f32 %v1230, %v1742
        %v1999 = vsub.f32 %v1231, %v1743
        %v2000 = vsub.f32 %v1232, %v1744
        %v2001 = vsub.f32 %v1233, %v1745
        %v2002 = vsub.f32 %v1234, %v1746
        %v2003 = vsub.f32 %v1235, %v1747
        %v2004 = vsub.f32 %v1236, %v1748
        %v2005 = vsub.f32 %v1237, %v1749
        %v2006 = vsub.f32 %v1238, %v1750
        %v2007 = vsub.f32 %v1239, %v1751
        %v2008 = vsub.f32 %v1240, %v1752
        %v2009 = vsub.f32 %v1241, %v1753
        %v2010 = vsub.f32 %v1242, %v1754
        %v2011 = vsub.f32 %v1243, %v1755
        %v2012 = vsub.f32 %v1244, %v1756
        %v2013 = vsub.f32 %v1245, %v1757
        %v2014 = vsub.f32 %v1246, %v1758
        %v2015 = vsub.f32 %v1247, %v1759
        %v2016 = vsub.f32 %v1248, %v1760
        %v2017 = vsub.f32 %v1249, %v1761
        %v2018 = vsub.f32 %v1250, %v1762
        %v2019 = vsub.f32 %v1251, %v1763
        %v2020 = vsub.f32 %v1252, %v1764
        %v2021 = vsub.f32 %v1253, %v1765
        %v2022 = vsub.f32 %v1254, %v1766
        %v2023 = vsub.f32 %v1255, %v1767
        %v2024 = vsub.f32 %v1256, %v1768
        %v2025 = vsub.f32 %v1257, %v1769
        %v2026 = vsub.f32 %v1258, %v1770
        %v2027 = vsub.f32 %v1259, %v1771
        %v2028 = vsub.f32 %v1260, %v1772
        %v2029 = vsub.f32 %v1261, %v1773
        %v2030 = vsub.f32 %v1262, %v1774
        %v2031 = vsub.f32 %v1263, %v1775
        %v2032 = vsub.f32 %v1264, %v1776
        %v2033 = vsub.f32 %v1265, %v1777
        %v2034 = vsub.f32 %v1266, %v1778
        %v2035 = vsub.f32 %v1267, %v1779
        %v2036 = vsub.f32 %v1268, %v1780
        %v2037 = vsub.f32 %v1269, %v1781
        %v2038 = vsub.f32 %v1270, %v1782
        %v2039 = vsub.f32 %v1271, %v1783
        %v2040 = vsub.f32 %v1272, %v1784
        %v2041 = vsub.f32 %v1273, %v1785
        %v2042 = vmul.f32 %v1274, %v1786
        %v2043 = vmul.f32 %v1275, %v1787
        %v2044 = vmul.f32 %v1276, %v1788
        %v2045 = vmul.f32 %v1277, %v1789
        %v2046 = vmul.f32 %v1278, %v1790
        %v2047 = vmul.f32 %v1279, %v1791
        %v2048 = vmul.f32 %v1280, %v1792
        %v2049 = vmul.f32 %v1281, %v1793
        %v2050 = vmul.f32 %v1282, %v1794
        %v2051 = vmul.f32 %v1283, %v1795
        %v2052 = vmul.f32 %v1284, %v1796
        %v2053 = vmul.f32 %v1285, %v1797
        %v2054 = vmul.f32 %v1286, %v1798
        %v2055 = vmul.f32 %v1287, %v1799
        %v2056 = vmul.f32 %v1288, %v1800
        %v2057 = vmul.f32 %v1289, %v1801
        %v2058 = vmul.f32 %v1290, %v1802
        %v2059 = vmul.f32 %v1291, %v1803
        %v2060 = vmul.f32 %v1292, %v1804
        %v2061 = vmul.f32 %v1293, %v1805
        %v2062 = vmul.f32 %v1294, %v1806
        %v2063 = vmul.f32 %v1295, %v1807
        %v2064 = vmul.f32 %v1296, %v1808
        %v2065 = vmul.f32 %v1297, %v1809
        %v2066 = vmul.f32 %v1298, %v1810
        %v2067 = vmul.f32 %v1299, %v1811
        %v2068 = vmul.f32 %v1300, %v1812
        %v2069 = vmul.f32 %v1301, %v1813
        %v2070 = vmul.f32 %v1302, %v1814
        %v2071 = vmul.f32 %v1303, %v1815
        %v2072 = vmul.f32 %v1304, %v1816
        %v2073 = vmul.f32 %v1305, %v1817
        %v2074 = vmul.f32 %v1306, %v1818
        %v2075 = vmul.f32 %v1307, %v1819
        %v2076 = vmul.f32 %v1308, %v1820
        %v2077 = vmul.f32 %v1309, %v1821
        %v2078 = vmul.f32 %v1310, %v1822
        %v2079 = vmul.f32 %v1311, %v1823
        %v2080 = vmul.f32 %v1312, %v1824
        %v2081 = vmul.f32 %v1313, %v1825
        %v2082 = vmul.f32 %v1314, %v1826
        %v2083 = vmul.f32 %v1315, %v1827
        %v2084 = vmul.f32 %v1316, %v1828
        %v2085 = vmul.f32 %v1317, %v1829
        %v2086 = vmul.f32 %v1318, %v1830
        %v2087 = vmul.f32 %v1319, %v1831
        %v2088 = vmul.f32 %v1320, %v1832
        %v2089 = vmul.f32 %v1321, %v1833
        %v2090 = vmul.f32 %v1322, %v1834
        %v2091 = vmul.f32 %v1323, %v1835
        %v2092 = vmul.f32 %v1324, %v1836
        %v2093 = vmul.f32 %v1325, %v1837
        %v2094 = vmul.f32 %v1326, %v1838
        %v2095 = vmul.f32 %v1327, %v1839
        %v2096 = vmul.f32 %v1328, %v1840
        %v2097 = vmul.f32 %v1329, %v1841
        %v2098 = vmul.f32 %v1330, %v1842
        %v2099 = vmul.f32 %v1331, %v1843
        %v2100 = vmul.f32 %v1332, %v1844
        %v2101 = vmul.f32 %v1333, %v1845
        %v2102 = vmul.f32 %v1334, %v1846
        %v2103 = vmul.f32 %v1335, %v1847
        %v2104 = vmul.f32 %v1336, %v1848
        %v2105 = vmul.f32 %v1337, %v1849
        %v2106 = vmul.f32 %v1338, %v1850
        %v2107 = vmul.f32 %v1339, %v1851
        %v2108 = vmul.f32 %v1340, %v1852
        %v2109 = vmul.f32 %v1341, %v1853
        %v2110 = vmul.f32 %v1342, %v1854
        %v2111 = vmul.f32 %v1343, %v1855
        %v2112 = vmul.f32 %v1344, %v1856
        %v2113 = vmul.f32 %v1345, %v1857
        %v2114 = vmul.f32 %v1346, %v1858
        %v2115 = vmul.f32 %v1347, %v1859
        %v2116 = vmul.f32 %v1348, %v1860
        %v2117 = vmul.f32 %v1349, %v1861
        %v2118 = vmul.f32 %v1350, %v1862
        %v2119 = vmul.f32 %v1351, %v1863
        %v2120 = vmul.f32 %v1352, %v1864
        %v2121 = vmul.f32 %v1353, %v1865
        %v2122 = vmul.f32 %v1354, %v1866
        %v2123 = vmul.f32 %v1355, %v1867
        %v2124 = vmul.f32 %v1356, %v1868
        %v2125 = vmul.f32 %v1357, %v1869
        %v2126 = vmul.f32 %v1358, %v1870
        %v2127 = vmul.f32 %v1359, %v1871
        %v2128 = vmul.f32 %v1360, %v1872
        %v2129 = vmul.f32 %v1361, %v1873
        %v2130 = vmul.f32 %v1362, %v1874
        %v2131 = vmul.f32 %v1363, %v1875
        %v2132 = vmul.f32 %v1364, %v1876
        %v2133 = vmul.f32 %v1365, %v1877
        %v2134 = vmul.f32 %v1366, %v1878
        %v2135 = vmul.f32 %v1367, %v1879
        %v2136 = vmul.f32 %v1368, %v1880
        %v2137 = vmul.f32 %v1369, %v1881
        %v2138 = vmul.f32 %v1370, %v1882
        %v2139 = vmul.f32 %v1371, %v1883
        %v2140 = vmul.f32 %v1372, %v1884
        %v2141 = vmul.f32 %v1373, %v1885
        %v2142 = vmul.f32 %v1374, %v1886
        %v2143 = vmul.f32 %v1375, %v1887
        %v2144 = vmul.f32 %v1376, %v1888
        %v2145 = vmul.f32 %v1377, %v1889
        %v2146 = vmul.f32 %v1378, %v1890
        %v2147 = vmul.f32 %v1379, %v1891
        %v2148 = vmul.f32 %v1380, %v1892
        %v2149 = vmul.f32 %v1381, %v1893
        %v2150 = vmul.f32 %v1382, %v1894
        %v2151 = vmul.f32 %v1383, %v1895
        %v2152 = vmul.f32 %v1384, %v1896
        %v2153 = vmul.f32 %v1385, %v1897
        %v2154 = vmul.f32 %v1386, %v1898
        %v2155 = vmul.f32 %v1387, %v1899
        %v2156 = vmul.f32 %v1388, %v1900
        %v2157 = vmul.f32 %v1389, %v1901
        %v2158 = vmul.f32 %v1390, %v1902
        %v2159 = vmul.f32 %v1391, %v1903
        %v2160 = vmul.f32 %v1392, %v1904
        %v2161 = vmul.f32 %v1393, %v1905
        %v2162 = vmul.f32 %v1394, %v1906
        %v2163 = vmul.f32 %v1395, %v1907
        %v2164 = vmul.f32 %v1396, %v1908
        %v2165 = vmul.f32 %v1397, %v1909
        %v2166 = vmul.f32 %v1398, %v1910
        %v2167 = vmul.f32 %v1399, %v1911
        %v2168 = vmul.f32 %v1400, %v1912
        %v2169 = vmul.f32 %v1401, %v1913
        %v2170 = vmul.f32 %v1402, %v1914
        %v2171 = vmul.f32 %v1403, %v1915
        %v2172 = vmul.f32 %v1404, %v1916
        %v2173 = vmul.f32 %v1405, %v1917
        %v2174 = vmul.f32 %v1406, %v1918
        %v2175 = vmul.f32 %v1407, %v1919
        %v2176 = vmul.f32 %v1408, %v1920
        %v2177 = vmul.f32 %v1409, %v1921
        %v2178 = vmul.f32 %v1410, %v1922
        %v2179 = vmul.f32 %v1411, %v1923
        %v2180 = vmul.f32 %v1412, %v1924
        %v2181 = vmul.f32 %v1413, %v1925
        %v2182 = vmul.f32 %v1414, %v1926
        %v2183 = vmul.f32 %v1415, %v1927
        %v2184 = vmul.f32 %v1416, %v1928
        %v2185 = vmul.f32 %v1417, %v1929
        %v2186 = vmul.f32 %v1418, %v1930
        %v2187 = vmul.f32 %v1419, %v1931
        %v2188 = vmul.f32 %v1420, %v1932
        %v2189 = vmul.f32 %v1421, %v1933
        %v2190 = vmul.f32 %v1422, %v1934
        %v2191 = vmul.f32 %v1423, %v1935
        %v2192 = vmul.f32 %v1424, %v1936
        %v2193 = vmul.f32 %v1425, %v1937
        %v2194 = vmul.f32 %v1426, %v1938
        %v2195 = vmul.f32 %v1427, %v1939
        %v2196 = vmul.f32 %v1428, %v1940
        %v2197 = vmul.f32 %v1429, %v1941
        %v2198 = vmul.f32 %v1430, %v1942
        %v2199 = vmul.f32 %v1431, %v1943
        %v2200 = vmul.f32 %v1432, %v1944
        %v2201 = vmul.f32 %v1433, %v1945
        %v2202 = vmul.f32 %v1434, %v1946
        %v2203 = vmul.f32 %v1435, %v1947
        %v2204 = vmul.f32 %v1436, %v1948
        %v2205 = vmul.f32 %v1437, %v1949
        %v2206 = vmul.f32 %v1438, %v1950
        %v2207 = vmul.f32 %v1439, %v1951
        %v2208 = vmul.f32 %v1440, %v1952
        %v2209 = vmul.f32 %v1441, %v1953
        %v2210 = vmul.f32 %v1442, %v1954
        %v2211 = vmul.f32 %v1443, %v1955
        %v2212 = vmul.f32 %v1444, %v1956
        %v2213 = vmul.f32 %v1445, %v1957
        %v2214 = vmul.f32 %v1446, %v1958
        %v2215 = vmul.f32 %v1447, %v1959
        %v2216 = vmul.f32 %v1448, %v1960
        %v2217 = vmul.f32 %v1449, %v1961
        %v2218 = vmul.f32 %v1450, %v1962
        %v2219 = vmul.f32 %v1451, %v1963
        %v2220 = vmul.f32 %v1452, %v1964
        %v2221 = vmul.f32 %v1453, %v1965
        %v2222 = vmul.f32 %v1454, %v1966
        %v2223 = vmul.f32 %v1455, %v1967
        %v2224 = vmul.f32 %v1456, %v1968
        %v2225 = vmul.f32 %v1457, %v1969
        %v2226 = vmul.f32 %v1458, %v1970
        %v2227 = vmul.f32 %v1459, %v1971
        %v2228 = vmul.f32 %v1460, %v1972
        %v2229 = vmul.f32 %v1461, %v1973
        %v2230 = vmul.f32 %v1462, %v1974
        %v2231 = vmul.f32 %v1463, %v1975
        %v2232 = vmul.f32 %v1464, %v1976
        %v2233 = vmul.f32 %v1465, %v1977
        %v2234 = vmul.f32 %v1466, %v1978
        %v2235 = vmul.f32 %v1467, %v1979
        %v2236 = vmul.f32 %v1468, %v1980
        %v2237 = vmul.f32 %v1469, %v1981
        %v2238 = vmul.f32 %v1470, %v1982
        %v2239 = vmul.f32 %v1471, %v1983
        %v2240 = vmul.f32 %v1472, %v1984
        %v2241 = vmul.f32 %v1473, %v1985
        %v2242 = vmul.f32 %v1474, %v1986
        %v2243 = vmul.f32 %v1475, %v1987
        %v2244 = vmul.f32 %v1476, %v1988
        %v2245 = vmul.f32 %v1477, %v1989
        %v2246 = vmul.f32 %v1478, %v1990
        %v2247 = vmul.f32 %v1479, %v1991
        %v2248 = vmul.f32 %v1480, %v1992
        %v2249 = vmul.f32 %v1481, %v1993
        %v2250 = vmul.f32 %v1482, %v1994
        %v2251 = vmul.f32 %v1483, %v1995
        %v2252 = vmul.f32 %v1484, %v1996
        %v2253 = vmul.f32 %v1485, %v1997
        %v2254 = vmul.f32 %v1486, %v1998
        %v2255 = vmul.f32 %v1487, %v1999
        %v2256 = vmul.f32 %v1488, %v2000
        %v2257 = vmul.f32 %v1489, %v2001
        %v2258 = vmul.f32 %v1490, %v2002
        %v2259 = vmul.f32 %v1491, %v2003
        %v2260 = vmul.f32 %v1492, %v2004
        %v2261 = vmul.f32 %v1493, %v2005
        %v2262 = vmul.f32 %v1494, %v2006
        %v2263 = vmul.f32 %v1495, %v2007
        %v2264 = vmul.f32 %v1496, %v2008
        %v2265 = vmul.f32 %v1497, %v2009
        %v2266 = vmul.f32 %v1498, %v2010
        %v2267 = vmul.f32 %v1499, %v2011
        %v2268 = vmul.f32 %v1500, %v2012
        %v2269 = vmul.f32 %v1501, %v2013
        %v2270 = vmul.f32 %v1502, %v2014
        %v2271 = vmul.f32 %v1503, %v2015
        %v2272 = vmul.f32 %v1504, %v2016
        %v2273 = vmul.f32 %v1505, %v2017
        %v2274 = vmul.f32 %v1506, %v2018
        %v2275 = vmul.f32 %v1507, %v2019
        %v2276 = vmul.f32 %v1508, %v2020
        %v2277 = vmul.f32 %v1509, %v2021
        %v2278 = vmul.f32 %v1510, %v2022
        %v2279 = vmul.f32 %v1511, %v2023
        %v2280 = vmul.f32 %v1512, %v2024
        %v2281 = vmul.f32 %v1513, %v2025
        %v2282 = vmul.f32 %v1514, %v2026
        %v2283 = vmul.f32 %v1515, %v2027
        %v2284 = vmul.f32 %v1516, %v2028
        %v2285 = vmul.f32 %v1517, %v2029
        %v2286 = vmul.f32 %v1518, %v2030
        %v2287 = vmul.f32 %v1519, %v2031
        %v2288 = vmul.f32 %v1520, %v2032
        %v2289 = vmul.f32 %v1521, %v2033
        %v2290 = vmul.f32 %v1522, %v2034
        %v2291 = vmul.f32 %v1523, %v2035
        %v2292 = vmul.f32 %v1524, %v2036
        %v2293 = vmul.f32 %v1525, %v2037
        %v2294 = vmul.f32 %v1526, %v2038
        %v2295 = vmul.f32 %v1527, %v2039
        %v2296 = vmul.f32 %v1528, %v2040
        %v2297 = vmul.f32 %v1529, %v2041
        %v2298 = vmul.f32 %v2042, 0.2
        %v2299 = vmul.f32 %v2043, 0.2
        %v2300 = vmul.f32 %v2044, 0.2
        %v2301 = vmul.f32 %v2045, 0.2
        %v2302 = vmul.f32 %v2046, 0.2
        %v2303 = vmul.f32 %v2047, 0.2
        %v2304 = vmul.f32 %v2048, 0.2
        %v2305 = vmul.f32 %v2049, 0.2
        %v2306 = vmul.f32 %v2050, 0.2
        %v2307 = vmul.f32 %v2051, 0.2
        %v2308 = vmul.f32 %v2052, 0.2
        %v2309 = vmul.f32 %v2053, 0.2
        %v2310 = vmul.f32 %v2054, 0.2
        %v2311 = vmul.f32 %v2055, 0.2
        %v2312 = vmul.f32 %v2056, 0.2
        %v2313 = vmul.f32 %v2057, 0.2
        %v2314 = vmul.f32 %v2058, 0.2
        %v2315 = vmul.f32 %v2059, 0.2
        %v2316 = vmul.f32 %v2060, 0.2
        %v2317 = vmul.f32 %v2061, 0.2
        %v2318 = vmul.f32 %v2062, 0.2
        %v2319 = vmul.f32 %v2063, 0.2
        %v2320 = vmul.f32 %v2064, 0.2
        %v2321 = vmul.f32 %v2065, 0.2
        %v2322 = vmul.f32 %v2066, 0.2
        %v2323 = vmul.f32 %v2067, 0.2
        %v2324 = vmul.f32 %v2068, 0.2
        %v2325 = vmul.f32 %v2069, 0.2
        %v2326 = vmul.f32 %v2070, 0.2
        %v2327 = vmul.f32 %v2071, 0.2
        %v2328 = vmul.f32 %v2072, 0.2
        %v2329 = vmul.f32 %v2073, 0.2
        %v2330 = vmul.f32 %v2074, 0.2
        %v2331 = vmul.f32 %v2075, 0.2
        %v2332 = vmul.f32 %v2076, 0.2
        %v2333 = vmul.f32 %v2077, 0.2
        %v2334 = vmul.f32 %v2078, 0.2
        %v2335 = vmul.f32 %v2079, 0.2
        %v2336 = vmul.f32 %v2080, 0.2
        %v2337 = vmul.f32 %v2081, 0.2
        %v2338 = vmul.f32 %v2082, 0.2
        %v2339 = vmul.f32 %v2083, 0.2
        %v2340 = vmul.f32 %v2084, 0.2
        %v2341 = vmul.f32 %v2085, 0.2
        %v2342 = vmul.f32 %v2086, 0.2
        %v2343 = vmul.f32 %v2087, 0.2
        %v2344 = vmul.f32 %v2088, 0.2
        %v2345 = vmul.f32 %v2089, 0.2
        %v2346 = vmul.f32 %v2090, 0.2
        %v2347 = vmul.f32 %v2091, 0.2
        %v2348 = vmul.f32 %v2092, 0.2
        %v2349 = vmul.f32 %v2093, 0.2
        %v2350 = vmul.f32 %v2094, 0.2
        %v2351 = vmul.f32 %v2095, 0.2
        %v2352 = vmul.f32 %v2096, 0.2
        %v2353 = vmul.f32 %v2097, 0.2
        %v2354 = vmul.f32 %v2098, 0.2
        %v2355 = vmul.f32 %v2099, 0.2
        %v2356 = vmul.f32 %v2100, 0.2
        %v2357 = vmul.f32 %v2101, 0.2
        %v2358 = vmul.f32 %v2102, 0.2
        %v2359 = vmul.f32 %v2103, 0.2
        %v2360 = vmul.f32 %v2104, 0.2
        %v2361 = vmul.f32 %v2105, 0.2
        %v2362 = vmul.f32 %v2106, 0.2
        %v2363 = vmul.f32 %v2107, 0.2
        %v2364 = vmul.f32 %v2108, 0.2
        %v2365 = vmul.f32 %v2109, 0.2
        %v2366 = vmul.f32 %v2110, 0.2
        %v2367 = vmul.f32 %v2111, 0.2
        %v2368 = vmul.f32 %v2112, 0.2
        %v2369 = vmul.f32 %v2113, 0.2
        %v2370 = vmul.f32 %v2114, 0.2
        %v2371 = vmul.f32 %v2115, 0.2
        %v2372 = vmul.f32 %v2116, 0.2
        %v2373 = vmul.f32 %v2117, 0.2
        %v2374 = vmul.f32 %v2118, 0.2
        %v2375 = vmul.f32 %v2119, 0.2
        %v2376 = vmul.f32 %v2120, 0.2
        %v2377 = vmul.f32 %v2121, 0.2
        %v2378 = vmul.f32 %v2122, 0.2
        %v2379 = vmul.f32 %v2123, 0.2
        %v2380 = vmul.f32 %v2124, 0.2
        %v2381 = vmul.f32 %v2125, 0.2
        %v2382 = vmul.f32 %v2126, 0.2
        %v2383 = vmul.f32 %v2127, 0.2
        %v2384 = vmul.f32 %v2128, 0.2
        %v2385 = vmul.f32 %v2129, 0.2
        %v2386 = vmul.f32 %v2130, 0.2
        %v2387 = vmul.f32 %v2131, 0.2
        %v2388 = vmul.f32 %v2132, 0.2
        %v2389 = vmul.f32 %v2133, 0.2
        %v2390 = vmul.f32 %v2134, 0.2
        %v2391 = vmul.f32 %v2135, 0.2
        %v2392 = vmul.f32 %v2136, 0.2
        %v2393 = vmul.f32 %v2137, 0.2
        %v2394 = vmul.f32 %v2138, 0.2
        %v2395 = vmul.f32 %v2139, 0.2
        %v2396 = vmul.f32 %v2140, 0.2
        %v2397 = vmul.f32 %v2141, 0.2
        %v2398 = vmul.f32 %v2142, 0.2
        %v2399 = vmul.f32 %v2143, 0.2
        %v2400 = vmul.f32 %v2144, 0.2
        %v2401 = vmul.f32 %v2145, 0.2
        %v2402 = vmul.f32 %v2146, 0.2
        %v2403 = vmul.f32 %v2147, 0.2
        %v2404 = vmul.f32 %v2148, 0.2
        %v2405 = vmul.f32 %v2149, 0.2
        %v2406 = vmul.f32 %v2150, 0.2
        %v2407 = vmul.f32 %v2151, 0.2
        %v2408 = vmul.f32 %v2152, 0.2
        %v2409 = vmul.f32 %v2153, 0.2
        %v2410 = vmul.f32 %v2154, 0.2
        %v2411 = vmul.f32 %v2155, 0.2
        %v2412 = vmul.f32 %v2156, 0.2
        %v2413 = vmul.f32 %v2157, 0.2
        %v2414 = vmul.f32 %v2158, 0.2
        %v2415 = vmul.f32 %v2159, 0.2
        %v2416 = vmul.f32 %v2160, 0.2
        %v2417 = vmul.f32 %v2161, 0.2
        %v2418 = vmul.f32 %v2162, 0.2
        %v2419 = vmul.f32 %v2163, 0.2
        %v2420 = vmul.f32 %v2164, 0.2
        %v2421 = vmul.f32 %v2165, 0.2
        %v2422 = vmul.f32 %v2166, 0.2
        %v2423 = vmul.f32 %v2167, 0.2
        %v2424 = vmul.f32 %v2168, 0.2
        %v2425 = vmul.f32 %v2169, 0.2
        %v2426 = vmul.f32 %v2170, 0.2
        %v2427 = vmul.f32 %v2171, 0.2
        %v2428 = vmul.f32 %v2172, 0.2
        %v2429 = vmul.f32 %v2173, 0.2
        %v2430 = vmul.f32 %v2174, 0.2
        %v2431 = vmul.f32 %v2175, 0.2
        %v2432 = vmul.f32 %v2176, 0.2
        %v2433 = vmul.f32 %v2177, 0.2
        %v2434 = vmul.f32 %v2178, 0.2
        %v2435 = vmul.f32 %v2179, 0.2
        %v2436 = vmul.f32 %v2180, 0.2
        %v2437 = vmul.f32 %v2181, 0.2
        %v2438 = vmul.f32 %v2182, 0.2
        %v2439 = vmul.f32 %v2183, 0.2
        %v2440 = vmul.f32 %v2184, 0.2
        %v2441 = vmul.f32 %v2185, 0.2
        %v2442 = vmul.f32 %v2186, 0.2
        %v2443 = vmul.f32 %v2187, 0.2
        %v2444 = vmul.f32 %v2188, 0.2
        %v2445 = vmul.f32 %v2189, 0.2
        %v2446 = vmul.f32 %v2190, 0.2
        %v2447 = vmul.f32 %v2191, 0.2
        %v2448 = vmul.f32 %v2192, 0.2
        %v2449 = vmul.f32 %v2193, 0.2
        %v2450 = vmul.f32 %v2194, 0.2
        %v2451 = vmul.f32 %v2195, 0.2
        %v2452 = vmul.f32 %v2196, 0.2
        %v2453 = vmul.f32 %v2197, 0.2
        %v2454 = vmul.f32 %v2198, 0.2
        %v2455 = vmul.f32 %v2199, 0.2
        %v2456 = vmul.f32 %v2200, 0.2
        %v2457 = vmul.f32 %v2201, 0.2
        %v2458 = vmul.f32 %v2202, 0.2
        %v2459 = vmul.f32 %v2203, 0.2
        %v2460 = vmul.f32 %v2204, 0.2
        %v2461 = vmul.f32 %v2205, 0.2
        %v2462 = vmul.f32 %v2206, 0.2
        %v2463 = vmul.f32 %v2207, 0.2
        %v2464 = vmul.f32 %v2208, 0.2
        %v2465 = vmul.f32 %v2209, 0.2
        %v2466 = vmul.f32 %v2210, 0.2
        %v2467 = vmul.f32 %v2211, 0.2
        %v2468 = vmul.f32 %v2212, 0.2
        %v2469 = vmul.f32 %v2213, 0.2
        %v2470 = vmul.f32 %v2214, 0.2
        %v2471 = vmul.f32 %v2215, 0.2
        %v2472 = vmul.f32 %v2216, 0.2
        %v2473 = vmul.f32 %v2217, 0.2
        %v2474 = vmul.f32 %v2218, 0.2
        %v2475 = vmul.f32 %v2219, 0.2
        %v2476 = vmul.f32 %v2220, 0.2
        %v2477 = vmul.f32 %v2221, 0.2
        %v2478 = vmul.f32 %v2222, 0.2
        %v2479 = vmul.f32 %v2223, 0.2
        %v2480 = vmul.f32 %v2224, 0.2
        %v2481 = vmul.f32 %v2225, 0.2
        %v2482 = vmul.f32 %v2226, 0.2
        %v2483 = vmul.f32 %v2227, 0.2
        %v2484 = vmul.f32 %v2228, 0.2
        %v2485 = vmul.f32 %v2229, 0.2
        %v2486 = vmul.f32 %v2230, 0.2
        %v2487 = vmul.f32 %v2231, 0.2
        %v2488 = vmul.f32 %v2232, 0.2
        %v2489 = vmul.f32 %v2233, 0.2
        %v2490 = vmul.f32 %v2234, 0.2
        %v2491 = vmul.f32 %v2235, 0.2
        %v2492 = vmul.f32 %v2236, 0.2
        %v2493 = vmul.f32 %v2237, 0.2
        %v2494 = vmul.f32 %v2238, 0.2
        %v2495 = vmul.f32 %v2239, 0.2
        %v2496 = vmul.f32 %v2240, 0.2
        %v2497 = vmul.f32 %v2241, 0.2
        %v2498 = vmul.f32 %v2242, 0.2
        %v2499 = vmul.f32 %v2243, 0.2
        %v2500 = vmul.f32 %v2244, 0.2
        %v2501 = vmul.f32 %v2245, 0.2
        %v2502 = vmul.f32 %v2246, 0.2
        %v2503 = vmul.f32 %v2247, 0.2
        %v2504 = vmul.f32 %v2248, 0.2
        %v2505 = vmul.f32 %v2249, 0.2
        %v2506 = vmul.f32 %v2250, 0.2
        %v2507 = vmul.f32 %v2251, 0.2
        %v2508 = vmul.f32 %v2252, 0.2
        %v2509 = vmul.f32 %v2253, 0.2
        %v2510 = vmul.f32 %v2254, 0.2
        %v2511 = vmul.f32 %v2255, 0.2
        %v2512 = vmul.f32 %v2256, 0.2
        %v2513 = vmul.f32 %v2257, 0.2
        %v2514 = vmul.f32 %v2258, 0.2
        %v2515 = vmul.f32 %v2259, 0.2
        %v2516 = vmul.f32 %v2260, 0.2
        %v2517 = vmul.f32 %v2261, 0.2
        %v2518 = vmul.f32 %v2262, 0.2
        %v2519 = vmul.f32 %v2263, 0.2
        %v2520 = vmul.f32 %v2264, 0.2
        %v2521 = vmul.f32 %v2265, 0.2
        %v2522 = vmul.f32 %v2266, 0.2
        %v2523 = vmul.f32 %v2267, 0.2
        %v2524 = vmul.f32 %v2268, 0.2
        %v2525 = vmul.f32 %v2269, 0.2
        %v2526 = vmul.f32 %v2270, 0.2
        %v2527 = vmul.f32 %v2271, 0.2
        %v2528 = vmul.f32 %v2272, 0.2
        %v2529 = vmul.f32 %v2273, 0.2
        %v2530 = vmul.f32 %v2274, 0.2
        %v2531 = vmul.f32 %v2275, 0.2
        %v2532 = vmul.f32 %v2276, 0.2
        %v2533 = vmul.f32 %v2277, 0.2
        %v2534 = vmul.f32 %v2278, 0.2
        %v2535 = vmul.f32 %v2279, 0.2
        %v2536 = vmul.f32 %v2280, 0.2
        %v2537 = vmul.f32 %v2281, 0.2
        %v2538 = vmul.f32 %v2282, 0.2
        %v2539 = vmul.f32 %v2283, 0.2
        %v2540 = vmul.f32 %v2284, 0.2
        %v2541 = vmul.f32 %v2285, 0.2
        %v2542 = vmul.f32 %v2286, 0.2
        %v2543 = vmul.f32 %v2287, 0.2
        %v2544 = vmul.f32 %v2288, 0.2
        %v2545 = vmul.f32 %v2289, 0.2
        %v2546 = vmul.f32 %v2290, 0.2
        %v2547 = vmul.f32 %v2291, 0.2
        %v2548 = vmul.f32 %v2292, 0.2
        %v2549 = vmul.f32 %v2293, 0.2
        %v2550 = vmul.f32 %v2294, 0.2
        %v2551 = vmul.f32 %v2295, 0.2
        %v2552 = vmul.f32 %v2296, 0.2
        %v2553 = vmul.f32 %v2297, 0.2
        %s2554 = smul.u32 %s24, 2
        %s2555 = sadd.s32 %s2554, %s25
        %p2556 = scmp.ge.s32.totalorder %s2555, 1
        %p2557 = scmp.lt.s32.totalorder %s2555, 1
        // Predicated region
        $region41: #{tpu_custom_call.1} parent=27 // pred_check
          %p2558 = pneg %p2557
        $region42: #{tpu_custom_call.1} parent=27 // pred_check_branch
          %2560 = sbr.rel (%p2558) target = $region44
        $region43: #{tpu_custom_call.1} parent=27 // pred_region
          %v2561 = vld [vmem:[#allocation7] sm:$0xff]
          %v2562 = vadd.f32 %v2298, %v2299
          %v2563 = vadd.f32 %v2562, %v2300
          %v2564 = vadd.f32 %v2563, %v2301
          %v2565 = vadd.f32 %v2564, %v2302
          %v2566 = vadd.f32 %v2565, %v2303
          %v2567 = vadd.f32 %v2566, %v2304
          %v2568 = vadd.f32 %v2567, %v2305
          %v2569 = vadd.f32 %v2568, %v2306
          %v2570 = vadd.f32 %v2569, %v2307
          %v2571 = vadd.f32 %v2570, %v2308
          %v2572 = vadd.f32 %v2571, %v2309
          %v2573 = vadd.f32 %v2572, %v2310
          %v2574 = vadd.f32 %v2573, %v2311
          %v2575 = vadd.f32 %v2574, %v2312
          %v2576 = vadd.f32 %v2575, %v2313
          %v2577 = vadd.f32 %v2576, %v2314
          %v2578 = vadd.f32 %v2577, %v2315
          %v2579 = vadd.f32 %v2578, %v2316
          %v2580 = vadd.f32 %v2579, %v2317
          %v2581 = vadd.f32 %v2580, %v2318
          %v2582 = vadd.f32 %v2581, %v2319
          %v2583 = vadd.f32 %v2582, %v2320
          %v2584 = vadd.f32 %v2583, %v2321
          %v2585 = vadd.f32 %v2584, %v2322
          %v2586 = vadd.f32 %v2585, %v2323
          %v2587 = vadd.f32 %v2586, %v2324
          %v2588 = vadd.f32 %v2587, %v2325
          %v2589 = vadd.f32 %v2588, %v2326
          %v2590 = vadd.f32 %v2589, %v2327
          %v2591 = vadd.f32 %v2590, %v2328
          %v2592 = vadd.f32 %v2591, %v2329
          %v2593 = vadd.f32 %v2592, %v2330
          %v2594 = vadd.f32 %v2593, %v2331
          %v2595 = vadd.f32 %v2594, %v2332
          %v2596 = vadd.f32 %v2595, %v2333
          %v2597 = vadd.f32 %v2596, %v2334
          %v2598 = vadd.f32 %v2597, %v2335
          %v2599 = vadd.f32 %v2598, %v2336
          %v2600 = vadd.f32 %v2599, %v2337
          %v2601 = vadd.f32 %v2600, %v2338
          %v2602 = vadd.f32 %v2601, %v2339
          %v2603 = vadd.f32 %v2602, %v2340
          %v2604 = vadd.f32 %v2603, %v2341
          %v2605 = vadd.f32 %v2604, %v2342
          %v2606 = vadd.f32 %v2605, %v2343
          %v2607 = vadd.f32 %v2606, %v2344
          %v2608 = vadd.f32 %v2607, %v2345
          %v2609 = vadd.f32 %v2608, %v2346
          %v2610 = vadd.f32 %v2609, %v2347
          %v2611 = vadd.f32 %v2610, %v2348
          %v2612 = vadd.f32 %v2611, %v2349
          %v2613 = vadd.f32 %v2612, %v2350
          %v2614 = vadd.f32 %v2613, %v2351
          %v2615 = vadd.f32 %v2614, %v2352
          %v2616 = vadd.f32 %v2615, %v2353
          %v2617 = vadd.f32 %v2616, %v2354
          %v2618 = vadd.f32 %v2617, %v2355
          %v2619 = vadd.f32 %v2618, %v2356
          %v2620 = vadd.f32 %v2619, %v2357
          %v2621 = vadd.f32 %v2620, %v2358
          %v2622 = vadd.f32 %v2621, %v2359
          %v2623 = vadd.f32 %v2622, %v2360
          %v2624 = vadd.f32 %v2623, %v2361
          %v2625 = vadd.f32 %v2624, %v2362
          %v2626 = vadd.f32 %v2625, %v2363
          %v2627 = vadd.f32 %v2626, %v2364
          %v2628 = vadd.f32 %v2627, %v2365
          %v2629 = vadd.f32 %v2628, %v2366
          %v2630 = vadd.f32 %v2629, %v2367
          %v2631 = vadd.f32 %v2630, %v2368
          %v2632 = vadd.f32 %v2631, %v2369
          %v2633 = vadd.f32 %v2632, %v2370
          %v2634 = vadd.f32 %v2633, %v2371
          %v2635 = vadd.f32 %v2634, %v2372
          %v2636 = vadd.f32 %v2635, %v2373
          %v2637 = vadd.f32 %v2636, %v2374
          %v2638 = vadd.f32 %v2637, %v2375
          %v2639 = vadd.f32 %v2638, %v2376
          %v2640 = vadd.f32 %v2639, %v2377
          %v2641 = vadd.f32 %v2640, %v2378
          %v2642 = vadd.f32 %v2641, %v2379
          %v2643 = vadd.f32 %v2642, %v2380
          %v2644 = vadd.f32 %v2643, %v2381
          %v2645 = vadd.f32 %v2644, %v2382
          %v2646 = vadd.f32 %v2645, %v2383
          %v2647 = vadd.f32 %v2646, %v2384
          %v2648 = vadd.f32 %v2647, %v2385
          %v2649 = vadd.f32 %v2648, %v2386
          %v2650 = vadd.f32 %v2649, %v2387
          %v2651 = vadd.f32 %v2650, %v2388
          %v2652 = vadd.f32 %v2651, %v2389
          %v2653 = vadd.f32 %v2652, %v2390
          %v2654 = vadd.f32 %v2653, %v2391
          %v2655 = vadd.f32 %v2654, %v2392
          %v2656 = vadd.f32 %v2655, %v2393
          %v2657 = vadd.f32 %v2656, %v2394
          %v2658 = vadd.f32 %v2657, %v2395
          %v2659 = vadd.f32 %v2658, %v2396
          %v2660 = vadd.f32 %v2659, %v2397
          %v2661 = vadd.f32 %v2660, %v2398
          %v2662 = vadd.f32 %v2661, %v2399
          %v2663 = vadd.f32 %v2662, %v2400
          %v2664 = vadd.f32 %v2663, %v2401
          %v2665 = vadd.f32 %v2664, %v2402
          %v2666 = vadd.f32 %v2665, %v2403
          %v2667 = vadd.f32 %v2666, %v2404
          %v2668 = vadd.f32 %v2667, %v2405
          %v2669 = vadd.f32 %v2668, %v2406
          %v2670 = vadd.f32 %v2669, %v2407
          %v2671 = vadd.f32 %v2670, %v2408
          %v2672 = vadd.f32 %v2671, %v2409
          %v2673 = vadd.f32 %v2672, %v2410
          %v2674 = vadd.f32 %v2673, %v2411
          %v2675 = vadd.f32 %v2674, %v2412
          %v2676 = vadd.f32 %v2675, %v2413
          %v2677 = vadd.f32 %v2676, %v2414
          %v2678 = vadd.f32 %v2677, %v2415
          %v2679 = vadd.f32 %v2678, %v2416
          %v2680 = vadd.f32 %v2679, %v2417
          %v2681 = vadd.f32 %v2680, %v2418
          %v2682 = vadd.f32 %v2681, %v2419
          %v2683 = vadd.f32 %v2682, %v2420
          %v2684 = vadd.f32 %v2683, %v2421
          %v2685 = vadd.f32 %v2684, %v2422
          %v2686 = vadd.f32 %v2685, %v2423
          %v2687 = vadd.f32 %v2686, %v2424
          %v2688 = vadd.f32 %v2687, %v2425
          %v2689 = vadd.f32 %v2688, %v2426
          %v2690 = vadd.f32 %v2689, %v2427
          %v2691 = vadd.f32 %v2690, %v2428
          %v2692 = vadd.f32 %v2691, %v2429
          %v2693 = vadd.f32 %v2692, %v2430
          %v2694 = vadd.f32 %v2693, %v2431
          %v2695 = vadd.f32 %v2694, %v2432
          %v2696 = vadd.f32 %v2695, %v2433
          %v2697 = vadd.f32 %v2696, %v2434
          %v2698 = vadd.f32 %v2697, %v2435
          %v2699 = vadd.f32 %v2698, %v2436
          %v2700 = vadd.f32 %v2699, %v2437
          %v2701 = vadd.f32 %v2700, %v2438
          %v2702 = vadd.f32 %v2701, %v2439
          %v2703 = vadd.f32 %v2702, %v2440
          %v2704 = vadd.f32 %v2703, %v2441
          %v2705 = vadd.f32 %v2704, %v2442
          %v2706 = vadd.f32 %v2705, %v2443
          %v2707 = vadd.f32 %v2706, %v2444
          %v2708 = vadd.f32 %v2707, %v2445
          %v2709 = vadd.f32 %v2708, %v2446
          %v2710 = vadd.f32 %v2709, %v2447
          %v2711 = vadd.f32 %v2710, %v2448
          %v2712 = vadd.f32 %v2711, %v2449
          %v2713 = vadd.f32 %v2712, %v2450
          %v2714 = vadd.f32 %v2713, %v2451
          %v2715 = vadd.f32 %v2714, %v2452
          %v2716 = vadd.f32 %v2715, %v2453
          %v2717 = vadd.f32 %v2716, %v2454
          %v2718 = vadd.f32 %v2717, %v2455
          %v2719 = vadd.f32 %v2718, %v2456
          %v2720 = vadd.f32 %v2719, %v2457
          %v2721 = vadd.f32 %v2720, %v2458
          %v2722 = vadd.f32 %v2721, %v2459
          %v2723 = vadd.f32 %v2722, %v2460
          %v2724 = vadd.f32 %v2723, %v2461
          %v2725 = vadd.f32 %v2724, %v2462
          %v2726 = vadd.f32 %v2725, %v2463
          %v2727 = vadd.f32 %v2726, %v2464
          %v2728 = vadd.f32 %v2727, %v2465
          %v2729 = vadd.f32 %v2728, %v2466
          %v2730 = vadd.f32 %v2729, %v2467
          %v2731 = vadd.f32 %v2730, %v2468
          %v2732 = vadd.f32 %v2731, %v2469
          %v2733 = vadd.f32 %v2732, %v2470
          %v2734 = vadd.f32 %v2733, %v2471
          %v2735 = vadd.f32 %v2734, %v2472
          %v2736 = vadd.f32 %v2735, %v2473
          %v2737 = vadd.f32 %v2736, %v2474
          %v2738 = vadd.f32 %v2737, %v2475
          %v2739 = vadd.f32 %v2738, %v2476
          %v2740 = vadd.f32 %v2739, %v2477
          %v2741 = vadd.f32 %v2740, %v2478
          %v2742 = vadd.f32 %v2741, %v2479
          %v2743 = vadd.f32 %v2742, %v2480
          %v2744 = vadd.f32 %v2743, %v2481
          %v2745 = vadd.f32 %v2744, %v2482
          %v2746 = vadd.f32 %v2745, %v2483
          %v2747 = vadd.f32 %v2746, %v2484
          %v2748 = vadd.f32 %v2747, %v2485
          %v2749 = vadd.f32 %v2748, %v2486
          %v2750 = vadd.f32 %v2749, %v2487
          %v2751 = vadd.f32 %v2750, %v2488
          %v2752 = vadd.f32 %v2751, %v2489
          %v2753 = vadd.f32 %v2752, %v2490
          %v2754 = vadd.f32 %v2753, %v2491
          %v2755 = vadd.f32 %v2754, %v2492
          %v2756 = vadd.f32 %v2755, %v2493
          %v2757 = vadd.f32 %v2756, %v2494
          %v2758 = vadd.f32 %v2757, %v2495
          %v2759 = vadd.f32 %v2758, %v2496
          %v2760 = vadd.f32 %v2759, %v2497
          %v2761 = vadd.f32 %v2760, %v2498
          %v2762 = vadd.f32 %v2761, %v2499
          %v2763 = vadd.f32 %v2762, %v2500
          %v2764 = vadd.f32 %v2763, %v2501
          %v2765 = vadd.f32 %v2764, %v2502
          %v2766 = vadd.f32 %v2765, %v2503
          %v2767 = vadd.f32 %v2766, %v2504
          %v2768 = vadd.f32 %v2767, %v2505
          %v2769 = vadd.f32 %v2768, %v2506
          %v2770 = vadd.f32 %v2769, %v2507
          %v2771 = vadd.f32 %v2770, %v2508
          %v2772 = vadd.f32 %v2771, %v2509
          %v2773 = vadd.f32 %v2772, %v2510
          %v2774 = vadd.f32 %v2773, %v2511
          %v2775 = vadd.f32 %v2774, %v2512
          %v2776 = vadd.f32 %v2775, %v2513
          %v2777 = vadd.f32 %v2776, %v2514
          %v2778 = vadd.f32 %v2777, %v2515
          %v2779 = vadd.f32 %v2778, %v2516
          %v2780 = vadd.f32 %v2779, %v2517
          %v2781 = vadd.f32 %v2780, %v2518
          %v2782 = vadd.f32 %v2781, %v2519
          %v2783 = vadd.f32 %v2782, %v2520
          %v2784 = vadd.f32 %v2783, %v2521
          %v2785 = vadd.f32 %v2784, %v2522
          %v2786 = vadd.f32 %v2785, %v2523
          %v2787 = vadd.f32 %v2786, %v2524
          %v2788 = vadd.f32 %v2787, %v2525
          %v2789 = vadd.f32 %v2788, %v2526
          %v2790 = vadd.f32 %v2789, %v2527
          %v2791 = vadd.f32 %v2790, %v2528
          %v2792 = vadd.f32 %v2791, %v2529
          %v2793 = vadd.f32 %v2792, %v2530
          %v2794 = vadd.f32 %v2793, %v2531
          %v2795 = vadd.f32 %v2794, %v2532
          %v2796 = vadd.f32 %v2795, %v2533
          %v2797 = vadd.f32 %v2796, %v2534
          %v2798 = vadd.f32 %v2797, %v2535
          %v2799 = vadd.f32 %v2798, %v2536
          %v2800 = vadd.f32 %v2799, %v2537
          %v2801 = vadd.f32 %v2800, %v2538
          %v2802 = vadd.f32 %v2801, %v2539
          %v2803 = vadd.f32 %v2802, %v2540
          %v2804 = vadd.f32 %v2803, %v2541
          %v2805 = vadd.f32 %v2804, %v2542
          %v2806 = vadd.f32 %v2805, %v2543
          %v2807 = vadd.f32 %v2806, %v2544
          %v2808 = vadd.f32 %v2807, %v2545
          %v2809 = vadd.f32 %v2808, %v2546
          %v2810 = vadd.f32 %v2809, %v2547
          %v2811 = vadd.f32 %v2810, %v2548
          %v2812 = vadd.f32 %v2811, %v2549
          %v2813 = vadd.f32 %v2812, %v2550
          %v2814 = vadd.f32 %v2813, %v2551
          %v2815 = vadd.f32 %v2814, %v2552
          %v2816 = vadd.f32 %v2815, %v2553
          %v2817 = vadd.f32 %v2561, %v2816
          %2818 = vst [vmem:[#allocation7] sm:$0xff] %v2817
        $region44: #{tpu_custom_call.1} parent=27 // pred_fallthru
          _
        // Predicated region
        $region45: #{tpu_custom_call.1} parent=27 // pred_check
          %p2819 = pneg %p2556
        $region46: #{tpu_custom_call.1} parent=27 // pred_check_branch
          %2821 = sbr.rel (%p2819) target = $region48
        $region47: #{tpu_custom_call.1} parent=27 // pred_region
          %s2822 = smul.u32 %s2555, 2048
          %v2823 = vlaneseq
          %v2824 = vshrl.u32 %v2823, 7
          %v2825 = vadd.s32 %v2824, 8
          %v2826 = vadd.s32 %v2824, 16
          %v2827 = vadd.s32 %v2824, 24
          %v2828 = vadd.s32 %v2824, 32
          %v2829 = vadd.s32 %v2824, 40
          %v2830 = vadd.s32 %v2824, 48
          %v2831 = vadd.s32 %v2824, 56
          %v2832 = vadd.s32 %v2824, 64
          %v2833 = vadd.s32 %v2824, 72
          %v2834 = vadd.s32 %v2824, 80
          %v2835 = vadd.s32 %v2824, 88
          %v2836 = vadd.s32 %v2824, 96
          %v2837 = vadd.s32 %v2824, 104
          %v2838 = vadd.s32 %v2824, 112
          %v2839 = vadd.s32 %v2824, 120
          %v2840 = vadd.s32 %v2824, 128
          %v2841 = vadd.s32 %v2824, 136
          %v2842 = vadd.s32 %v2824, 144
          %v2843 = vadd.s32 %v2824, 152
          %v2844 = vadd.s32 %v2824, 160
          %v2845 = vadd.s32 %v2824, 168
          %v2846 = vadd.s32 %v2824, 176
          %v2847 = vadd.s32 %v2824, 184
          %v2848 = vadd.s32 %v2824, 192
          %v2849 = vadd.s32 %v2824, 200
          %v2850 = vadd.s32 %v2824, 208
          %v2851 = vadd.s32 %v2824, 216
          %v2852 = vadd.s32 %v2824, 224
          %v2853 = vadd.s32 %v2824, 232
          %v2854 = vadd.s32 %v2824, 240
          %v2855 = vadd.s32 %v2824, 248
          %v2856 = vadd.s32 %v2824, 256
          %v2857 = vadd.s32 %v2824, 264
          %v2858 = vadd.s32 %v2824, 272
          %v2859 = vadd.s32 %v2824, 280
          %v2860 = vadd.s32 %v2824, 288
          %v2861 = vadd.s32 %v2824, 296
          %v2862 = vadd.s32 %v2824, 304
          %v2863 = vadd.s32 %v2824, 312
          %v2864 = vadd.s32 %v2824, 320
          %v2865 = vadd.s32 %v2824, 328
          %v2866 = vadd.s32 %v2824, 336
          %v2867 = vadd.s32 %v2824, 344
          %v2868 = vadd.s32 %v2824, 352
          %v2869 = vadd.s32 %v2824, 360
          %v2870 = vadd.s32 %v2824, 368
          %v2871 = vadd.s32 %v2824, 376
          %v2872 = vadd.s32 %v2824, 384
          %v2873 = vadd.s32 %v2824, 392
          %v2874 = vadd.s32 %v2824, 400
          %v2875 = vadd.s32 %v2824, 408
          %v2876 = vadd.s32 %v2824, 416
          %v2877 = vadd.s32 %v2824, 424
          %v2878 = vadd.s32 %v2824, 432
          %v2879 = vadd.s32 %v2824, 440
          %v2880 = vadd.s32 %v2824, 448
          %v2881 = vadd.s32 %v2824, 456
          %v2882 = vadd.s32 %v2824, 464
          %v2883 = vadd.s32 %v2824, 472
          %v2884 = vadd.s32 %v2824, 480
          %v2885 = vadd.s32 %v2824, 488
          %v2886 = vadd.s32 %v2824, 496
          %v2887 = vadd.s32 %v2824, 504
          %v2888 = vadd.s32 %v2824, 512
          %v2889 = vadd.s32 %v2824, 520
          %v2890 = vadd.s32 %v2824, 528
          %v2891 = vadd.s32 %v2824, 536
          %v2892 = vadd.s32 %v2824, 544
          %v2893 = vadd.s32 %v2824, 552
          %v2894 = vadd.s32 %v2824, 560
          %v2895 = vadd.s32 %v2824, 568
          %v2896 = vadd.s32 %v2824, 576
          %v2897 = vadd.s32 %v2824, 584
          %v2898 = vadd.s32 %v2824, 592
          %v2899 = vadd.s32 %v2824, 600
          %v2900 = vadd.s32 %v2824, 608
          %v2901 = vadd.s32 %v2824, 616
          %v2902 = vadd.s32 %v2824, 624
          %v2903 = vadd.s32 %v2824, 632
          %v2904 = vadd.s32 %v2824, 640
          %v2905 = vadd.s32 %v2824, 648
          %v2906 = vadd.s32 %v2824, 656
          %v2907 = vadd.s32 %v2824, 664
          %v2908 = vadd.s32 %v2824, 672
          %v2909 = vadd.s32 %v2824, 680
          %v2910 = vadd.s32 %v2824, 688
          %v2911 = vadd.s32 %v2824, 696
          %v2912 = vadd.s32 %v2824, 704
          %v2913 = vadd.s32 %v2824, 712
          %v2914 = vadd.s32 %v2824, 720
          %v2915 = vadd.s32 %v2824, 728
          %v2916 = vadd.s32 %v2824, 736
          %v2917 = vadd.s32 %v2824, 744
          %v2918 = vadd.s32 %v2824, 752
          %v2919 = vadd.s32 %v2824, 760
          %v2920 = vadd.s32 %v2824, 768
          %v2921 = vadd.s32 %v2824, 776
          %v2922 = vadd.s32 %v2824, 784
          %v2923 = vadd.s32 %v2824, 792
          %v2924 = vadd.s32 %v2824, 800
          %v2925 = vadd.s32 %v2824, 808
          %v2926 = vadd.s32 %v2824, 816
          %v2927 = vadd.s32 %v2824, 824
          %v2928 = vadd.s32 %v2824, 832
          %v2929 = vadd.s32 %v2824, 840
          %v2930 = vadd.s32 %v2824, 848
          %v2931 = vadd.s32 %v2824, 856
          %v2932 = vadd.s32 %v2824, 864
          %v2933 = vadd.s32 %v2824, 872
          %v2934 = vadd.s32 %v2824, 880
          %v2935 = vadd.s32 %v2824, 888
          %v2936 = vadd.s32 %v2824, 896
          %v2937 = vadd.s32 %v2824, 904
          %v2938 = vadd.s32 %v2824, 912
          %v2939 = vadd.s32 %v2824, 920
          %v2940 = vadd.s32 %v2824, 928
          %v2941 = vadd.s32 %v2824, 936
          %v2942 = vadd.s32 %v2824, 944
          %v2943 = vadd.s32 %v2824, 952
          %v2944 = vadd.s32 %v2824, 960
          %v2945 = vadd.s32 %v2824, 968
          %v2946 = vadd.s32 %v2824, 976
          %v2947 = vadd.s32 %v2824, 984
          %v2948 = vadd.s32 %v2824, 992
          %v2949 = vadd.s32 %v2824, 1000
          %v2950 = vadd.s32 %v2824, 1008
          %v2951 = vadd.s32 %v2824, 1016
          %v2952 = vadd.s32 %v2824, 1024
          %v2953 = vadd.s32 %v2824, 1032
          %v2954 = vadd.s32 %v2824, 1040
          %v2955 = vadd.s32 %v2824, 1048
          %v2956 = vadd.s32 %v2824, 1056
          %v2957 = vadd.s32 %v2824, 1064
          %v2958 = vadd.s32 %v2824, 1072
          %v2959 = vadd.s32 %v2824, 1080
          %v2960 = vadd.s32 %v2824, 1088
          %v2961 = vadd.s32 %v2824, 1096
          %v2962 = vadd.s32 %v2824, 1104
          %v2963 = vadd.s32 %v2824, 1112
          %v2964 = vadd.s32 %v2824, 1120
          %v2965 = vadd.s32 %v2824, 1128
          %v2966 = vadd.s32 %v2824, 1136
          %v2967 = vadd.s32 %v2824, 1144
          %v2968 = vadd.s32 %v2824, 1152
          %v2969 = vadd.s32 %v2824, 1160
          %v2970 = vadd.s32 %v2824, 1168
          %v2971 = vadd.s32 %v2824, 1176
          %v2972 = vadd.s32 %v2824, 1184
          %v2973 = vadd.s32 %v2824, 1192
          %v2974 = vadd.s32 %v2824, 1200
          %v2975 = vadd.s32 %v2824, 1208
          %v2976 = vadd.s32 %v2824, 1216
          %v2977 = vadd.s32 %v2824, 1224
          %v2978 = vadd.s32 %v2824, 1232
          %v2979 = vadd.s32 %v2824, 1240
          %v2980 = vadd.s32 %v2824, 1248
          %v2981 = vadd.s32 %v2824, 1256
          %v2982 = vadd.s32 %v2824, 1264
          %v2983 = vadd.s32 %v2824, 1272
          %v2984 = vadd.s32 %v2824, 1280
          %v2985 = vadd.s32 %v2824, 1288
          %v2986 = vadd.s32 %v2824, 1296
          %v2987 = vadd.s32 %v2824, 1304
          %v2988 = vadd.s32 %v2824, 1312
          %v2989 = vadd.s32 %v2824, 1320
          %v2990 = vadd.s32 %v2824, 1328
          %v2991 = vadd.s32 %v2824, 1336
          %v2992 = vadd.s32 %v2824, 1344
          %v2993 = vadd.s32 %v2824, 1352
          %v2994 = vadd.s32 %v2824, 1360
          %v2995 = vadd.s32 %v2824, 1368
          %v2996 = vadd.s32 %v2824, 1376
          %v2997 = vadd.s32 %v2824, 1384
          %v2998 = vadd.s32 %v2824, 1392
          %v2999 = vadd.s32 %v2824, 1400
          %v3000 = vadd.s32 %v2824, 1408
          %v3001 = vadd.s32 %v2824, 1416
          %v3002 = vadd.s32 %v2824, 1424
          %v3003 = vadd.s32 %v2824, 1432
          %v3004 = vadd.s32 %v2824, 1440
          %v3005 = vadd.s32 %v2824, 1448
          %v3006 = vadd.s32 %v2824, 1456
          %v3007 = vadd.s32 %v2824, 1464
          %v3008 = vadd.s32 %v2824, 1472
          %v3009 = vadd.s32 %v2824, 1480
          %v3010 = vadd.s32 %v2824, 1488
          %v3011 = vadd.s32 %v2824, 1496
          %v3012 = vadd.s32 %v2824, 1504
          %v3013 = vadd.s32 %v2824, 1512
          %v3014 = vadd.s32 %v2824, 1520
          %v3015 = vadd.s32 %v2824, 1528
          %v3016 = vadd.s32 %v2824, 1536
          %v3017 = vadd.s32 %v2824, 1544
          %v3018 = vadd.s32 %v2824, 1552
          %v3019 = vadd.s32 %v2824, 1560
          %v3020 = vadd.s32 %v2824, 1568
          %v3021 = vadd.s32 %v2824, 1576
          %v3022 = vadd.s32 %v2824, 1584
          %v3023 = vadd.s32 %v2824, 1592
          %v3024 = vadd.s32 %v2824, 1600
          %v3025 = vadd.s32 %v2824, 1608
          %v3026 = vadd.s32 %v2824, 1616
          %v3027 = vadd.s32 %v2824, 1624
          %v3028 = vadd.s32 %v2824, 1632
          %v3029 = vadd.s32 %v2824, 1640
          %v3030 = vadd.s32 %v2824, 1648
          %v3031 = vadd.s32 %v2824, 1656
          %v3032 = vadd.s32 %v2824, 1664
          %v3033 = vadd.s32 %v2824, 1672
          %v3034 = vadd.s32 %v2824, 1680
          %v3035 = vadd.s32 %v2824, 1688
          %v3036 = vadd.s32 %v2824, 1696
          %v3037 = vadd.s32 %v2824, 1704
          %v3038 = vadd.s32 %v2824, 1712
          %v3039 = vadd.s32 %v2824, 1720
          %v3040 = vadd.s32 %v2824, 1728
          %v3041 = vadd.s32 %v2824, 1736
          %v3042 = vadd.s32 %v2824, 1744
          %v3043 = vadd.s32 %v2824, 1752
          %v3044 = vadd.s32 %v2824, 1760
          %v3045 = vadd.s32 %v2824, 1768
          %v3046 = vadd.s32 %v2824, 1776
          %v3047 = vadd.s32 %v2824, 1784
          %v3048 = vadd.s32 %v2824, 1792
          %v3049 = vadd.s32 %v2824, 1800
          %v3050 = vadd.s32 %v2824, 1808
          %v3051 = vadd.s32 %v2824, 1816
          %v3052 = vadd.s32 %v2824, 1824
          %v3053 = vadd.s32 %v2824, 1832
          %v3054 = vadd.s32 %v2824, 1840
          %v3055 = vadd.s32 %v2824, 1848
          %v3056 = vadd.s32 %v2824, 1856
          %v3057 = vadd.s32 %v2824, 1864
          %v3058 = vadd.s32 %v2824, 1872
          %v3059 = vadd.s32 %v2824, 1880
          %v3060 = vadd.s32 %v2824, 1888
          %v3061 = vadd.s32 %v2824, 1896
          %v3062 = vadd.s32 %v2824, 1904
          %v3063 = vadd.s32 %v2824, 1912
          %v3064 = vadd.s32 %v2824, 1920
          %v3065 = vadd.s32 %v2824, 1928
          %v3066 = vadd.s32 %v2824, 1936
          %v3067 = vadd.s32 %v2824, 1944
          %v3068 = vadd.s32 %v2824, 1952
          %v3069 = vadd.s32 %v2824, 1960
          %v3070 = vadd.s32 %v2824, 1968
          %v3071 = vadd.s32 %v2824, 1976
          %v3072 = vadd.s32 %v2824, 1984
          %v3073 = vadd.s32 %v2824, 1992
          %v3074 = vadd.s32 %v2824, 2000
          %v3075 = vadd.s32 %v2824, 2008
          %v3076 = vadd.s32 %v2824, 2016
          %v3077 = vadd.s32 %v2824, 2024
          %v3078 = vadd.s32 %v2824, 2032
          %v3079 = vadd.s32 %v2824, 2040
          %v3080 = vstv %s2822
          %v3081 = vadd.s32 %v3080, %v2824
          %v3082 = vadd.s32 %v3080, %v2825
          %v3083 = vadd.s32 %v3080, %v2826
          %v3084 = vadd.s32 %v3080, %v2827
          %v3085 = vadd.s32 %v3080, %v2828
          %v3086 = vadd.s32 %v3080, %v2829
          %v3087 = vadd.s32 %v3080, %v2830
          %v3088 = vadd.s32 %v3080, %v2831
          %v3089 = vadd.s32 %v3080, %v2832
          %v3090 = vadd.s32 %v3080, %v2833
          %v3091 = vadd.s32 %v3080, %v2834
          %v3092 = vadd.s32 %v3080, %v2835
          %v3093 = vadd.s32 %v3080, %v2836
          %v3094 = vadd.s32 %v3080, %v2837
          %v3095 = vadd.s32 %v3080, %v2838
          %v3096 = vadd.s32 %v3080, %v2839
          %v3097 = vadd.s32 %v3080, %v2840
          %v3098 = vadd.s32 %v3080, %v2841
          %v3099 = vadd.s32 %v3080, %v2842
          %v3100 = vadd.s32 %v3080, %v2843
          %v3101 = vadd.s32 %v3080, %v2844
          %v3102 = vadd.s32 %v3080, %v2845
          %v3103 = vadd.s32 %v3080, %v2846
          %v3104 = vadd.s32 %v3080, %v2847
          %v3105 = vadd.s32 %v3080, %v2848
          %v3106 = vadd.s32 %v3080, %v2849
          %v3107 = vadd.s32 %v3080, %v2850
          %v3108 = vadd.s32 %v3080, %v2851
          %v3109 = vadd.s32 %v3080, %v2852
          %v3110 = vadd.s32 %v3080, %v2853
          %v3111 = vadd.s32 %v3080, %v2854
          %v3112 = vadd.s32 %v3080, %v2855
          %v3113 = vadd.s32 %v3080, %v2856
          %v3114 = vadd.s32 %v3080, %v2857
          %v3115 = vadd.s32 %v3080, %v2858
          %v3116 = vadd.s32 %v3080, %v2859
          %v3117 = vadd.s32 %v3080, %v2860
          %v3118 = vadd.s32 %v3080, %v2861
          %v3119 = vadd.s32 %v3080, %v2862
          %v3120 = vadd.s32 %v3080, %v2863
          %v3121 = vadd.s32 %v3080, %v2864
          %v3122 = vadd.s32 %v3080, %v2865
          %v3123 = vadd.s32 %v3080, %v2866
          %v3124 = vadd.s32 %v3080, %v2867
          %v3125 = vadd.s32 %v3080, %v2868
          %v3126 = vadd.s32 %v3080, %v2869
          %v3127 = vadd.s32 %v3080, %v2870
          %v3128 = vadd.s32 %v3080, %v2871
          %v3129 = vadd.s32 %v3080, %v2872
          %v3130 = vadd.s32 %v3080, %v2873
          %v3131 = vadd.s32 %v3080, %v2874
          %v3132 = vadd.s32 %v3080, %v2875
          %v3133 = vadd.s32 %v3080, %v2876
          %v3134 = vadd.s32 %v3080, %v2877
          %v3135 = vadd.s32 %v3080, %v2878
          %v3136 = vadd.s32 %v3080, %v2879
          %v3137 = vadd.s32 %v3080, %v2880
          %v3138 = vadd.s32 %v3080, %v2881
          %v3139 = vadd.s32 %v3080, %v2882
          %v3140 = vadd.s32 %v3080, %v2883
          %v3141 = vadd.s32 %v3080, %v2884
          %v3142 = vadd.s32 %v3080, %v2885
          %v3143 = vadd.s32 %v3080, %v2886
          %v3144 = vadd.s32 %v3080, %v2887
          %v3145 = vadd.s32 %v3080, %v2888
          %v3146 = vadd.s32 %v3080, %v2889
          %v3147 = vadd.s32 %v3080, %v2890
          %v3148 = vadd.s32 %v3080, %v2891
          %v3149 = vadd.s32 %v3080, %v2892
          %v3150 = vadd.s32 %v3080, %v2893
          %v3151 = vadd.s32 %v3080, %v2894
          %v3152 = vadd.s32 %v3080, %v2895
          %v3153 = vadd.s32 %v3080, %v2896
          %v3154 = vadd.s32 %v3080, %v2897
          %v3155 = vadd.s32 %v3080, %v2898
          %v3156 = vadd.s32 %v3080, %v2899
          %v3157 = vadd.s32 %v3080, %v2900
          %v3158 = vadd.s32 %v3080, %v2901
          %v3159 = vadd.s32 %v3080, %v2902
          %v3160 = vadd.s32 %v3080, %v2903
          %v3161 = vadd.s32 %v3080, %v2904
          %v3162 = vadd.s32 %v3080, %v2905
          %v3163 = vadd.s32 %v3080, %v2906
          %v3164 = vadd.s32 %v3080, %v2907
          %v3165 = vadd.s32 %v3080, %v2908
          %v3166 = vadd.s32 %v3080, %v2909
          %v3167 = vadd.s32 %v3080, %v2910
          %v3168 = vadd.s32 %v3080, %v2911
          %v3169 = vadd.s32 %v3080, %v2912
          %v3170 = vadd.s32 %v3080, %v2913
          %v3171 = vadd.s32 %v3080, %v2914
          %v3172 = vadd.s32 %v3080, %v2915
          %v3173 = vadd.s32 %v3080, %v2916
          %v3174 = vadd.s32 %v3080, %v2917
          %v3175 = vadd.s32 %v3080, %v2918
          %v3176 = vadd.s32 %v3080, %v2919
          %v3177 = vadd.s32 %v3080, %v2920
          %v3178 = vadd.s32 %v3080, %v2921
          %v3179 = vadd.s32 %v3080, %v2922
          %v3180 = vadd.s32 %v3080, %v2923
          %v3181 = vadd.s32 %v3080, %v2924
          %v3182 = vadd.s32 %v3080, %v2925
          %v3183 = vadd.s32 %v3080, %v2926
          %v3184 = vadd.s32 %v3080, %v2927
          %v3185 = vadd.s32 %v3080, %v2928
          %v3186 = vadd.s32 %v3080, %v2929
          %v3187 = vadd.s32 %v3080, %v2930
          %v3188 = vadd.s32 %v3080, %v2931
          %v3189 = vadd.s32 %v3080, %v2932
          %v3190 = vadd.s32 %v3080, %v2933
          %v3191 = vadd.s32 %v3080, %v2934
          %v3192 = vadd.s32 %v3080, %v2935
          %v3193 = vadd.s32 %v3080, %v2936
          %v3194 = vadd.s32 %v3080, %v2937
          %v3195 = vadd.s32 %v3080, %v2938
          %v3196 = vadd.s32 %v3080, %v2939
          %v3197 = vadd.s32 %v3080, %v2940
          %v3198 = vadd.s32 %v3080, %v2941
          %v3199 = vadd.s32 %v3080, %v2942
          %v3200 = vadd.s32 %v3080, %v2943
          %v3201 = vadd.s32 %v3080, %v2944
          %v3202 = vadd.s32 %v3080, %v2945
          %v3203 = vadd.s32 %v3080, %v2946
          %v3204 = vadd.s32 %v3080, %v2947
          %v3205 = vadd.s32 %v3080, %v2948
          %v3206 = vadd.s32 %v3080, %v2949
          %v3207 = vadd.s32 %v3080, %v2950
          %v3208 = vadd.s32 %v3080, %v2951
          %v3209 = vadd.s32 %v3080, %v2952
          %v3210 = vadd.s32 %v3080, %v2953
          %v3211 = vadd.s32 %v3080, %v2954
          %v3212 = vadd.s32 %v3080, %v2955
          %v3213 = vadd.s32 %v3080, %v2956
          %v3214 = vadd.s32 %v3080, %v2957
          %v3215 = vadd.s32 %v3080, %v2958
          %v3216 = vadd.s32 %v3080, %v2959
          %v3217 = vadd.s32 %v3080, %v2960
          %v3218 = vadd.s32 %v3080, %v2961
          %v3219 = vadd.s32 %v3080, %v2962
          %v3220 = vadd.s32 %v3080, %v2963
          %v3221 = vadd.s32 %v3080, %v2964
          %v3222 = vadd.s32 %v3080, %v2965
          %v3223 = vadd.s32 %v3080, %v2966
          %v3224 = vadd.s32 %v3080, %v2967
          %v3225 = vadd.s32 %v3080, %v2968
          %v3226 = vadd.s32 %v3080, %v2969
          %v3227 = vadd.s32 %v3080, %v2970
          %v3228 = vadd.s32 %v3080, %v2971
          %v3229 = vadd.s32 %v3080, %v2972
          %v3230 = vadd.s32 %v3080, %v2973
          %v3231 = vadd.s32 %v3080, %v2974
          %v3232 = vadd.s32 %v3080, %v2975
          %v3233 = vadd.s32 %v3080, %v2976
          %v3234 = vadd.s32 %v3080, %v2977
          %v3235 = vadd.s32 %v3080, %v2978
          %v3236 = vadd.s32 %v3080, %v2979
          %v3237 = vadd.s32 %v3080, %v2980
          %v3238 = vadd.s32 %v3080, %v2981
          %v3239 = vadd.s32 %v3080, %v2982
          %v3240 = vadd.s32 %v3080, %v2983
          %v3241 = vadd.s32 %v3080, %v2984
          %v3242 = vadd.s32 %v3080, %v2985
          %v3243 = vadd.s32 %v3080, %v2986
          %v3244 = vadd.s32 %v3080, %v2987
          %v3245 = vadd.s32 %v3080, %v2988
          %v3246 = vadd.s32 %v3080, %v2989
          %v3247 = vadd.s32 %v3080, %v2990
          %v3248 = vadd.s32 %v3080, %v2991
          %v3249 = vadd.s32 %v3080, %v2992
          %v3250 = vadd.s32 %v3080, %v2993
          %v3251 = vadd.s32 %v3080, %v2994
          %v3252 = vadd.s32 %v3080, %v2995
          %v3253 = vadd.s32 %v3080, %v2996
          %v3254 = vadd.s32 %v3080, %v2997
          %v3255 = vadd.s32 %v3080, %v2998
          %v3256 = vadd.s32 %v3080, %v2999
          %v3257 = vadd.s32 %v3080, %v3000
          %v3258 = vadd.s32 %v3080, %v3001
          %v3259 = vadd.s32 %v3080, %v3002
          %v3260 = vadd.s32 %v3080, %v3003
          %v3261 = vadd.s32 %v3080, %v3004
          %v3262 = vadd.s32 %v3080, %v3005
          %v3263 = vadd.s32 %v3080, %v3006
          %v3264 = vadd.s32 %v3080, %v3007
          %v3265 = vadd.s32 %v3080, %v3008
          %v3266 = vadd.s32 %v3080, %v3009
          %v3267 = vadd.s32 %v3080, %v3010
          %v3268 = vadd.s32 %v3080, %v3011
          %v3269 = vadd.s32 %v3080, %v3012
          %v3270 = vadd.s32 %v3080, %v3013
          %v3271 = vadd.s32 %v3080, %v3014
          %v3272 = vadd.s32 %v3080, %v3015
          %v3273 = vadd.s32 %v3080, %v3016
          %v3274 = vadd.s32 %v3080, %v3017
          %v3275 = vadd.s32 %v3080, %v3018
          %v3276 = vadd.s32 %v3080, %v3019
          %v3277 = vadd.s32 %v3080, %v3020
          %v3278 = vadd.s32 %v3080, %v3021
          %v3279 = vadd.s32 %v3080, %v3022
          %v3280 = vadd.s32 %v3080, %v3023
          %v3281 = vadd.s32 %v3080, %v3024
          %v3282 = vadd.s32 %v3080, %v3025
          %v3283 = vadd.s32 %v3080, %v3026
          %v3284 = vadd.s32 %v3080, %v3027
          %v3285 = vadd.s32 %v3080, %v3028
          %v3286 = vadd.s32 %v3080, %v3029
          %v3287 = vadd.s32 %v3080, %v3030
          %v3288 = vadd.s32 %v3080, %v3031
          %v3289 = vadd.s32 %v3080, %v3032
          %v3290 = vadd.s32 %v3080, %v3033
          %v3291 = vadd.s32 %v3080, %v3034
          %v3292 = vadd.s32 %v3080, %v3035
          %v3293 = vadd.s32 %v3080, %v3036
          %v3294 = vadd.s32 %v3080, %v3037
          %v3295 = vadd.s32 %v3080, %v3038
          %v3296 = vadd.s32 %v3080, %v3039
          %v3297 = vadd.s32 %v3080, %v3040
          %v3298 = vadd.s32 %v3080, %v3041
          %v3299 = vadd.s32 %v3080, %v3042
          %v3300 = vadd.s32 %v3080, %v3043
          %v3301 = vadd.s32 %v3080, %v3044
          %v3302 = vadd.s32 %v3080, %v3045
          %v3303 = vadd.s32 %v3080, %v3046
          %v3304 = vadd.s32 %v3080, %v3047
          %v3305 = vadd.s32 %v3080, %v3048
          %v3306 = vadd.s32 %v3080, %v3049
          %v3307 = vadd.s32 %v3080, %v3050
          %v3308 = vadd.s32 %v3080, %v3051
          %v3309 = vadd.s32 %v3080, %v3052
          %v3310 = vadd.s32 %v3080, %v3053
          %v3311 = vadd.s32 %v3080, %v3054
          %v3312 = vadd.s32 %v3080, %v3055
          %v3313 = vadd.s32 %v3080, %v3056
          %v3314 = vadd.s32 %v3080, %v3057
          %v3315 = vadd.s32 %v3080, %v3058
          %v3316 = vadd.s32 %v3080, %v3059
          %v3317 = vadd.s32 %v3080, %v3060
          %v3318 = vadd.s32 %v3080, %v3061
          %v3319 = vadd.s32 %v3080, %v3062
          %v3320 = vadd.s32 %v3080, %v3063
          %v3321 = vadd.s32 %v3080, %v3064
          %v3322 = vadd.s32 %v3080, %v3065
          %v3323 = vadd.s32 %v3080, %v3066
          %v3324 = vadd.s32 %v3080, %v3067
          %v3325 = vadd.s32 %v3080, %v3068
          %v3326 = vadd.s32 %v3080, %v3069
          %v3327 = vadd.s32 %v3080, %v3070
          %v3328 = vadd.s32 %v3080, %v3071
          %v3329 = vadd.s32 %v3080, %v3072
          %v3330 = vadd.s32 %v3080, %v3073
          %v3331 = vadd.s32 %v3080, %v3074
          %v3332 = vadd.s32 %v3080, %v3075
          %v3333 = vadd.s32 %v3080, %v3076
          %v3334 = vadd.s32 %v3080, %v3077
          %v3335 = vadd.s32 %v3080, %v3078
          %v3336 = vadd.s32 %v3080, %v3079
          %vm3337 = vcmp.lt.s32.totalorder %v3081, 2552
          %vm3338 = vcmp.lt.s32.totalorder %v3082, 2552
          %vm3339 = vcmp.lt.s32.totalorder %v3083, 2552
          %vm3340 = vcmp.lt.s32.totalorder %v3084, 2552
          %vm3341 = vcmp.lt.s32.totalorder %v3085, 2552
          %vm3342 = vcmp.lt.s32.totalorder %v3086, 2552
          %vm3343 = vcmp.lt.s32.totalorder %v3087, 2552
          %vm3344 = vcmp.lt.s32.totalorder %v3088, 2552
          %vm3345 = vcmp.lt.s32.totalorder %v3089, 2552
          %vm3346 = vcmp.lt.s32.totalorder %v3090, 2552
          %vm3347 = vcmp.lt.s32.totalorder %v3091, 2552
          %vm3348 = vcmp.lt.s32.totalorder %v3092, 2552
          %vm3349 = vcmp.lt.s32.totalorder %v3093, 2552
          %vm3350 = vcmp.lt.s32.totalorder %v3094, 2552
          %vm3351 = vcmp.lt.s32.totalorder %v3095, 2552
          %vm3352 = vcmp.lt.s32.totalorder %v3096, 2552
          %vm3353 = vcmp.lt.s32.totalorder %v3097, 2552
          %vm3354 = vcmp.lt.s32.totalorder %v3098, 2552
          %vm3355 = vcmp.lt.s32.totalorder %v3099, 2552
          %vm3356 = vcmp.lt.s32.totalorder %v3100, 2552
          %vm3357 = vcmp.lt.s32.totalorder %v3101, 2552
          %vm3358 = vcmp.lt.s32.totalorder %v3102, 2552
          %vm3359 = vcmp.lt.s32.totalorder %v3103, 2552
          %vm3360 = vcmp.lt.s32.totalorder %v3104, 2552
          %vm3361 = vcmp.lt.s32.totalorder %v3105, 2552
          %vm3362 = vcmp.lt.s32.totalorder %v3106, 2552
          %vm3363 = vcmp.lt.s32.totalorder %v3107, 2552
          %vm3364 = vcmp.lt.s32.totalorder %v3108, 2552
          %vm3365 = vcmp.lt.s32.totalorder %v3109, 2552
          %vm3366 = vcmp.lt.s32.totalorder %v3110, 2552
          %vm3367 = vcmp.lt.s32.totalorder %v3111, 2552
          %vm3368 = vcmp.lt.s32.totalorder %v3112, 2552
          %vm3369 = vcmp.lt.s32.totalorder %v3113, 2552
          %vm3370 = vcmp.lt.s32.totalorder %v3114, 2552
          %vm3371 = vcmp.lt.s32.totalorder %v3115, 2552
          %vm3372 = vcmp.lt.s32.totalorder %v3116, 2552
          %vm3373 = vcmp.lt.s32.totalorder %v3117, 2552
          %vm3374 = vcmp.lt.s32.totalorder %v3118, 2552
          %vm3375 = vcmp.lt.s32.totalorder %v3119, 2552
          %vm3376 = vcmp.lt.s32.totalorder %v3120, 2552
          %vm3377 = vcmp.lt.s32.totalorder %v3121, 2552
          %vm3378 = vcmp.lt.s32.totalorder %v3122, 2552
          %vm3379 = vcmp.lt.s32.totalorder %v3123, 2552
          %vm3380 = vcmp.lt.s32.totalorder %v3124, 2552
          %vm3381 = vcmp.lt.s32.totalorder %v3125, 2552
          %vm3382 = vcmp.lt.s32.totalorder %v3126, 2552
          %vm3383 = vcmp.lt.s32.totalorder %v3127, 2552
          %vm3384 = vcmp.lt.s32.totalorder %v3128, 2552
          %vm3385 = vcmp.lt.s32.totalorder %v3129, 2552
          %vm3386 = vcmp.lt.s32.totalorder %v3130, 2552
          %vm3387 = vcmp.lt.s32.totalorder %v3131, 2552
          %vm3388 = vcmp.lt.s32.totalorder %v3132, 2552
          %vm3389 = vcmp.lt.s32.totalorder %v3133, 2552
          %vm3390 = vcmp.lt.s32.totalorder %v3134, 2552
          %vm3391 = vcmp.lt.s32.totalorder %v3135, 2552
          %vm3392 = vcmp.lt.s32.totalorder %v3136, 2552
          %vm3393 = vcmp.lt.s32.totalorder %v3137, 2552
          %vm3394 = vcmp.lt.s32.totalorder %v3138, 2552
          %vm3395 = vcmp.lt.s32.totalorder %v3139, 2552
          %vm3396 = vcmp.lt.s32.totalorder %v3140, 2552
          %vm3397 = vcmp.lt.s32.totalorder %v3141, 2552
          %vm3398 = vcmp.lt.s32.totalorder %v3142, 2552
          %vm3399 = vcmp.lt.s32.totalorder %v3143, 2552
          %vm3400 = vcmp.lt.s32.totalorder %v3144, 2552
          %vm3401 = vcmp.lt.s32.totalorder %v3145, 2552
          %vm3402 = vcmp.lt.s32.totalorder %v3146, 2552
          %vm3403 = vcmp.lt.s32.totalorder %v3147, 2552
          %vm3404 = vcmp.lt.s32.totalorder %v3148, 2552
          %vm3405 = vcmp.lt.s32.totalorder %v3149, 2552
          %vm3406 = vcmp.lt.s32.totalorder %v3150, 2552
          %vm3407 = vcmp.lt.s32.totalorder %v3151, 2552
          %vm3408 = vcmp.lt.s32.totalorder %v3152, 2552
          %vm3409 = vcmp.lt.s32.totalorder %v3153, 2552
          %vm3410 = vcmp.lt.s32.totalorder %v3154, 2552
          %vm3411 = vcmp.lt.s32.totalorder %v3155, 2552
          %vm3412 = vcmp.lt.s32.totalorder %v3156, 2552
          %vm3413 = vcmp.lt.s32.totalorder %v3157, 2552
          %vm3414 = vcmp.lt.s32.totalorder %v3158, 2552
          %vm3415 = vcmp.lt.s32.totalorder %v3159, 2552
          %vm3416 = vcmp.lt.s32.totalorder %v3160, 2552
          %vm3417 = vcmp.lt.s32.totalorder %v3161, 2552
          %vm3418 = vcmp.lt.s32.totalorder %v3162, 2552
          %vm3419 = vcmp.lt.s32.totalorder %v3163, 2552
          %vm3420 = vcmp.lt.s32.totalorder %v3164, 2552
          %vm3421 = vcmp.lt.s32.totalorder %v3165, 2552
          %vm3422 = vcmp.lt.s32.totalorder %v3166, 2552
          %vm3423 = vcmp.lt.s32.totalorder %v3167, 2552
          %vm3424 = vcmp.lt.s32.totalorder %v3168, 2552
          %vm3425 = vcmp.lt.s32.totalorder %v3169, 2552
          %vm3426 = vcmp.lt.s32.totalorder %v3170, 2552
          %vm3427 = vcmp.lt.s32.totalorder %v3171, 2552
          %vm3428 = vcmp.lt.s32.totalorder %v3172, 2552
          %vm3429 = vcmp.lt.s32.totalorder %v3173, 2552
          %vm3430 = vcmp.lt.s32.totalorder %v3174, 2552
          %vm3431 = vcmp.lt.s32.totalorder %v3175, 2552
          %vm3432 = vcmp.lt.s32.totalorder %v3176, 2552
          %vm3433 = vcmp.lt.s32.totalorder %v3177, 2552
          %vm3434 = vcmp.lt.s32.totalorder %v3178, 2552
          %vm3435 = vcmp.lt.s32.totalorder %v3179, 2552
          %vm3436 = vcmp.lt.s32.totalorder %v3180, 2552
          %vm3437 = vcmp.lt.s32.totalorder %v3181, 2552
          %vm3438 = vcmp.lt.s32.totalorder %v3182, 2552
          %vm3439 = vcmp.lt.s32.totalorder %v3183, 2552
          %vm3440 = vcmp.lt.s32.totalorder %v3184, 2552
          %vm3441 = vcmp.lt.s32.totalorder %v3185, 2552
          %vm3442 = vcmp.lt.s32.totalorder %v3186, 2552
          %vm3443 = vcmp.lt.s32.totalorder %v3187, 2552
          %vm3444 = vcmp.lt.s32.totalorder %v3188, 2552
          %vm3445 = vcmp.lt.s32.totalorder %v3189, 2552
          %vm3446 = vcmp.lt.s32.totalorder %v3190, 2552
          %vm3447 = vcmp.lt.s32.totalorder %v3191, 2552
          %vm3448 = vcmp.lt.s32.totalorder %v3192, 2552
          %vm3449 = vcmp.lt.s32.totalorder %v3193, 2552
          %vm3450 = vcmp.lt.s32.totalorder %v3194, 2552
          %vm3451 = vcmp.lt.s32.totalorder %v3195, 2552
          %vm3452 = vcmp.lt.s32.totalorder %v3196, 2552
          %vm3453 = vcmp.lt.s32.totalorder %v3197, 2552
          %vm3454 = vcmp.lt.s32.totalorder %v3198, 2552
          %vm3455 = vcmp.lt.s32.totalorder %v3199, 2552
          %vm3456 = vcmp.lt.s32.totalorder %v3200, 2552
          %vm3457 = vcmp.lt.s32.totalorder %v3201, 2552
          %vm3458 = vcmp.lt.s32.totalorder %v3202, 2552
          %vm3459 = vcmp.lt.s32.totalorder %v3203, 2552
          %vm3460 = vcmp.lt.s32.totalorder %v3204, 2552
          %vm3461 = vcmp.lt.s32.totalorder %v3205, 2552
          %vm3462 = vcmp.lt.s32.totalorder %v3206, 2552
          %vm3463 = vcmp.lt.s32.totalorder %v3207, 2552
          %vm3464 = vcmp.lt.s32.totalorder %v3208, 2552
          %vm3465 = vcmp.lt.s32.totalorder %v3209, 2552
          %vm3466 = vcmp.lt.s32.totalorder %v3210, 2552
          %vm3467 = vcmp.lt.s32.totalorder %v3211, 2552
          %vm3468 = vcmp.lt.s32.totalorder %v3212, 2552
          %vm3469 = vcmp.lt.s32.totalorder %v3213, 2552
          %vm3470 = vcmp.lt.s32.totalorder %v3214, 2552
          %vm3471 = vcmp.lt.s32.totalorder %v3215, 2552
          %vm3472 = vcmp.lt.s32.totalorder %v3216, 2552
          %vm3473 = vcmp.lt.s32.totalorder %v3217, 2552
          %vm3474 = vcmp.lt.s32.totalorder %v3218, 2552
          %vm3475 = vcmp.lt.s32.totalorder %v3219, 2552
          %vm3476 = vcmp.lt.s32.totalorder %v3220, 2552
          %vm3477 = vcmp.lt.s32.totalorder %v3221, 2552
          %vm3478 = vcmp.lt.s32.totalorder %v3222, 2552
          %vm3479 = vcmp.lt.s32.totalorder %v3223, 2552
          %vm3480 = vcmp.lt.s32.totalorder %v3224, 2552
          %vm3481 = vcmp.lt.s32.totalorder %v3225, 2552
          %vm3482 = vcmp.lt.s32.totalorder %v3226, 2552
          %vm3483 = vcmp.lt.s32.totalorder %v3227, 2552
          %vm3484 = vcmp.lt.s32.totalorder %v3228, 2552
          %vm3485 = vcmp.lt.s32.totalorder %v3229, 2552
          %vm3486 = vcmp.lt.s32.totalorder %v3230, 2552
          %vm3487 = vcmp.lt.s32.totalorder %v3231, 2552
          %vm3488 = vcmp.lt.s32.totalorder %v3232, 2552
          %vm3489 = vcmp.lt.s32.totalorder %v3233, 2552
          %vm3490 = vcmp.lt.s32.totalorder %v3234, 2552
          %vm3491 = vcmp.lt.s32.totalorder %v3235, 2552
          %vm3492 = vcmp.lt.s32.totalorder %v3236, 2552
          %vm3493 = vcmp.lt.s32.totalorder %v3237, 2552
          %vm3494 = vcmp.lt.s32.totalorder %v3238, 2552
          %vm3495 = vcmp.lt.s32.totalorder %v3239, 2552
          %vm3496 = vcmp.lt.s32.totalorder %v3240, 2552
          %vm3497 = vcmp.lt.s32.totalorder %v3241, 2552
          %vm3498 = vcmp.lt.s32.totalorder %v3242, 2552
          %vm3499 = vcmp.lt.s32.totalorder %v3243, 2552
          %vm3500 = vcmp.lt.s32.totalorder %v3244, 2552
          %vm3501 = vcmp.lt.s32.totalorder %v3245, 2552
          %vm3502 = vcmp.lt.s32.totalorder %v3246, 2552
          %vm3503 = vcmp.lt.s32.totalorder %v3247, 2552
          %vm3504 = vcmp.lt.s32.totalorder %v3248, 2552
          %vm3505 = vcmp.lt.s32.totalorder %v3249, 2552
          %vm3506 = vcmp.lt.s32.totalorder %v3250, 2552
          %vm3507 = vcmp.lt.s32.totalorder %v3251, 2552
          %vm3508 = vcmp.lt.s32.totalorder %v3252, 2552
          %vm3509 = vcmp.lt.s32.totalorder %v3253, 2552
          %vm3510 = vcmp.lt.s32.totalorder %v3254, 2552
          %vm3511 = vcmp.lt.s32.totalorder %v3255, 2552
          %vm3512 = vcmp.lt.s32.totalorder %v3256, 2552
          %vm3513 = vcmp.lt.s32.totalorder %v3257, 2552
          %vm3514 = vcmp.lt.s32.totalorder %v3258, 2552
          %vm3515 = vcmp.lt.s32.totalorder %v3259, 2552
          %vm3516 = vcmp.lt.s32.totalorder %v3260, 2552
          %vm3517 = vcmp.lt.s32.totalorder %v3261, 2552
          %vm3518 = vcmp.lt.s32.totalorder %v3262, 2552
          %vm3519 = vcmp.lt.s32.totalorder %v3263, 2552
          %vm3520 = vcmp.lt.s32.totalorder %v3264, 2552
          %vm3521 = vcmp.lt.s32.totalorder %v3265, 2552
          %vm3522 = vcmp.lt.s32.totalorder %v3266, 2552
          %vm3523 = vcmp.lt.s32.totalorder %v3267, 2552
          %vm3524 = vcmp.lt.s32.totalorder %v3268, 2552
          %vm3525 = vcmp.lt.s32.totalorder %v3269, 2552
          %vm3526 = vcmp.lt.s32.totalorder %v3270, 2552
          %vm3527 = vcmp.lt.s32.totalorder %v3271, 2552
          %vm3528 = vcmp.lt.s32.totalorder %v3272, 2552
          %vm3529 = vcmp.lt.s32.totalorder %v3273, 2552
          %vm3530 = vcmp.lt.s32.totalorder %v3274, 2552
          %vm3531 = vcmp.lt.s32.totalorder %v3275, 2552
          %vm3532 = vcmp.lt.s32.totalorder %v3276, 2552
          %vm3533 = vcmp.lt.s32.totalorder %v3277, 2552
          %vm3534 = vcmp.lt.s32.totalorder %v3278, 2552
          %vm3535 = vcmp.lt.s32.totalorder %v3279, 2552
          %vm3536 = vcmp.lt.s32.totalorder %v3280, 2552
          %vm3537 = vcmp.lt.s32.totalorder %v3281, 2552
          %vm3538 = vcmp.lt.s32.totalorder %v3282, 2552
          %vm3539 = vcmp.lt.s32.totalorder %v3283, 2552
          %vm3540 = vcmp.lt.s32.totalorder %v3284, 2552
          %vm3541 = vcmp.lt.s32.totalorder %v3285, 2552
          %vm3542 = vcmp.lt.s32.totalorder %v3286, 2552
          %vm3543 = vcmp.lt.s32.totalorder %v3287, 2552
          %vm3544 = vcmp.lt.s32.totalorder %v3288, 2552
          %vm3545 = vcmp.lt.s32.totalorder %v3289, 2552
          %vm3546 = vcmp.lt.s32.totalorder %v3290, 2552
          %vm3547 = vcmp.lt.s32.totalorder %v3291, 2552
          %vm3548 = vcmp.lt.s32.totalorder %v3292, 2552
          %vm3549 = vcmp.lt.s32.totalorder %v3293, 2552
          %vm3550 = vcmp.lt.s32.totalorder %v3294, 2552
          %vm3551 = vcmp.lt.s32.totalorder %v3295, 2552
          %vm3552 = vcmp.lt.s32.totalorder %v3296, 2552
          %vm3553 = vcmp.lt.s32.totalorder %v3297, 2552
          %vm3554 = vcmp.lt.s32.totalorder %v3298, 2552
          %vm3555 = vcmp.lt.s32.totalorder %v3299, 2552
          %vm3556 = vcmp.lt.s32.totalorder %v3300, 2552
          %vm3557 = vcmp.lt.s32.totalorder %v3301, 2552
          %vm3558 = vcmp.lt.s32.totalorder %v3302, 2552
          %vm3559 = vcmp.lt.s32.totalorder %v3303, 2552
          %vm3560 = vcmp.lt.s32.totalorder %v3304, 2552
          %vm3561 = vcmp.lt.s32.totalorder %v3305, 2552
          %vm3562 = vcmp.lt.s32.totalorder %v3306, 2552
          %vm3563 = vcmp.lt.s32.totalorder %v3307, 2552
          %vm3564 = vcmp.lt.s32.totalorder %v3308, 2552
          %vm3565 = vcmp.lt.s32.totalorder %v3309, 2552
          %vm3566 = vcmp.lt.s32.totalorder %v3310, 2552
          %vm3567 = vcmp.lt.s32.totalorder %v3311, 2552
          %vm3568 = vcmp.lt.s32.totalorder %v3312, 2552
          %vm3569 = vcmp.lt.s32.totalorder %v3313, 2552
          %vm3570 = vcmp.lt.s32.totalorder %v3314, 2552
          %vm3571 = vcmp.lt.s32.totalorder %v3315, 2552
          %vm3572 = vcmp.lt.s32.totalorder %v3316, 2552
          %vm3573 = vcmp.lt.s32.totalorder %v3317, 2552
          %vm3574 = vcmp.lt.s32.totalorder %v3318, 2552
          %vm3575 = vcmp.lt.s32.totalorder %v3319, 2552
          %vm3576 = vcmp.lt.s32.totalorder %v3320, 2552
          %vm3577 = vcmp.lt.s32.totalorder %v3321, 2552
          %vm3578 = vcmp.lt.s32.totalorder %v3322, 2552
          %vm3579 = vcmp.lt.s32.totalorder %v3323, 2552
          %vm3580 = vcmp.lt.s32.totalorder %v3324, 2552
          %vm3581 = vcmp.lt.s32.totalorder %v3325, 2552
          %vm3582 = vcmp.lt.s32.totalorder %v3326, 2552
          %vm3583 = vcmp.lt.s32.totalorder %v3327, 2552
          %vm3584 = vcmp.lt.s32.totalorder %v3328, 2552
          %vm3585 = vcmp.lt.s32.totalorder %v3329, 2552
          %vm3586 = vcmp.lt.s32.totalorder %v3330, 2552
          %vm3587 = vcmp.lt.s32.totalorder %v3331, 2552
          %vm3588 = vcmp.lt.s32.totalorder %v3332, 2552
          %vm3589 = vcmp.lt.s32.totalorder %v3333, 2552
          %vm3590 = vcmp.lt.s32.totalorder %v3334, 2552
          %vm3591 = vcmp.lt.s32.totalorder %v3335, 2552
          %vm3592 = vcmp.lt.s32.totalorder %v3336, 2552
          %v3593 = vsel %vm3337, %v2298, 0.0
          %v3594 = vsel %vm3338, %v2299, 0.0
          %v3595 = vsel %vm3339, %v2300, 0.0
          %v3596 = vsel %vm3340, %v2301, 0.0
          %v3597 = vsel %vm3341, %v2302, 0.0
          %v3598 = vsel %vm3342, %v2303, 0.0
          %v3599 = vsel %vm3343, %v2304, 0.0
          %v3600 = vsel %vm3344, %v2305, 0.0
          %v3601 = vsel %vm3345, %v2306, 0.0
          %v3602 = vsel %vm3346, %v2307, 0.0
          %v3603 = vsel %vm3347, %v2308, 0.0
          %v3604 = vsel %vm3348, %v2309, 0.0
          %v3605 = vsel %vm3349, %v2310, 0.0
          %v3606 = vsel %vm3350, %v2311, 0.0
          %v3607 = vsel %vm3351, %v2312, 0.0
          %v3608 = vsel %vm3352, %v2313, 0.0
          %v3609 = vsel %vm3353, %v2314, 0.0
          %v3610 = vsel %vm3354, %v2315, 0.0
          %v3611 = vsel %vm3355, %v2316, 0.0
          %v3612 = vsel %vm3356, %v2317, 0.0
          %v3613 = vsel %vm3357, %v2318, 0.0
          %v3614 = vsel %vm3358, %v2319, 0.0
          %v3615 = vsel %vm3359, %v2320, 0.0
          %v3616 = vsel %vm3360, %v2321, 0.0
          %v3617 = vsel %vm3361, %v2322, 0.0
          %v3618 = vsel %vm3362, %v2323, 0.0
          %v3619 = vsel %vm3363, %v2324, 0.0
          %v3620 = vsel %vm3364, %v2325, 0.0
          %v3621 = vsel %vm3365, %v2326, 0.0
          %v3622 = vsel %vm3366, %v2327, 0.0
          %v3623 = vsel %vm3367, %v2328, 0.0
          %v3624 = vsel %vm3368, %v2329, 0.0
          %v3625 = vsel %vm3369, %v2330, 0.0
          %v3626 = vsel %vm3370, %v2331, 0.0
          %v3627 = vsel %vm3371, %v2332, 0.0
          %v3628 = vsel %vm3372, %v2333, 0.0
          %v3629 = vsel %vm3373, %v2334, 0.0
          %v3630 = vsel %vm3374, %v2335, 0.0
          %v3631 = vsel %vm3375, %v2336, 0.0
          %v3632 = vsel %vm3376, %v2337, 0.0
          %v3633 = vsel %vm3377, %v2338, 0.0
          %v3634 = vsel %vm3378, %v2339, 0.0
          %v3635 = vsel %vm3379, %v2340, 0.0
          %v3636 = vsel %vm3380, %v2341, 0.0
          %v3637 = vsel %vm3381, %v2342, 0.0
          %v3638 = vsel %vm3382, %v2343, 0.0
          %v3639 = vsel %vm3383, %v2344, 0.0
          %v3640 = vsel %vm3384, %v2345, 0.0
          %v3641 = vsel %vm3385, %v2346, 0.0
          %v3642 = vsel %vm3386, %v2347, 0.0
          %v3643 = vsel %vm3387, %v2348, 0.0
          %v3644 = vsel %vm3388, %v2349, 0.0
          %v3645 = vsel %vm3389, %v2350, 0.0
          %v3646 = vsel %vm3390, %v2351, 0.0
          %v3647 = vsel %vm3391, %v2352, 0.0
          %v3648 = vsel %vm3392, %v2353, 0.0
          %v3649 = vsel %vm3393, %v2354, 0.0
          %v3650 = vsel %vm3394, %v2355, 0.0
          %v3651 = vsel %vm3395, %v2356, 0.0
          %v3652 = vsel %vm3396, %v2357, 0.0
          %v3653 = vsel %vm3397, %v2358, 0.0
          %v3654 = vsel %vm3398, %v2359, 0.0
          %v3655 = vsel %vm3399, %v2360, 0.0
          %v3656 = vsel %vm3400, %v2361, 0.0
          %v3657 = vsel %vm3401, %v2362, 0.0
          %v3658 = vsel %vm3402, %v2363, 0.0
          %v3659 = vsel %vm3403, %v2364, 0.0
          %v3660 = vsel %vm3404, %v2365, 0.0
          %v3661 = vsel %vm3405, %v2366, 0.0
          %v3662 = vsel %vm3406, %v2367, 0.0
          %v3663 = vsel %vm3407, %v2368, 0.0
          %v3664 = vsel %vm3408, %v2369, 0.0
          %v3665 = vsel %vm3409, %v2370, 0.0
          %v3666 = vsel %vm3410, %v2371, 0.0
          %v3667 = vsel %vm3411, %v2372, 0.0
          %v3668 = vsel %vm3412, %v2373, 0.0
          %v3669 = vsel %vm3413, %v2374, 0.0
          %v3670 = vsel %vm3414, %v2375, 0.0
          %v3671 = vsel %vm3415, %v2376, 0.0
          %v3672 = vsel %vm3416, %v2377, 0.0
          %v3673 = vsel %vm3417, %v2378, 0.0
          %v3674 = vsel %vm3418, %v2379, 0.0
          %v3675 = vsel %vm3419, %v2380, 0.0
          %v3676 = vsel %vm3420, %v2381, 0.0
          %v3677 = vsel %vm3421, %v2382, 0.0
          %v3678 = vsel %vm3422, %v2383, 0.0
          %v3679 = vsel %vm3423, %v2384, 0.0
          %v3680 = vsel %vm3424, %v2385, 0.0
          %v3681 = vsel %vm3425, %v2386, 0.0
          %v3682 = vsel %vm3426, %v2387, 0.0
          %v3683 = vsel %vm3427, %v2388, 0.0
          %v3684 = vsel %vm3428, %v2389, 0.0
          %v3685 = vsel %vm3429, %v2390, 0.0
          %v3686 = vsel %vm3430, %v2391, 0.0
          %v3687 = vsel %vm3431, %v2392, 0.0
          %v3688 = vsel %vm3432, %v2393, 0.0
          %v3689 = vsel %vm3433, %v2394, 0.0
          %v3690 = vsel %vm3434, %v2395, 0.0
          %v3691 = vsel %vm3435, %v2396, 0.0
          %v3692 = vsel %vm3436, %v2397, 0.0
          %v3693 = vsel %vm3437, %v2398, 0.0
          %v3694 = vsel %vm3438, %v2399, 0.0
          %v3695 = vsel %vm3439, %v2400, 0.0
          %v3696 = vsel %vm3440, %v2401, 0.0
          %v3697 = vsel %vm3441, %v2402, 0.0
          %v3698 = vsel %vm3442, %v2403, 0.0
          %v3699 = vsel %vm3443, %v2404, 0.0
          %v3700 = vsel %vm3444, %v2405, 0.0
          %v3701 = vsel %vm3445, %v2406, 0.0
          %v3702 = vsel %vm3446, %v2407, 0.0
          %v3703 = vsel %vm3447, %v2408, 0.0
          %v3704 = vsel %vm3448, %v2409, 0.0
          %v3705 = vsel %vm3449, %v2410, 0.0
          %v3706 = vsel %vm3450, %v2411, 0.0
          %v3707 = vsel %vm3451, %v2412, 0.0
          %v3708 = vsel %vm3452, %v2413, 0.0
          %v3709 = vsel %vm3453, %v2414, 0.0
          %v3710 = vsel %vm3454, %v2415, 0.0
          %v3711 = vsel %vm3455, %v2416, 0.0
          %v3712 = vsel %vm3456, %v2417, 0.0
          %v3713 = vsel %vm3457, %v2418, 0.0
          %v3714 = vsel %vm3458, %v2419, 0.0
          %v3715 = vsel %vm3459, %v2420, 0.0
          %v3716 = vsel %vm3460, %v2421, 0.0
          %v3717 = vsel %vm3461, %v2422, 0.0
          %v3718 = vsel %vm3462, %v2423, 0.0
          %v3719 = vsel %vm3463, %v2424, 0.0
          %v3720 = vsel %vm3464, %v2425, 0.0
          %v3721 = vsel %vm3465, %v2426, 0.0
          %v3722 = vsel %vm3466, %v2427, 0.0
          %v3723 = vsel %vm3467, %v2428, 0.0
          %v3724 = vsel %vm3468, %v2429, 0.0
          %v3725 = vsel %vm3469, %v2430, 0.0
          %v3726 = vsel %vm3470, %v2431, 0.0
          %v3727 = vsel %vm3471, %v2432, 0.0
          %v3728 = vsel %vm3472, %v2433, 0.0
          %v3729 = vsel %vm3473, %v2434, 0.0
          %v3730 = vsel %vm3474, %v2435, 0.0
          %v3731 = vsel %vm3475, %v2436, 0.0
          %v3732 = vsel %vm3476, %v2437, 0.0
          %v3733 = vsel %vm3477, %v2438, 0.0
          %v3734 = vsel %vm3478, %v2439, 0.0
          %v3735 = vsel %vm3479, %v2440, 0.0
          %v3736 = vsel %vm3480, %v2441, 0.0
          %v3737 = vsel %vm3481, %v2442, 0.0
          %v3738 = vsel %vm3482, %v2443, 0.0
          %v3739 = vsel %vm3483, %v2444, 0.0
          %v3740 = vsel %vm3484, %v2445, 0.0
          %v3741 = vsel %vm3485, %v2446, 0.0
          %v3742 = vsel %vm3486, %v2447, 0.0
          %v3743 = vsel %vm3487, %v2448, 0.0
          %v3744 = vsel %vm3488, %v2449, 0.0
          %v3745 = vsel %vm3489, %v2450, 0.0
          %v3746 = vsel %vm3490, %v2451, 0.0
          %v3747 = vsel %vm3491, %v2452, 0.0
          %v3748 = vsel %vm3492, %v2453, 0.0
          %v3749 = vsel %vm3493, %v2454, 0.0
          %v3750 = vsel %vm3494, %v2455, 0.0
          %v3751 = vsel %vm3495, %v2456, 0.0
          %v3752 = vsel %vm3496, %v2457, 0.0
          %v3753 = vsel %vm3497, %v2458, 0.0
          %v3754 = vsel %vm3498, %v2459, 0.0
          %v3755 = vsel %vm3499, %v2460, 0.0
          %v3756 = vsel %vm3500, %v2461, 0.0
          %v3757 = vsel %vm3501, %v2462, 0.0
          %v3758 = vsel %vm3502, %v2463, 0.0
          %v3759 = vsel %vm3503, %v2464, 0.0
          %v3760 = vsel %vm3504, %v2465, 0.0
          %v3761 = vsel %vm3505, %v2466, 0.0
          %v3762 = vsel %vm3506, %v2467, 0.0
          %v3763 = vsel %vm3507, %v2468, 0.0
          %v3764 = vsel %vm3508, %v2469, 0.0
          %v3765 = vsel %vm3509, %v2470, 0.0
          %v3766 = vsel %vm3510, %v2471, 0.0
          %v3767 = vsel %vm3511, %v2472, 0.0
          %v3768 = vsel %vm3512, %v2473, 0.0
          %v3769 = vsel %vm3513, %v2474, 0.0
          %v3770 = vsel %vm3514, %v2475, 0.0
          %v3771 = vsel %vm3515, %v2476, 0.0
          %v3772 = vsel %vm3516, %v2477, 0.0
          %v3773 = vsel %vm3517, %v2478, 0.0
          %v3774 = vsel %vm3518, %v2479, 0.0
          %v3775 = vsel %vm3519, %v2480, 0.0
          %v3776 = vsel %vm3520, %v2481, 0.0
          %v3777 = vsel %vm3521, %v2482, 0.0
          %v3778 = vsel %vm3522, %v2483, 0.0
          %v3779 = vsel %vm3523, %v2484, 0.0
          %v3780 = vsel %vm3524, %v2485, 0.0
          %v3781 = vsel %vm3525, %v2486, 0.0
          %v3782 = vsel %vm3526, %v2487, 0.0
          %v3783 = vsel %vm3527, %v2488, 0.0
          %v3784 = vsel %vm3528, %v2489, 0.0
          %v3785 = vsel %vm3529, %v2490, 0.0
          %v3786 = vsel %vm3530, %v2491, 0.0
          %v3787 = vsel %vm3531, %v2492, 0.0
          %v3788 = vsel %vm3532, %v2493, 0.0
          %v3789 = vsel %vm3533, %v2494, 0.0
          %v3790 = vsel %vm3534, %v2495, 0.0
          %v3791 = vsel %vm3535, %v2496, 0.0
          %v3792 = vsel %vm3536, %v2497, 0.0
          %v3793 = vsel %vm3537, %v2498, 0.0
          %v3794 = vsel %vm3538, %v2499, 0.0
          %v3795 = vsel %vm3539, %v2500, 0.0
          %v3796 = vsel %vm3540, %v2501, 0.0
          %v3797 = vsel %vm3541, %v2502, 0.0
          %v3798 = vsel %vm3542, %v2503, 0.0
          %v3799 = vsel %vm3543, %v2504, 0.0
          %v3800 = vsel %vm3544, %v2505, 0.0
          %v3801 = vsel %vm3545, %v2506, 0.0
          %v3802 = vsel %vm3546, %v2507, 0.0
          %v3803 = vsel %vm3547, %v2508, 0.0
          %v3804 = vsel %vm3548, %v2509, 0.0
          %v3805 = vsel %vm3549, %v2510, 0.0
          %v3806 = vsel %vm3550, %v2511, 0.0
          %v3807 = vsel %vm3551, %v2512, 0.0
          %v3808 = vsel %vm3552, %v2513, 0.0
          %v3809 = vsel %vm3553, %v2514, 0.0
          %v3810 = vsel %vm3554, %v2515, 0.0
          %v3811 = vsel %vm3555, %v2516, 0.0
          %v3812 = vsel %vm3556, %v2517, 0.0
          %v3813 = vsel %vm3557, %v2518, 0.0
          %v3814 = vsel %vm3558, %v2519, 0.0
          %v3815 = vsel %vm3559, %v2520, 0.0
          %v3816 = vsel %vm3560, %v2521, 0.0
          %v3817 = vsel %vm3561, %v2522, 0.0
          %v3818 = vsel %vm3562, %v2523, 0.0
          %v3819 = vsel %vm3563, %v2524, 0.0
          %v3820 = vsel %vm3564, %v2525, 0.0
          %v3821 = vsel %vm3565, %v2526, 0.0
          %v3822 = vsel %vm3566, %v2527, 0.0
          %v3823 = vsel %vm3567, %v2528, 0.0
          %v3824 = vsel %vm3568, %v2529, 0.0
          %v3825 = vsel %vm3569, %v2530, 0.0
          %v3826 = vsel %vm3570, %v2531, 0.0
          %v3827 = vsel %vm3571, %v2532, 0.0
          %v3828 = vsel %vm3572, %v2533, 0.0
          %v3829 = vsel %vm3573, %v2534, 0.0
          %v3830 = vsel %vm3574, %v2535, 0.0
          %v3831 = vsel %vm3575, %v2536, 0.0
          %v3832 = vsel %vm3576, %v2537, 0.0
          %v3833 = vsel %vm3577, %v2538, 0.0
          %v3834 = vsel %vm3578, %v2539, 0.0
          %v3835 = vsel %vm3579, %v2540, 0.0
          %v3836 = vsel %vm3580, %v2541, 0.0
          %v3837 = vsel %vm3581, %v2542, 0.0
          %v3838 = vsel %vm3582, %v2543, 0.0
          %v3839 = vsel %vm3583, %v2544, 0.0
          %v3840 = vsel %vm3584, %v2545, 0.0
          %v3841 = vsel %vm3585, %v2546, 0.0
          %v3842 = vsel %vm3586, %v2547, 0.0
          %v3843 = vsel %vm3587, %v2548, 0.0
          %v3844 = vsel %vm3588, %v2549, 0.0
          %v3845 = vsel %vm3589, %v2550, 0.0
          %v3846 = vsel %vm3590, %v2551, 0.0
          %v3847 = vsel %vm3591, %v2552, 0.0
          %v3848 = vsel %vm3592, %v2553, 0.0
          %v3849 = vld [vmem:[#allocation7] sm:$0xff]
          %v3850 = vadd.f32 %v3593, %v3594
          %v3851 = vadd.f32 %v3850, %v3595
          %v3852 = vadd.f32 %v3851, %v3596
          %v3853 = vadd.f32 %v3852, %v3597
          %v3854 = vadd.f32 %v3853, %v3598
          %v3855 = vadd.f32 %v3854, %v3599
          %v3856 = vadd.f32 %v3855, %v3600
          %v3857 = vadd.f32 %v3856, %v3601
          %v3858 = vadd.f32 %v3857, %v3602
          %v3859 = vadd.f32 %v3858, %v3603
          %v3860 = vadd.f32 %v3859, %v3604
          %v3861 = vadd.f32 %v3860, %v3605
          %v3862 = vadd.f32 %v3861, %v3606
          %v3863 = vadd.f32 %v3862, %v3607
          %v3864 = vadd.f32 %v3863, %v3608
          %v3865 = vadd.f32 %v3864, %v3609
          %v3866 = vadd.f32 %v3865, %v3610
          %v3867 = vadd.f32 %v3866, %v3611
          %v3868 = vadd.f32 %v3867, %v3612
          %v3869 = vadd.f32 %v3868, %v3613
          %v3870 = vadd.f32 %v3869, %v3614
          %v3871 = vadd.f32 %v3870, %v3615
          %v3872 = vadd.f32 %v3871, %v3616
          %v3873 = vadd.f32 %v3872, %v3617
          %v3874 = vadd.f32 %v3873, %v3618
          %v3875 = vadd.f32 %v3874, %v3619
          %v3876 = vadd.f32 %v3875, %v3620
          %v3877 = vadd.f32 %v3876, %v3621
          %v3878 = vadd.f32 %v3877, %v3622
          %v3879 = vadd.f32 %v3878, %v3623
          %v3880 = vadd.f32 %v3879, %v3624
          %v3881 = vadd.f32 %v3880, %v3625
          %v3882 = vadd.f32 %v3881, %v3626
          %v3883 = vadd.f32 %v3882, %v3627
          %v3884 = vadd.f32 %v3883, %v3628
          %v3885 = vadd.f32 %v3884, %v3629
          %v3886 = vadd.f32 %v3885, %v3630
          %v3887 = vadd.f32 %v3886, %v3631
          %v3888 = vadd.f32 %v3887, %v3632
          %v3889 = vadd.f32 %v3888, %v3633
          %v3890 = vadd.f32 %v3889, %v3634
          %v3891 = vadd.f32 %v3890, %v3635
          %v3892 = vadd.f32 %v3891, %v3636
          %v3893 = vadd.f32 %v3892, %v3637
          %v3894 = vadd.f32 %v3893, %v3638
          %v3895 = vadd.f32 %v3894, %v3639
          %v3896 = vadd.f32 %v3895, %v3640
          %v3897 = vadd.f32 %v3896, %v3641
          %v3898 = vadd.f32 %v3897, %v3642
          %v3899 = vadd.f32 %v3898, %v3643
          %v3900 = vadd.f32 %v3899, %v3644
          %v3901 = vadd.f32 %v3900, %v3645
          %v3902 = vadd.f32 %v3901, %v3646
          %v3903 = vadd.f32 %v3902, %v3647
          %v3904 = vadd.f32 %v3903, %v3648
          %v3905 = vadd.f32 %v3904, %v3649
          %v3906 = vadd.f32 %v3905, %v3650
          %v3907 = vadd.f32 %v3906, %v3651
          %v3908 = vadd.f32 %v3907, %v3652
          %v3909 = vadd.f32 %v3908, %v3653
          %v3910 = vadd.f32 %v3909, %v3654
          %v3911 = vadd.f32 %v3910, %v3655
          %v3912 = vadd.f32 %v3911, %v3656
          %v3913 = vadd.f32 %v3912, %v3657
          %v3914 = vadd.f32 %v3913, %v3658
          %v3915 = vadd.f32 %v3914, %v3659
          %v3916 = vadd.f32 %v3915, %v3660
          %v3917 = vadd.f32 %v3916, %v3661
          %v3918 = vadd.f32 %v3917, %v3662
          %v3919 = vadd.f32 %v3918, %v3663
          %v3920 = vadd.f32 %v3919, %v3664
          %v3921 = vadd.f32 %v3920, %v3665
          %v3922 = vadd.f32 %v3921, %v3666
          %v3923 = vadd.f32 %v3922, %v3667
          %v3924 = vadd.f32 %v3923, %v3668
          %v3925 = vadd.f32 %v3924, %v3669
          %v3926 = vadd.f32 %v3925, %v3670
          %v3927 = vadd.f32 %v3926, %v3671
          %v3928 = vadd.f32 %v3927, %v3672
          %v3929 = vadd.f32 %v3928, %v3673
          %v3930 = vadd.f32 %v3929, %v3674
          %v3931 = vadd.f32 %v3930, %v3675
          %v3932 = vadd.f32 %v3931, %v3676
          %v3933 = vadd.f32 %v3932, %v3677
          %v3934 = vadd.f32 %v3933, %v3678
          %v3935 = vadd.f32 %v3934, %v3679
          %v3936 = vadd.f32 %v3935, %v3680
          %v3937 = vadd.f32 %v3936, %v3681
          %v3938 = vadd.f32 %v3937, %v3682
          %v3939 = vadd.f32 %v3938, %v3683
          %v3940 = vadd.f32 %v3939, %v3684
          %v3941 = vadd.f32 %v3940, %v3685
          %v3942 = vadd.f32 %v3941, %v3686
          %v3943 = vadd.f32 %v3942, %v3687
          %v3944 = vadd.f32 %v3943, %v3688
          %v3945 = vadd.f32 %v3944, %v3689
          %v3946 = vadd.f32 %v3945, %v3690
          %v3947 = vadd.f32 %v3946, %v3691
          %v3948 = vadd.f32 %v3947, %v3692
          %v3949 = vadd.f32 %v3948, %v3693
          %v3950 = vadd.f32 %v3949, %v3694
          %v3951 = vadd.f32 %v3950, %v3695
          %v3952 = vadd.f32 %v3951, %v3696
          %v3953 = vadd.f32 %v3952, %v3697
          %v3954 = vadd.f32 %v3953, %v3698
          %v3955 = vadd.f32 %v3954, %v3699
          %v3956 = vadd.f32 %v3955, %v3700
          %v3957 = vadd.f32 %v3956, %v3701
          %v3958 = vadd.f32 %v3957, %v3702
          %v3959 = vadd.f32 %v3958, %v3703
          %v3960 = vadd.f32 %v3959, %v3704
          %v3961 = vadd.f32 %v3960, %v3705
          %v3962 = vadd.f32 %v3961, %v3706
          %v3963 = vadd.f32 %v3962, %v3707
          %v3964 = vadd.f32 %v3963, %v3708
          %v3965 = vadd.f32 %v3964, %v3709
          %v3966 = vadd.f32 %v3965, %v3710
          %v3967 = vadd.f32 %v3966, %v3711
          %v3968 = vadd.f32 %v3967, %v3712
          %v3969 = vadd.f32 %v3968, %v3713
          %v3970 = vadd.f32 %v3969, %v3714
          %v3971 = vadd.f32 %v3970, %v3715
          %v3972 = vadd.f32 %v3971, %v3716
          %v3973 = vadd.f32 %v3972, %v3717
          %v3974 = vadd.f32 %v3973, %v3718
          %v3975 = vadd.f32 %v3974, %v3719
          %v3976 = vadd.f32 %v3975, %v3720
          %v3977 = vadd.f32 %v3976, %v3721
          %v3978 = vadd.f32 %v3977, %v3722
          %v3979 = vadd.f32 %v3978, %v3723
          %v3980 = vadd.f32 %v3979, %v3724
          %v3981 = vadd.f32 %v3980, %v3725
          %v3982 = vadd.f32 %v3981, %v3726
          %v3983 = vadd.f32 %v3982, %v3727
          %v3984 = vadd.f32 %v3983, %v3728
          %v3985 = vadd.f32 %v3984, %v3729
          %v3986 = vadd.f32 %v3985, %v3730
          %v3987 = vadd.f32 %v3986, %v3731
          %v3988 = vadd.f32 %v3987, %v3732
          %v3989 = vadd.f32 %v3988, %v3733
          %v3990 = vadd.f32 %v3989, %v3734
          %v3991 = vadd.f32 %v3990, %v3735
          %v3992 = vadd.f32 %v3991, %v3736
          %v3993 = vadd.f32 %v3992, %v3737
          %v3994 = vadd.f32 %v3993, %v3738
          %v3995 = vadd.f32 %v3994, %v3739
          %v3996 = vadd.f32 %v3995, %v3740
          %v3997 = vadd.f32 %v3996, %v3741
          %v3998 = vadd.f32 %v3997, %v3742
          %v3999 = vadd.f32 %v3998, %v3743
          %v4000 = vadd.f32 %v3999, %v3744
          %v4001 = vadd.f32 %v4000, %v3745
          %v4002 = vadd.f32 %v4001, %v3746
          %v4003 = vadd.f32 %v4002, %v3747
          %v4004 = vadd.f32 %v4003, %v3748
          %v4005 = vadd.f32 %v4004, %v3749
          %v4006 = vadd.f32 %v4005, %v3750
          %v4007 = vadd.f32 %v4006, %v3751
          %v4008 = vadd.f32 %v4007, %v3752
          %v4009 = vadd.f32 %v4008, %v3753
          %v4010 = vadd.f32 %v4009, %v3754
          %v4011 = vadd.f32 %v4010, %v3755
          %v4012 = vadd.f32 %v4011, %v3756
          %v4013 = vadd.f32 %v4012, %v3757
          %v4014 = vadd.f32 %v4013, %v3758
          %v4015 = vadd.f32 %v4014, %v3759
          %v4016 = vadd.f32 %v4015, %v3760
          %v4017 = vadd.f32 %v4016, %v3761
          %v4018 = vadd.f32 %v4017, %v3762
          %v4019 = vadd.f32 %v4018, %v3763
          %v4020 = vadd.f32 %v4019, %v3764
          %v4021 = vadd.f32 %v4020, %v3765
          %v4022 = vadd.f32 %v4021, %v3766
          %v4023 = vadd.f32 %v4022, %v3767
          %v4024 = vadd.f32 %v4023, %v3768
          %v4025 = vadd.f32 %v4024, %v3769
          %v4026 = vadd.f32 %v4025, %v3770
          %v4027 = vadd.f32 %v4026, %v3771
          %v4028 = vadd.f32 %v4027, %v3772
          %v4029 = vadd.f32 %v4028, %v3773
          %v4030 = vadd.f32 %v4029, %v3774
          %v4031 = vadd.f32 %v4030, %v3775
          %v4032 = vadd.f32 %v4031, %v3776
          %v4033 = vadd.f32 %v4032, %v3777
          %v4034 = vadd.f32 %v4033, %v3778
          %v4035 = vadd.f32 %v4034, %v3779
          %v4036 = vadd.f32 %v4035, %v3780
          %v4037 = vadd.f32 %v4036, %v3781
          %v4038 = vadd.f32 %v4037, %v3782
          %v4039 = vadd.f32 %v4038, %v3783
          %v4040 = vadd.f32 %v4039, %v3784
          %v4041 = vadd.f32 %v4040, %v3785
          %v4042 = vadd.f32 %v4041, %v3786
          %v4043 = vadd.f32 %v4042, %v3787
          %v4044 = vadd.f32 %v4043, %v3788
          %v4045 = vadd.f32 %v4044, %v3789
          %v4046 = vadd.f32 %v4045, %v3790
          %v4047 = vadd.f32 %v4046, %v3791
          %v4048 = vadd.f32 %v4047, %v3792
          %v4049 = vadd.f32 %v4048, %v3793
          %v4050 = vadd.f32 %v4049, %v3794
          %v4051 = vadd.f32 %v4050, %v3795
          %v4052 = vadd.f32 %v4051, %v3796
          %v4053 = vadd.f32 %v4052, %v3797
          %v4054 = vadd.f32 %v4053, %v3798
          %v4055 = vadd.f32 %v4054, %v3799
          %v4056 = vadd.f32 %v4055, %v3800
          %v4057 = vadd.f32 %v4056, %v3801
          %v4058 = vadd.f32 %v4057, %v3802
          %v4059 = vadd.f32 %v4058, %v3803
          %v4060 = vadd.f32 %v4059, %v3804
          %v4061 = vadd.f32 %v4060, %v3805
          %v4062 = vadd.f32 %v4061, %v3806
          %v4063 = vadd.f32 %v4062, %v3807
          %v4064 = vadd.f32 %v4063, %v3808
          %v4065 = vadd.f32 %v4064, %v3809
          %v4066 = vadd.f32 %v4065, %v3810
          %v4067 = vadd.f32 %v4066, %v3811
          %v4068 = vadd.f32 %v4067, %v3812
          %v4069 = vadd.f32 %v4068, %v3813
          %v4070 = vadd.f32 %v4069, %v3814
          %v4071 = vadd.f32 %v4070, %v3815
          %v4072 = vadd.f32 %v4071, %v3816
          %v4073 = vadd.f32 %v4072, %v3817
          %v4074 = vadd.f32 %v4073, %v3818
          %v4075 = vadd.f32 %v4074, %v3819
          %v4076 = vadd.f32 %v4075, %v3820
          %v4077 = vadd.f32 %v4076, %v3821
          %v4078 = vadd.f32 %v4077, %v3822
          %v4079 = vadd.f32 %v4078, %v3823
          %v4080 = vadd.f32 %v4079, %v3824
          %v4081 = vadd.f32 %v4080, %v3825
          %v4082 = vadd.f32 %v4081, %v3826
          %v4083 = vadd.f32 %v4082, %v3827
          %v4084 = vadd.f32 %v4083, %v3828
          %v4085 = vadd.f32 %v4084, %v3829
          %v4086 = vadd.f32 %v4085, %v3830
          %v4087 = vadd.f32 %v4086, %v3831
          %v4088 = vadd.f32 %v4087, %v3832
          %v4089 = vadd.f32 %v4088, %v3833
          %v4090 = vadd.f32 %v4089, %v3834
          %v4091 = vadd.f32 %v4090, %v3835
          %v4092 = vadd.f32 %v4091, %v3836
          %v4093 = vadd.f32 %v4092, %v3837
          %v4094 = vadd.f32 %v4093, %v3838
          %v4095 = vadd.f32 %v4094, %v3839
          %v4096 = vadd.f32 %v4095, %v3840
          %v4097 = vadd.f32 %v4096, %v3841
          %v4098 = vadd.f32 %v4097, %v3842
          %v4099 = vadd.f32 %v4098, %v3843
          %v4100 = vadd.f32 %v4099, %v3844
          %v4101 = vadd.f32 %v4100, %v3845
          %v4102 = vadd.f32 %v4101, %v3846
          %v4103 = vadd.f32 %v4102, %v3847
          %v4104 = vadd.f32 %v4103, %v3848
          %v4105 = vadd.f32 %v3849, %v4104
          %4106 = vst [vmem:[#allocation7] sm:$0xff] %v4105
        $region48: #{tpu_custom_call.1} parent=27 // pred_fallthru
          _
        // Predicated region
        $region49: #{tpu_custom_call.1} parent=27 // pred_check
          %p4107 = pneg %p110
        $region50: #{tpu_custom_call.1} parent=27 // pred_check_branch
          %4109 = sbr.rel (%p4107) target = $region52
        $region51: #{tpu_custom_call.1} parent=27 // pred_region
          %s4111 = ssub.s32 128, 128
          %4112 = vsyncadd [#allocation4], %s4111
          %s4113 = smul.addr %s24, 128
          %s4114 = scalar_lea.hbm %s2, %s4113
          %s4116 = sshll.u32 [#allocation7], 4
          %s4117 = int_to_ptr.vmem [resolvable:$true] %s4116
          %4119 = dma.vmem_to_hbm [thread:$0]  %s4117, 128, %s4114, [#allocation4]
        $region52: #{tpu_custom_call.1} parent=27 // pred_fallthru
          _
        // Predicated region
        $region53: #{tpu_custom_call.1} parent=27 // pred_check
          %p4120 = pneg %p110
        $region54: #{tpu_custom_call.1} parent=27 // pred_check_branch
          %4122 = sbr.rel (%p4120) target = $region56
        $region55: #{tpu_custom_call.1} parent=27 // pred_region
          %4123 = dma.done [#allocation4], 128
        $region56: #{tpu_custom_call.1} parent=27 // pred_fallthru
          _
      $region28: #{tpu_custom_call.1} parent=5 // pred_fallthru
        _
      %p4124 = scmp.le.s32.totalorder 2, %s15
      // Predicated region
      $region57: #{tpu_custom_call.1} parent=5 // pred_check
        %p4125 = pneg %p4124
      $region58: #{tpu_custom_call.1} parent=5 // pred_check_branch
        %4127 = sbr.rel (%p4125) target = $region60
      $region59: #{tpu_custom_call.1} parent=5 // pred_region
        %s4128 = ssub.s32 %s15, 2
      $region60: #{tpu_custom_call.1} parent=5 // pred_fallthru
        _
    $region6: #{tpu_custom_call.1} parent=1 // loop_footer
      %s19 = sadd.s32 1, %s15
    $region7: #{tpu_custom_call.1} parent=1 // loop_footer_branch
      %14 = sbr.rel target = $region3
    $region8: #{tpu_custom_call.1} parent=1 // loop_exit
      _
    %4129 = vsyncpa [#allocation3], 1
    %s4130 = scalar_lea.sflag [#allocation3], 1
    %4131 = vsyncpa %s4130, 1
    %4132 = vsyncpa [#allocation6], 1
    %s4133 = scalar_lea.sflag [#allocation6], 1
    %4134 = vsyncpa %s4133, 1
    %4135 = vsyncpa [#allocation4], 1
    %s4136 = scalar_lea.sflag [#allocation4], 1
    %4137 = vsyncpa %s4136, 1

</llo_original>
